<compile_context>
chip_gen: v7x
topology: tpu7x:2x2x1
jax: 0.10.0
libtpu: 0.0.40
codegen_flags: <defaults>
</compile_context>

<pallas_src>
import math

import jax
import jax.numpy as jnp
from jax import lax
from jax.experimental import pallas as pl
from jax.experimental.pallas import tpu as pltpu


def _round_up(n, m):
    return int(pl.cdiv(n, m)) * m


def _pad_gate_axis(w, h, h_pad):
    """Zero-pad the packed gate axis [i|f|o|g] from 4*h to 4*h_pad (per gate)."""
    if h == h_pad:
        return w
    lead = w.shape[:-1]
    w4 = w.reshape(lead + (4, h))
    w4 = jnp.pad(w4, [(0, 0)] * len(lead) + [(0, 0), (0, h_pad - h)])
    return w4.reshape(lead + (4 * h_pad,))


def _make_lstm_kernel(hp, t_chunk, n_chunks):
    """Fused bidirectional LSTM recurrence over one time chunk.

    hp is the padded per-direction hidden width (multiple of 128), so gate
    slices and y stores are lane-dense. Gate packing order is [i, f, o, g].
    """
    g3 = 3 * hp

    def kernel(gf_ref, gb_ref, len_ref, whh_ref, bias_ref,
               yf_ref, yb_ref, hn_ref, c_sc):
        c = pl.program_id(0)

        @pl.when(c == 0)
        def _():
            hn_ref[...] = jnp.zeros_like(hn_ref)   # h state (resident output)
            c_sc[...] = jnp.zeros_like(c_sc)       # c state (scratch)

        whh_f = whh_ref[0]                         # [Hp, 4Hp] bf16
        whh_b = whh_ref[1]
        bias_f = bias_ref[0]                       # [1, 4Hp] f32
        bias_b = bias_ref[1]
        lens = len_ref[...]                        # [B, 1] int32

        t0_f = c * t_chunk                         # first fwd time of this chunk
        t0_b = (n_chunks - 1 - c) * t_chunk        # first bwd time of this chunk

        def cell(g_row, bias_d, whh_d, h, cst, valid):
            gates = (g_row.astype(jnp.float32) + bias_d
                     + jnp.dot(h.astype(jnp.bfloat16), whh_d,
                               preferred_element_type=jnp.float32))   # [B, 4Hp]
            sig = jax.nn.sigmoid(gates[:, :g3])    # i | f | o in one EUP sweep
            i_g = sig[:, 0:hp]
            f_g = sig[:, hp:2 * hp]
            o_g = sig[:, 2 * hp:g3]
            g_g = jnp.tanh(gates[:, g3:])
            c_new = f_g * cst + i_g * g_g
            h_new = o_g * jnp.tanh(c_new)
            h_out = jnp.where(valid, h_new, h)     # freeze state on padding
            c_out = jnp.where(valid, c_new, cst)
            y_row = jnp.where(valid, h_new, 0.0)   # pad_packed_sequence -> zeros
            return h_out, c_out, y_row

        def step(s, carry):
            h_f, c_f, h_b, c_b = carry
            sf = s
            sb = t_chunk - 1 - s
            valid_f = (t0_f + sf) < lens           # [B, 1]
            valid_b = (t0_b + sb) < lens

            # Two independent recurrent matmuls per step (fwd + bwd): doubles
            # ILP in the latency-bound loop, no direction-dependent selects.
            h_f, c_f, y_fr = cell(gf_ref[sf], bias_f, whh_f, h_f, c_f, valid_f)
            h_b, c_b, y_br = cell(gb_ref[sb], bias_b, whh_b, h_b, c_b, valid_b)

            # Lane-dense [B, Hp] stores (Hp % 128 == 0, B % 8 == 0), bf16 output.
            yf_ref[sf] = y_fr.astype(yf_ref.dtype)
            yb_ref[sb] = y_br.astype(yb_ref.dtype)
            return h_f, c_f, h_b, c_b

        carry0 = (hn_ref[0], c_sc[0], hn_ref[1], c_sc[1])
        h_f, c_f, h_b, c_b = lax.fori_loop(0, t_chunk, step, carry0,
                                           unroll=min(t_chunk, 8))
        hn_ref[0] = h_f                            # resident -> final hidden
        hn_ref[1] = h_b
        c_sc[0] = c_f
        c_sc[1] = c_b

    return kernel


def lstm_layer(x_tbd, len_col, wih, whh, bias, *, t_chunk):
    """One bidirectional LSTM layer.

    x_tbd   : [T_pad, B_pad, D] bf16 (time-major, T_pad % t_chunk == 0, B_pad % 8 == 0)
    len_col : [B_pad, 1] int32 valid lengths
    wih     : [2, D, 4H] bf16  (transposed input weights, gate order [i,f,o,g])
    whh     : [2, H, 4H] bf16  (transposed recurrent weights)
    bias    : [2, 1, 4H] f32   (b_ih + b_hh)
    returns (y [T_pad, B_pad, 2H] bf16, h_n [2, B_pad, H] f32)
    """
    T_pad, B, _ = x_tbd.shape
    H = whh.shape[1]
    Hp = _round_up(H, 128)          # lane-align hidden width at kernel boundary
    G4 = 4 * Hp
    n_chunks = T_pad // t_chunk

    # Pad each gate block of the packed [i|f|o|g] axis (and whh rows) with zeros;
    # padded hidden columns stay exactly 0 through the recurrence.
    wih_p = _pad_gate_axis(wih, H, Hp)                               # [2, D, 4Hp]
    whh_p = jnp.pad(_pad_gate_axis(whh, H, Hp),
                    ((0, 0), (0, Hp - H), (0, 0)))                   # [2, Hp, 4Hp]
    bias_p = _pad_gate_axis(bias, H, Hp)                             # [2, 1, 4Hp]

    # Hoisted input projection: one large bf16 MXU matmul for all timesteps of
    # both directions (f32 accumulation), streamed into the kernel as bf16.
    g = jnp.einsum("tbd,zdh->ztbh", x_tbd, wih_p,
                   preferred_element_type=jnp.float32).astype(jnp.bfloat16)

    grid_spec = pltpu.PrefetchScalarGridSpec(
        num_scalar_prefetch=0,
        grid=(n_chunks,),
        in_specs=[
            # forward g chunk (time chunk c)
            pl.BlockSpec((None, t_chunk, B, G4), lambda c: (0, c, 0, 0)),
            # backward g chunk (time chunk n_chunks-1-c), walked in reverse
            pl.BlockSpec((None, t_chunk, B, G4),
                         lambda c: (1, n_chunks - 1 - c, 0, 0)),
            pl.BlockSpec((B, 1), lambda c: (0, 0)),            # lengths (resident)
            pl.BlockSpec((2, Hp, G4), lambda c: (0, 0, 0)),    # whh (resident)
            pl.BlockSpec((2, 1, G4), lambda c: (0, 0, 0)),     # bias (resident)
        ],
        out_specs=[
            pl.BlockSpec((t_chunk, B, Hp), lambda c: (c, 0, 0)),
            pl.BlockSpec((t_chunk, B, Hp), lambda c: (n_chunks - 1 - c, 0, 0)),
            pl.BlockSpec((2, B, Hp), lambda c: (0, 0, 0)),     # resident h state
        ],
        scratch_shapes=[pltpu.VMEM((2, B, Hp), jnp.float32)],  # cell state c
    )

    # VMEM budget: double-buffered g/y streams + residents, clamped to [32, 64] MiB
    # (safe on v7x's 64 MiB physical VMEM as well as 128 MiB v5e/v6e).
    g_blk = t_chunk * B * G4 * 2
    y_blk = t_chunk * B * Hp * 2
    resident = 2 * Hp * G4 * 2 + 2 * G4 * 4 + B * 4 + 4 * B * Hp * 4
    need = 2 * (2 * g_blk) + 2 * (2 * y_blk) + resident
    vmem_limit = int(min(64 * 2**20, max(32 * 2**20, 2 * need)))

    flops = int(2 * T_pad * 2 * B * Hp * G4        # recurrent matmuls
                + 2 * T_pad * B * G4 * 8)          # elementwise gate math
    transcendentals = int(2 * T_pad * B * 5 * Hp)
    bytes_accessed = int(g.size * 2 + 2 * T_pad * B * Hp * 2
                         + 2 * Hp * G4 * 2 + 2 * G4 * 4 + B * 4 + 2 * B * Hp * 4)

    y_f, y_b, h_n = pl.pallas_call(
        _make_lstm_kernel(Hp, t_chunk, n_chunks),
        out_shape=(jax.ShapeDtypeStruct((T_pad, B, Hp), jnp.bfloat16),
                   jax.ShapeDtypeStruct((T_pad, B, Hp), jnp.bfloat16),
                   jax.ShapeDtypeStruct((2, B, Hp), jnp.float32)),
        grid_spec=grid_spec,
        compiler_params=pltpu.CompilerParams(
            dimension_semantics=("arbitrary",),
            vmem_limit_bytes=vmem_limit),
        cost_estimate=pl.CostEstimate(flops=flops,
                                      transcendentals=transcendentals,
                                      bytes_accessed=bytes_accessed),
    )(g, g, len_col, whh_p, bias_p)

    y_cat = jnp.concatenate([y_f[..., :H], y_b[..., :H]], axis=-1)   # bf16 [T,B,2H]
    return y_cat, h_n[..., :H]


def bilstm_forward(params, x, x_mask, *, t_chunk=32):
    """x: [B, T, D_in] f32; x_mask: [B, T] in {0,1} (valid prefix).

    Returns (outputs [B, T, 2H] f32 with zero padding, hidden [2L, B, H] f32 in
    length-descending batch order), matching the PyTorch reference semantics.
    Cropping the time axis to max(lengths) is left to the caller (jit-safe);
    padded positions are already exactly zero.
    """
    B, T, _ = x.shape
    lengths = x_mask.astype(jnp.int32).sum(axis=1)                   # [B]

    t_chunk = max(8, min(int(t_chunk), _round_up(T, 8)))
    T_pad = _round_up(T, t_chunk)
    B_pad = _round_up(B, 8)                                          # sublane align

    x_tb = jnp.transpose(x, (1, 0, 2)).astype(jnp.bfloat16)          # [T, B, D]
    x_tb = jnp.pad(x_tb, ((0, T_pad - T), (0, B_pad - B), (0, 0)))
    len_col = jnp.pad(lengths, (0, B_pad - B))[:, None].astype(jnp.int32)

    layer_in = x_tb
    hiddens = []
    for (wih, whh, bias) in params:
        y, h_n = lstm_layer(layer_in, len_col, wih, whh, bias, t_chunk=t_chunk)
        layer_in = y                                                 # bf16
        hiddens.append(h_n[0])    # forward
        hiddens.append(h_n[1])    # backward
        # TODO(synk): inter-layer dropout omitted (inference-mode semantics).

    outputs = jnp.transpose(layer_in[:T, :B], (1, 0, 2)).astype(jnp.float32)
    hidden = jnp.stack(hiddens, axis=0)[:, :B, :]                    # [2L, B, H]

    # Reference quirk: outputs are returned in original batch order, but
    # `hidden` stays in length-descending (packed-sort) order.
    # TODO(synk): jnp.argsort tie-breaking for equal lengths may differ from torch.sort.
    idx_sort = jnp.argsort(-lengths)
    hidden = hidden[:, idx_sort, :]
    return outputs, hidden


def init_params(key, input_size, hidden_size, num_layers):
    """PyTorch nn.LSTM-style init U(-1/sqrt(H), 1/sqrt(H)), repacked for the kernel:
    transposed weights, gate order [i, f, g, o] -> [i, f, o, g], combined bias."""
    H = hidden_size
    k = 1.0 / math.sqrt(H)
    perm = jnp.concatenate([jnp.arange(0, 2 * H),       # i, f
                            jnp.arange(3 * H, 4 * H),   # o
                            jnp.arange(2 * H, 3 * H)])  # g
    params = []
    for layer in range(num_layers):
        d_in = input_size if layer == 0 else 2 * H
        wih_l, whh_l, b_l = [], [], []
        for _ in range(2):                               # fwd, bwd
            key, k0, k1, k2, k3 = jax.random.split(key, 5)
            w_ih = jax.random.uniform(k0, (4 * H, d_in), jnp.float32, -k, k)
            w_hh = jax.random.uniform(k1, (4 * H, H), jnp.float32, -k, k)
            b_ih = jax.random.uniform(k2, (4 * H,), jnp.float32, -k, k)
            b_hh = jax.random.uniform(k3, (4 * H,), jnp.float32, -k, k)
            wih_l.append(jnp.transpose(w_ih[perm]))      # [d_in, 4H]
            whh_l.append(jnp.transpose(w_hh[perm]))      # [H, 4H]
            b_l.append((b_ih + b_hh)[perm])              # [4H]
        params.append((
            jnp.stack(wih_l, 0).astype(jnp.bfloat16),    # [2, d_in, 4H]
            jnp.stack(whh_l, 0).astype(jnp.bfloat16),    # [2, H, 4H]
            jnp.stack(b_l, 0)[:, None, :],               # [2, 1, 4H] f32
        ))
    return params


if __name__ == "__main__":
    key = jax.random.PRNGKey(0)
    B, T = 4, 8
    input_size, hidden_size, num_layers = 16, 32, 2

    k_x, k_p = jax.random.split(key)
    x = jax.random.normal(k_x, (B, T, input_size), dtype=jnp.float32)
    lengths_py = [8, 5, 3, 6]                            # one full-length sequence
    lengths = jnp.array(lengths_py, dtype=jnp.int32)
    x_mask = (jnp.arange(T)[None, :] < lengths[:, None]).astype(jnp.float32)

    params = init_params(k_p, input_size, hidden_size, num_layers)

    fwd = jax.jit(bilstm_forward)
    outputs, hidden = fwd(params, x, x_mask)
    jax.block_until_ready((outputs, hidden))

    # pad_packed_sequence crops time to max(lengths); host-side static crop.
    t_max = max(lengths_py)
    outputs = outputs[:, :t_max, :]

    assert outputs.shape == (B, t_max, 2 * hidden_size)
    assert hidden.shape == (2 * num_layers, B, hidden_size)
    # Padded positions must be exactly zero (pad_packed_sequence semantics).
    pad_mask = (jnp.arange(t_max)[None, :, None] >= lengths[:, None, None])
    assert float(jnp.max(jnp.abs(jnp.where(pad_mask, outputs, 0.0)))) == 0.0
    print("KERNEL_OK")
</pallas_src>

<mosaic_0001>
module attributes {stable_mosaic.version = 11 : i64} {
  func.func @kernel(%arg0: i32, %arg1: memref<1x8x8x512xbf16, #tpu.memory_space<vmem>>, %arg2: memref<1x8x8x512xbf16, #tpu.memory_space<vmem>>, %arg3: memref<8x1xi32, #tpu.memory_space<vmem>>, %arg4: memref<2x128x512xbf16, #tpu.memory_space<vmem>>, %arg5: memref<2x1x512xf32, #tpu.memory_space<vmem>>, %arg6: memref<8x8x128xbf16, #tpu.memory_space<vmem>>, %arg7: memref<8x8x128xbf16, #tpu.memory_space<vmem>>, %arg8: memref<2x8x128xf32, #tpu.memory_space<vmem>>, %arg9: memref<2x8x128xf32, #tpu.memory_space<vmem>>) attributes {dimension_semantics = [#tpu.dimension_semantics<arbitrary>], iteration_bounds = array<i64: 1>, scalar_prefetch = 0 : i64, scratch_operands = 1 : i64, tpu.core_type = #tpu.core_type<tc>, window_params = [{transform_indices = @transform_0, window_bounds = array<i64: 1, 8, 8, 512>}, {transform_indices = @transform_1, window_bounds = array<i64: 1, 8, 8, 512>}, {pipeline_mode = #tpu.pipeline_mode<synchronous>, transform_indices = @transform_2, window_bounds = array<i64: 8, 1>}, {pipeline_mode = #tpu.pipeline_mode<synchronous>, transform_indices = @transform_3, window_bounds = array<i64: 2, 128, 512>}, {pipeline_mode = #tpu.pipeline_mode<synchronous>, transform_indices = @transform_4, window_bounds = array<i64: 2, 1, 512>}, {transform_indices = @transform_5, window_bounds = array<i64: 8, 8, 128>}, {transform_indices = @transform_6, window_bounds = array<i64: 8, 8, 128>}, {pipeline_mode = #tpu.pipeline_mode<synchronous>, transform_indices = @transform_7, window_bounds = array<i64: 2, 8, 128>}]} {
    %c0_i32 = arith.constant 0 : i32
    %0 = arith.cmpi eq, %arg0, %c0_i32 : i32
    %1 = arith.extui %0 : i1 to i32
    %c0_i32_0 = arith.constant 0 : i32
    %2 = arith.cmpi ne, %1, %c0_i32_0 : i32
    scf.if %2 {
      %cst_176 = arith.constant 0.000000e+00 : f32
      %731 = vector.broadcast %cst_176 : f32 to vector<2x8x128xf32>
      %c0_177 = arith.constant 0 : index
      %c0_178 = arith.constant 0 : index
      %c0_179 = arith.constant 0 : index
      %732 = vector.load %arg8[%c0_177, %c0_178, %c0_179] : memref<2x8x128xf32, #tpu.memory_space<vmem>>, vector<2x8x128xf32>
      tpu.vector_store %arg8[%c0_177, %c0_178, %c0_179], %731 {strides = array<i32>} : memref<2x8x128xf32, #tpu.memory_space<vmem>>, vector<2x8x128xf32>,
      %cst_180 = arith.constant 0.000000e+00 : f32
      %733 = vector.broadcast %cst_180 : f32 to vector<2x8x128xf32>
      %c0_181 = arith.constant 0 : index
      %c0_182 = arith.constant 0 : index
      %c0_183 = arith.constant 0 : index
      %734 = vector.load %arg9[%c0_181, %c0_182, %c0_183] : memref<2x8x128xf32, #tpu.memory_space<vmem>>, vector<2x8x128xf32>
      tpu.vector_store %arg9[%c0_181, %c0_182, %c0_183], %733 {strides = array<i32>} : memref<2x8x128xf32, #tpu.memory_space<vmem>>, vector<2x8x128xf32>,
    } else {
    }
    %c0 = arith.constant 0 : index
    %c0_1 = arith.constant 0 : index
    %c0_2 = arith.constant 0 : index
    %3 = vector.load %arg4[%c0, %c0_1, %c0_2] : memref<2x128x512xbf16, #tpu.memory_space<vmem>>, vector<1x128x512xbf16>
    %4 = vector.shape_cast %3 : vector<1x128x512xbf16> to vector<128x512xbf16>
    %c1 = arith.constant 1 : index
    %c0_3 = arith.constant 0 : index
    %c0_4 = arith.constant 0 : index
    %5 = vector.load %arg4[%c1, %c0_3, %c0_4] : memref<2x128x512xbf16, #tpu.memory_space<vmem>>, vector<1x128x512xbf16>
    %6 = vector.shape_cast %5 : vector<1x128x512xbf16> to vector<128x512xbf16>
    %c0_5 = arith.constant 0 : index
    %c0_6 = arith.constant 0 : index
    %c0_7 = arith.constant 0 : index
    %7 = vector.load %arg5[%c0_5, %c0_6, %c0_7] : memref<2x1x512xf32, #tpu.memory_space<vmem>>, vector<1x1x512xf32>
    %8 = vector.shape_cast %7 : vector<1x1x512xf32> to vector<1x512xf32>
    %c1_8 = arith.constant 1 : index
    %c0_9 = arith.constant 0 : index
    %c0_10 = arith.constant 0 : index
    %9 = vector.load %arg5[%c1_8, %c0_9, %c0_10] : memref<2x1x512xf32, #tpu.memory_space<vmem>>, vector<1x1x512xf32>
    %10 = vector.shape_cast %9 : vector<1x1x512xf32> to vector<1x512xf32>
    %c0_11 = arith.constant 0 : index
    %c0_12 = arith.constant 0 : index
    %11 = vector.load %arg3[%c0_11, %c0_12] : memref<8x1xi32, #tpu.memory_space<vmem>>, vector<8x1xi32>
    %c8_i32 = arith.constant 8 : i32
    %12 = arith.muli %arg0, %c8_i32 : i32
    %c0_i32_13 = arith.constant 0 : i32
    %13 = arith.subi %c0_i32_13, %arg0 : i32
    %c8_i32_14 = arith.constant 8 : i32
    %14 = arith.muli %13, %c8_i32_14 : i32
    %c0_15 = arith.constant 0 : index
    %c0_16 = arith.constant 0 : index
    %c0_17 = arith.constant 0 : index
    %15 = vector.load %arg8[%c0_15, %c0_16, %c0_17] : memref<2x8x128xf32, #tpu.memory_space<vmem>>, vector<1x8x128xf32>
    %16 = vector.shape_cast %15 : vector<1x8x128xf32> to vector<8x128xf32>
    %c0_18 = arith.constant 0 : index
    %c0_19 = arith.constant 0 : index
    %c0_20 = arith.constant 0 : index
    %17 = vector.load %arg9[%c0_18, %c0_19, %c0_20] : memref<2x8x128xf32, #tpu.memory_space<vmem>>, vector<1x8x128xf32>
    %18 = vector.shape_cast %17 : vector<1x8x128xf32> to vector<8x128xf32>
    %c1_21 = arith.constant 1 : index
    %c0_22 = arith.constant 0 : index
    %c0_23 = arith.constant 0 : index
    %19 = vector.load %arg8[%c1_21, %c0_22, %c0_23] : memref<2x8x128xf32, #tpu.memory_space<vmem>>, vector<1x8x128xf32>
    %20 = vector.shape_cast %19 : vector<1x8x128xf32> to vector<8x128xf32>
    %c1_24 = arith.constant 1 : index
    %c0_25 = arith.constant 0 : index
    %c0_26 = arith.constant 0 : index
    %21 = vector.load %arg9[%c1_24, %c0_25, %c0_26] : memref<2x8x128xf32, #tpu.memory_space<vmem>>, vector<1x8x128xf32>
    %22 = vector.shape_cast %21 : vector<1x8x128xf32> to vector<8x128xf32>
    %c0_i32_27 = arith.constant 0 : i32
    %c7_i32 = arith.constant 7 : i32
    %23 = arith.subi %c7_i32, %c0_i32_27 : i32
    %24 = arith.addi %12, %c0_i32_27 : i32
    %25 = vector.broadcast %24 : i32 to vector<8x1xi32>
    %26 = arith.cmpi slt, %25, %11 : vector<8x1xi32>
    %27 = arith.addi %14, %23 : i32
    %28 = vector.broadcast %27 : i32 to vector<8x1xi32>
    %29 = arith.cmpi slt, %28, %11 : vector<8x1xi32>
    %c0_28 = arith.constant 0 : index
    %30 = arith.index_cast %c0_i32_27 : i32 to index
    %c0_29 = arith.constant 0 : index
    %c0_30 = arith.constant 0 : index
    %31 = vector.load %arg1[%c0_28, %30, %c0_29, %c0_30] : memref<1x8x8x512xbf16, #tpu.memory_space<vmem>>, vector<1x1x8x512xbf16>
    %32 = vector.shape_cast %31 : vector<1x1x8x512xbf16> to vector<8x512xbf16>
    %33 = arith.extf %32 : vector<8x512xbf16> to vector<8x512xf32>
    %34 = vector.broadcast %8 : vector<1x512xf32> to vector<8x512xf32>
    %35 = arith.addf %33, %34 : vector<8x512xf32>
    %36 = arith.truncf %16 : vector<8x128xf32> to vector<8x128xbf16>
    %cst = arith.constant dense<0.000000e+00> : vector<8x512xf32>
    %37 = tpu.matmul %36, %4, %cst {dimension_numbers = #tpu.dot_dimension_numbers<[1], [0], [0], [1], [0, 0, 1, 1], [], []>} : vector<8x128xbf16>, vector<128x512xbf16>, vector<8x512xf32> -> vector<8x512xf32>
    %38 = arith.addf %35, %37 : vector<8x512xf32>
    %39 = vector.extract_strided_slice %38 {offsets = [0, 0], sizes = [8, 384], strides = [1, 1]} : vector<8x512xf32> to vector<8x384xf32>
    %40 = arith.negf %39 : vector<8x384xf32>
    %41 = math.exp %40 : vector<8x384xf32>
    %cst_31 = arith.constant 1.000000e+00 : f32
    %42 = vector.broadcast %cst_31 : f32 to vector<8x384xf32>
    %43 = arith.addf %42, %41 : vector<8x384xf32>
    %44 = arith.divf %42, %43 : vector<8x384xf32>
    %45 = vector.extract_strided_slice %44 {offsets = [0, 0], sizes = [8, 128], strides = [1, 1]} : vector<8x384xf32> to vector<8x128xf32>
    %46 = vector.extract_strided_slice %44 {offsets = [0, 128], sizes = [8, 128], strides = [1, 1]} : vector<8x384xf32> to vector<8x128xf32>
    %47 = vector.extract_strided_slice %44 {offsets = [0, 256], sizes = [8, 128], strides = [1, 1]} : vector<8x384xf32> to vector<8x128xf32>
    %48 = vector.extract_strided_slice %38 {offsets = [0, 384], sizes = [8, 128], strides = [1, 1]} : vector<8x512xf32> to vector<8x128xf32>
    %49 = math.tanh %48 : vector<8x128xf32>
    %50 = arith.mulf %46, %18 : vector<8x128xf32>
    %51 = arith.mulf %45, %49 : vector<8x128xf32>
    %52 = arith.addf %50, %51 : vector<8x128xf32>
    %53 = math.tanh %52 : vector<8x128xf32>
    %54 = arith.mulf %47, %53 : vector<8x128xf32>
    %55 = vector.shape_cast %26 : vector<8x1xi1> to vector<8x1xi1>
    %56 = vector.broadcast %55 : vector<8x1xi1> to vector<8x128xi1>
    %57 = arith.select %56, %54, %16 : vector<8x128xi1>, vector<8x128xf32>
    %58 = vector.shape_cast %26 : vector<8x1xi1> to vector<8x1xi1>
    %59 = vector.broadcast %58 : vector<8x1xi1> to vector<8x128xi1>
    %60 = arith.select %59, %52, %18 : vector<8x128xi1>, vector<8x128xf32>
    %cst_32 = arith.constant 0.000000e+00 : f32
    %61 = vector.shape_cast %26 : vector<8x1xi1> to vector<8x1xi1>
    %62 = vector.broadcast %61 : vector<8x1xi1> to vector<8x128xi1>
    %63 = vector.broadcast %cst_32 : f32 to vector<8x128xf32>
    %64 = arith.select %62, %54, %63 : vector<8x128xi1>, vector<8x128xf32>
    %c0_33 = arith.constant 0 : index
    %65 = arith.index_cast %23 : i32 to index
    %c0_34 = arith.constant 0 : index
    %c0_35 = arith.constant 0 : index
    %66 = vector.load %arg2[%c0_33, %65, %c0_34, %c0_35] : memref<1x8x8x512xbf16, #tpu.memory_space<vmem>>, vector<1x1x8x512xbf16>
    %67 = vector.shape_cast %66 : vector<1x1x8x512xbf16> to vector<8x512xbf16>
    %68 = arith.extf %67 : vector<8x512xbf16> to vector<8x512xf32>
    %69 = vector.broadcast %10 : vector<1x512xf32> to vector<8x512xf32>
    %70 = arith.addf %68, %69 : vector<8x512xf32>
    %71 = arith.truncf %20 : vector<8x128xf32> to vector<8x128xbf16>
    %cst_36 = arith.constant dense<0.000000e+00> : vector<8x512xf32>
    %72 = tpu.matmul %71, %6, %cst_36 {dimension_numbers = #tpu.dot_dimension_numbers<[1], [0], [0], [1], [0, 0, 1, 1], [], []>} : vector<8x128xbf16>, vector<128x512xbf16>, vector<8x512xf32> -> vector<8x512xf32>
    %73 = arith.addf %70, %72 : vector<8x512xf32>
    %74 = vector.extract_strided_slice %73 {offsets = [0, 0], sizes = [8, 384], strides = [1, 1]} : vector<8x512xf32> to vector<8x384xf32>
    %75 = arith.negf %74 : vector<8x384xf32>
    %76 = math.exp %75 : vector<8x384xf32>
    %cst_37 = arith.constant 1.000000e+00 : f32
    %77 = vector.broadcast %cst_37 : f32 to vector<8x384xf32>
    %78 = arith.addf %77, %76 : vector<8x384xf32>
    %79 = arith.divf %77, %78 : vector<8x384xf32>
    %80 = vector.extract_strided_slice %79 {offsets = [0, 0], sizes = [8, 128], strides = [1, 1]} : vector<8x384xf32> to vector<8x128xf32>
    %81 = vector.extract_strided_slice %79 {offsets = [0, 128], sizes = [8, 128], strides = [1, 1]} : vector<8x384xf32> to vector<8x128xf32>
    %82 = vector.extract_strided_slice %79 {offsets = [0, 256], sizes = [8, 128], strides = [1, 1]} : vector<8x384xf32> to vector<8x128xf32>
    %83 = vector.extract_strided_slice %73 {offsets = [0, 384], sizes = [8, 128], strides = [1, 1]} : vector<8x512xf32> to vector<8x128xf32>
    %84 = math.tanh %83 : vector<8x128xf32>
    %85 = arith.mulf %81, %22 : vector<8x128xf32>
    %86 = arith.mulf %80, %84 : vector<8x128xf32>
    %87 = arith.addf %85, %86 : vector<8x128xf32>
    %88 = math.tanh %87 : vector<8x128xf32>
    %89 = arith.mulf %82, %88 : vector<8x128xf32>
    %90 = vector.shape_cast %29 : vector<8x1xi1> to vector<8x1xi1>
    %91 = vector.broadcast %90 : vector<8x1xi1> to vector<8x128xi1>
    %92 = arith.select %91, %89, %20 : vector<8x128xi1>, vector<8x128xf32>
    %93 = vector.shape_cast %29 : vector<8x1xi1> to vector<8x1xi1>
    %94 = vector.broadcast %93 : vector<8x1xi1> to vector<8x128xi1>
    %95 = arith.select %94, %87, %22 : vector<8x128xi1>, vector<8x128xf32>
    %cst_38 = arith.constant 0.000000e+00 : f32
    %96 = vector.shape_cast %29 : vector<8x1xi1> to vector<8x1xi1>
    %97 = vector.broadcast %96 : vector<8x1xi1> to vector<8x128xi1>
    %98 = vector.broadcast %cst_38 : f32 to vector<8x128xf32>
    %99 = arith.select %97, %89, %98 : vector<8x128xi1>, vector<8x128xf32>
    %100 = arith.truncf %64 : vector<8x128xf32> to vector<8x128xbf16>
    %101 = arith.index_cast %c0_i32_27 : i32 to index
    %c0_39 = arith.constant 0 : index
    %c0_40 = arith.constant 0 : index
    %102 = vector.load %arg6[%101, %c0_39, %c0_40] : memref<8x8x128xbf16, #tpu.memory_space<vmem>>, vector<1x8x128xbf16>
    %103 = vector.shape_cast %102 : vector<1x8x128xbf16> to vector<8x128xbf16>
    %104 = vector.shape_cast %100 : vector<8x128xbf16> to vector<1x8x128xbf16>
    tpu.vector_store %arg6[%101, %c0_39, %c0_40], %104 {strides = array<i32>} : memref<8x8x128xbf16, #tpu.memory_space<vmem>>, vector<1x8x128xbf16>,
    %105 = arith.truncf %99 : vector<8x128xf32> to vector<8x128xbf16>
    %106 = arith.index_cast %23 : i32 to index
    %c0_41 = arith.constant 0 : index
    %c0_42 = arith.constant 0 : index
    %107 = vector.load %arg7[%106, %c0_41, %c0_42] : memref<8x8x128xbf16, #tpu.memory_space<vmem>>, vector<1x8x128xbf16>
    %108 = vector.shape_cast %107 : vector<1x8x128xbf16> to vector<8x128xbf16>
    %109 = vector.shape_cast %105 : vector<8x128xbf16> to vector<1x8x128xbf16>
    tpu.vector_store %arg7[%106, %c0_41, %c0_42], %109 {strides = array<i32>} : memref<8x8x128xbf16, #tpu.memory_space<vmem>>, vector<1x8x128xbf16>,
    %c1_i32 = arith.constant 1 : i32
    %c7_i32_43 = arith.constant 7 : i32
    %110 = arith.subi %c7_i32_43, %c1_i32 : i32
    %111 = arith.addi %12, %c1_i32 : i32
    %112 = vector.broadcast %111 : i32 to vector<8x1xi32>
    %113 = arith.cmpi slt, %112, %11 : vector<8x1xi32>
    %114 = arith.addi %14, %110 : i32
    %115 = vector.broadcast %114 : i32 to vector<8x1xi32>
    %116 = arith.cmpi slt, %115, %11 : vector<8x1xi32>
    %c0_44 = arith.constant 0 : index
    %117 = arith.index_cast %c1_i32 : i32 to index
    %c0_45 = arith.constant 0 : index
    %c0_46 = arith.constant 0 : index
    %118 = vector.load %arg1[%c0_44, %117, %c0_45, %c0_46] : memref<1x8x8x512xbf16, #tpu.memory_space<vmem>>, vector<1x1x8x512xbf16>
    %119 = vector.shape_cast %118 : vector<1x1x8x512xbf16> to vector<8x512xbf16>
    %120 = arith.extf %119 : vector<8x512xbf16> to vector<8x512xf32>
    %121 = vector.broadcast %8 : vector<1x512xf32> to vector<8x512xf32>
    %122 = arith.addf %120, %121 : vector<8x512xf32>
    %123 = arith.truncf %57 : vector<8x128xf32> to vector<8x128xbf16>
    %cst_47 = arith.constant dense<0.000000e+00> : vector<8x512xf32>
    %124 = tpu.matmul %123, %4, %cst_47 {dimension_numbers = #tpu.dot_dimension_numbers<[1], [0], [0], [1], [0, 0, 1, 1], [], []>} : vector<8x128xbf16>, vector<128x512xbf16>, vector<8x512xf32> -> vector<8x512xf32>
    %125 = arith.addf %122, %124 : vector<8x512xf32>
    %126 = vector.extract_strided_slice %125 {offsets = [0, 0], sizes = [8, 384], strides = [1, 1]} : vector<8x512xf32> to vector<8x384xf32>
    %127 = arith.negf %126 : vector<8x384xf32>
    %128 = math.exp %127 : vector<8x384xf32>
    %cst_48 = arith.constant 1.000000e+00 : f32
    %129 = vector.broadcast %cst_48 : f32 to vector<8x384xf32>
    %130 = arith.addf %129, %128 : vector<8x384xf32>
    %131 = arith.divf %129, %130 : vector<8x384xf32>
    %132 = vector.extract_strided_slice %131 {offsets = [0, 0], sizes = [8, 128], strides = [1, 1]} : vector<8x384xf32> to vector<8x128xf32>
    %133 = vector.extract_strided_slice %131 {offsets = [0, 128], sizes = [8, 128], strides = [1, 1]} : vector<8x384xf32> to vector<8x128xf32>
    %134 = vector.extract_strided_slice %131 {offsets = [0, 256], sizes = [8, 128], strides = [1, 1]} : vector<8x384xf32> to vector<8x128xf32>
    %135 = vector.extract_strided_slice %125 {offsets = [0, 384], sizes = [8, 128], strides = [1, 1]} : vector<8x512xf32> to vector<8x128xf32>
    %136 = math.tanh %135 : vector<8x128xf32>
    %137 = arith.mulf %133, %60 : vector<8x128xf32>
    %138 = arith.mulf %132, %136 : vector<8x128xf32>
    %139 = arith.addf %137, %138 : vector<8x128xf32>
    %140 = math.tanh %139 : vector<8x128xf32>
    %141 = arith.mulf %134, %140 : vector<8x128xf32>
    %142 = vector.shape_cast %113 : vector<8x1xi1> to vector<8x1xi1>
    %143 = vector.broadcast %142 : vector<8x1xi1> to vector<8x128xi1>
    %144 = arith.select %143, %141, %57 : vector<8x128xi1>, vector<8x128xf32>
    %145 = vector.shape_cast %113 : vector<8x1xi1> to vector<8x1xi1>
    %146 = vector.broadcast %145 : vector<8x1xi1> to vector<8x128xi1>
    %147 = arith.select %146, %139, %60 : vector<8x128xi1>, vector<8x128xf32>
    %cst_49 = arith.constant 0.000000e+00 : f32
    %148 = vector.shape_cast %113 : vector<8x1xi1> to vector<8x1xi1>
    %149 = vector.broadcast %148 : vector<8x1xi1> to vector<8x128xi1>
    %150 = vector.broadcast %cst_49 : f32 to vector<8x128xf32>
    %151 = arith.select %149, %141, %150 : vector<8x128xi1>, vector<8x128xf32>
    %c0_50 = arith.constant 0 : index
    %152 = arith.index_cast %110 : i32 to index
    %c0_51 = arith.constant 0 : index
    %c0_52 = arith.constant 0 : index
    %153 = vector.load %arg2[%c0_50, %152, %c0_51, %c0_52] : memref<1x8x8x512xbf16, #tpu.memory_space<vmem>>, vector<1x1x8x512xbf16>
    %154 = vector.shape_cast %153 : vector<1x1x8x512xbf16> to vector<8x512xbf16>
    %155 = arith.extf %154 : vector<8x512xbf16> to vector<8x512xf32>
    %156 = vector.broadcast %10 : vector<1x512xf32> to vector<8x512xf32>
    %157 = arith.addf %155, %156 : vector<8x512xf32>
    %158 = arith.truncf %92 : vector<8x128xf32> to vector<8x128xbf16>
    %cst_53 = arith.constant dense<0.000000e+00> : vector<8x512xf32>
    %159 = tpu.matmul %158, %6, %cst_53 {dimension_numbers = #tpu.dot_dimension_numbers<[1], [0], [0], [1], [0, 0, 1, 1], [], []>} : vector<8x128xbf16>, vector<128x512xbf16>, vector<8x512xf32> -> vector<8x512xf32>
    %160 = arith.addf %157, %159 : vector<8x512xf32>
    %161 = vector.extract_strided_slice %160 {offsets = [0, 0], sizes = [8, 384], strides = [1, 1]} : vector<8x512xf32> to vector<8x384xf32>
    %162 = arith.negf %161 : vector<8x384xf32>
    %163 = math.exp %162 : vector<8x384xf32>
    %cst_54 = arith.constant 1.000000e+00 : f32
    %164 = vector.broadcast %cst_54 : f32 to vector<8x384xf32>
    %165 = arith.addf %164, %163 : vector<8x384xf32>
    %166 = arith.divf %164, %165 : vector<8x384xf32>
    %167 = vector.extract_strided_slice %166 {offsets = [0, 0], sizes = [8, 128], strides = [1, 1]} : vector<8x384xf32> to vector<8x128xf32>
    %168 = vector.extract_strided_slice %166 {offsets = [0, 128], sizes = [8, 128], strides = [1, 1]} : vector<8x384xf32> to vector<8x128xf32>
    %169 = vector.extract_strided_slice %166 {offsets = [0, 256], sizes = [8, 128], strides = [1, 1]} : vector<8x384xf32> to vector<8x128xf32>
    %170 = vector.extract_strided_slice %160 {offsets = [0, 384], sizes = [8, 128], strides = [1, 1]} : vector<8x512xf32> to vector<8x128xf32>
    %171 = math.tanh %170 : vector<8x128xf32>
    %172 = arith.mulf %168, %95 : vector<8x128xf32>
    %173 = arith.mulf %167, %171 : vector<8x128xf32>
    %174 = arith.addf %172, %173 : vector<8x128xf32>
    %175 = math.tanh %174 : vector<8x128xf32>
    %176 = arith.mulf %169, %175 : vector<8x128xf32>
    %177 = vector.shape_cast %116 : vector<8x1xi1> to vector<8x1xi1>
    %178 = vector.broadcast %177 : vector<8x1xi1> to vector<8x128xi1>
    %179 = arith.select %178, %176, %92 : vector<8x128xi1>, vector<8x128xf32>
    %180 = vector.shape_cast %116 : vector<8x1xi1> to vector<8x1xi1>
    %181 = vector.broadcast %180 : vector<8x1xi1> to vector<8x128xi1>
    %182 = arith.select %181, %174, %95 : vector<8x128xi1>, vector<8x128xf32>
    %cst_55 = arith.constant 0.000000e+00 : f32
    %183 = vector.shape_cast %116 : vector<8x1xi1> to vector<8x1xi1>
    %184 = vector.broadcast %183 : vector<8x1xi1> to vector<8x128xi1>
    %185 = vector.broadcast %cst_55 : f32 to vector<8x128xf32>
    %186 = arith.select %184, %176, %185 : vector<8x128xi1>, vector<8x128xf32>
    %187 = arith.truncf %151 : vector<8x128xf32> to vector<8x128xbf16>
    %188 = arith.index_cast %c1_i32 : i32 to index
    %c0_56 = arith.constant 0 : index
    %c0_57 = arith.constant 0 : index
    %189 = vector.load %arg6[%188, %c0_56, %c0_57] : memref<8x8x128xbf16, #tpu.memory_space<vmem>>, vector<1x8x128xbf16>
    %190 = vector.shape_cast %189 : vector<1x8x128xbf16> to vector<8x128xbf16>
    %191 = vector.shape_cast %187 : vector<8x128xbf16> to vector<1x8x128xbf16>
    tpu.vector_store %arg6[%188, %c0_56, %c0_57], %191 {strides = array<i32>} : memref<8x8x128xbf16, #tpu.memory_space<vmem>>, vector<1x8x128xbf16>,
    %192 = arith.truncf %186 : vector<8x128xf32> to vector<8x128xbf16>
    %193 = arith.index_cast %110 : i32 to index
    %c0_58 = arith.constant 0 : index
    %c0_59 = arith.constant 0 : index
    %194 = vector.load %arg7[%193, %c0_58, %c0_59] : memref<8x8x128xbf16, #tpu.memory_space<vmem>>, vector<1x8x128xbf16>
    %195 = vector.shape_cast %194 : vector<1x8x128xbf16> to vector<8x128xbf16>
    %196 = vector.shape_cast %192 : vector<8x128xbf16> to vector<1x8x128xbf16>
    tpu.vector_store %arg7[%193, %c0_58, %c0_59], %196 {strides = array<i32>} : memref<8x8x128xbf16, #tpu.memory_space<vmem>>, vector<1x8x128xbf16>,
    %c2_i32 = arith.constant 2 : i32
    %c7_i32_60 = arith.constant 7 : i32
    %197 = arith.subi %c7_i32_60, %c2_i32 : i32
    %198 = arith.addi %12, %c2_i32 : i32
    %199 = vector.broadcast %198 : i32 to vector<8x1xi32>
    %200 = arith.cmpi slt, %199, %11 : vector<8x1xi32>
    %201 = arith.addi %14, %197 : i32
    %202 = vector.broadcast %201 : i32 to vector<8x1xi32>
    %203 = arith.cmpi slt, %202, %11 : vector<8x1xi32>
    %c0_61 = arith.constant 0 : index
    %204 = arith.index_cast %c2_i32 : i32 to index
    %c0_62 = arith.constant 0 : index
    %c0_63 = arith.constant 0 : index
    %205 = vector.load %arg1[%c0_61, %204, %c0_62, %c0_63] : memref<1x8x8x512xbf16, #tpu.memory_space<vmem>>, vector<1x1x8x512xbf16>
    %206 = vector.shape_cast %205 : vector<1x1x8x512xbf16> to vector<8x512xbf16>
    %207 = arith.extf %206 : vector<8x512xbf16> to vector<8x512xf32>
    %208 = vector.broadcast %8 : vector<1x512xf32> to vector<8x512xf32>
    %209 = arith.addf %207, %208 : vector<8x512xf32>
    %210 = arith.truncf %144 : vector<8x128xf32> to vector<8x128xbf16>
    %cst_64 = arith.constant dense<0.000000e+00> : vector<8x512xf32>
    %211 = tpu.matmul %210, %4, %cst_64 {dimension_numbers = #tpu.dot_dimension_numbers<[1], [0], [0], [1], [0, 0, 1, 1], [], []>} : vector<8x128xbf16>, vector<128x512xbf16>, vector<8x512xf32> -> vector<8x512xf32>
    %212 = arith.addf %209, %211 : vector<8x512xf32>
    %213 = vector.extract_strided_slice %212 {offsets = [0, 0], sizes = [8, 384], strides = [1, 1]} : vector<8x512xf32> to vector<8x384xf32>
    %214 = arith.negf %213 : vector<8x384xf32>
    %215 = math.exp %214 : vector<8x384xf32>
    %cst_65 = arith.constant 1.000000e+00 : f32
    %216 = vector.broadcast %cst_65 : f32 to vector<8x384xf32>
    %217 = arith.addf %216, %215 : vector<8x384xf32>
    %218 = arith.divf %216, %217 : vector<8x384xf32>
    %219 = vector.extract_strided_slice %218 {offsets = [0, 0], sizes = [8, 128], strides = [1, 1]} : vector<8x384xf32> to vector<8x128xf32>
    %220 = vector.extract_strided_slice %218 {offsets = [0, 128], sizes = [8, 128], strides = [1, 1]} : vector<8x384xf32> to vector<8x128xf32>
    %221 = vector.extract_strided_slice %218 {offsets = [0, 256], sizes = [8, 128], strides = [1, 1]} : vector<8x384xf32> to vector<8x128xf32>
    %222 = vector.extract_strided_slice %212 {offsets = [0, 384], sizes = [8, 128], strides = [1, 1]} : vector<8x512xf32> to vector<8x128xf32>
    %223 = math.tanh %222 : vector<8x128xf32>
    %224 = arith.mulf %220, %147 : vector<8x128xf32>
    %225 = arith.mulf %219, %223 : vector<8x128xf32>
    %226 = arith.addf %224, %225 : vector<8x128xf32>
    %227 = math.tanh %226 : vector<8x128xf32>
    %228 = arith.mulf %221, %227 : vector<8x128xf32>
    %229 = vector.shape_cast %200 : vector<8x1xi1> to vector<8x1xi1>
    %230 = vector.broadcast %229 : vector<8x1xi1> to vector<8x128xi1>
    %231 = arith.select %230, %228, %144 : vector<8x128xi1>, vector<8x128xf32>
    %232 = vector.shape_cast %200 : vector<8x1xi1> to vector<8x1xi1>
    %233 = vector.broadcast %232 : vector<8x1xi1> to vector<8x128xi1>
    %234 = arith.select %233, %226, %147 : vector<8x128xi1>, vector<8x128xf32>
    %cst_66 = arith.constant 0.000000e+00 : f32
    %235 = vector.shape_cast %200 : vector<8x1xi1> to vector<8x1xi1>
    %236 = vector.broadcast %235 : vector<8x1xi1> to vector<8x128xi1>
    %237 = vector.broadcast %cst_66 : f32 to vector<8x128xf32>
    %238 = arith.select %236, %228, %237 : vector<8x128xi1>, vector<8x128xf32>
    %c0_67 = arith.constant 0 : index
    %239 = arith.index_cast %197 : i32 to index
    %c0_68 = arith.constant 0 : index
    %c0_69 = arith.constant 0 : index
    %240 = vector.load %arg2[%c0_67, %239, %c0_68, %c0_69] : memref<1x8x8x512xbf16, #tpu.memory_space<vmem>>, vector<1x1x8x512xbf16>
    %241 = vector.shape_cast %240 : vector<1x1x8x512xbf16> to vector<8x512xbf16>
    %242 = arith.extf %241 : vector<8x512xbf16> to vector<8x512xf32>
    %243 = vector.broadcast %10 : vector<1x512xf32> to vector<8x512xf32>
    %244 = arith.addf %242, %243 : vector<8x512xf32>
    %245 = arith.truncf %179 : vector<8x128xf32> to vector<8x128xbf16>
    %cst_70 = arith.constant dense<0.000000e+00> : vector<8x512xf32>
    %246 = tpu.matmul %245, %6, %cst_70 {dimension_numbers = #tpu.dot_dimension_numbers<[1], [0], [0], [1], [0, 0, 1, 1], [], []>} : vector<8x128xbf16>, vector<128x512xbf16>, vector<8x512xf32> -> vector<8x512xf32>
    %247 = arith.addf %244, %246 : vector<8x512xf32>
    %248 = vector.extract_strided_slice %247 {offsets = [0, 0], sizes = [8, 384], strides = [1, 1]} : vector<8x512xf32> to vector<8x384xf32>
    %249 = arith.negf %248 : vector<8x384xf32>
    %250 = math.exp %249 : vector<8x384xf32>
    %cst_71 = arith.constant 1.000000e+00 : f32
    %251 = vector.broadcast %cst_71 : f32 to vector<8x384xf32>
    %252 = arith.addf %251, %250 : vector<8x384xf32>
    %253 = arith.divf %251, %252 : vector<8x384xf32>
    %254 = vector.extract_strided_slice %253 {offsets = [0, 0], sizes = [8, 128], strides = [1, 1]} : vector<8x384xf32> to vector<8x128xf32>
    %255 = vector.extract_strided_slice %253 {offsets = [0, 128], sizes = [8, 128], strides = [1, 1]} : vector<8x384xf32> to vector<8x128xf32>
    %256 = vector.extract_strided_slice %253 {offsets = [0, 256], sizes = [8, 128], strides = [1, 1]} : vector<8x384xf32> to vector<8x128xf32>
    %257 = vector.extract_strided_slice %247 {offsets = [0, 384], sizes = [8, 128], strides = [1, 1]} : vector<8x512xf32> to vector<8x128xf32>
    %258 = math.tanh %257 : vector<8x128xf32>
    %259 = arith.mulf %255, %182 : vector<8x128xf32>
    %260 = arith.mulf %254, %258 : vector<8x128xf32>
    %261 = arith.addf %259, %260 : vector<8x128xf32>
    %262 = math.tanh %261 : vector<8x128xf32>
    %263 = arith.mulf %256, %262 : vector<8x128xf32>
    %264 = vector.shape_cast %203 : vector<8x1xi1> to vector<8x1xi1>
    %265 = vector.broadcast %264 : vector<8x1xi1> to vector<8x128xi1>
    %266 = arith.select %265, %263, %179 : vector<8x128xi1>, vector<8x128xf32>
    %267 = vector.shape_cast %203 : vector<8x1xi1> to vector<8x1xi1>
    %268 = vector.broadcast %267 : vector<8x1xi1> to vector<8x128xi1>
    %269 = arith.select %268, %261, %182 : vector<8x128xi1>, vector<8x128xf32>
    %cst_72 = arith.constant 0.000000e+00 : f32
    %270 = vector.shape_cast %203 : vector<8x1xi1> to vector<8x1xi1>
    %271 = vector.broadcast %270 : vector<8x1xi1> to vector<8x128xi1>
    %272 = vector.broadcast %cst_72 : f32 to vector<8x128xf32>
    %273 = arith.select %271, %263, %272 : vector<8x128xi1>, vector<8x128xf32>
    %274 = arith.truncf %238 : vector<8x128xf32> to vector<8x128xbf16>
    %275 = arith.index_cast %c2_i32 : i32 to index
    %c0_73 = arith.constant 0 : index
    %c0_74 = arith.constant 0 : index
    %276 = vector.load %arg6[%275, %c0_73, %c0_74] : memref<8x8x128xbf16, #tpu.memory_space<vmem>>, vector<1x8x128xbf16>
    %277 = vector.shape_cast %276 : vector<1x8x128xbf16> to vector<8x128xbf16>
    %278 = vector.shape_cast %274 : vector<8x128xbf16> to vector<1x8x128xbf16>
    tpu.vector_store %arg6[%275, %c0_73, %c0_74], %278 {strides = array<i32>} : memref<8x8x128xbf16, #tpu.memory_space<vmem>>, vector<1x8x128xbf16>,
    %279 = arith.truncf %273 : vector<8x128xf32> to vector<8x128xbf16>
    %280 = arith.index_cast %197 : i32 to index
    %c0_75 = arith.constant 0 : index
    %c0_76 = arith.constant 0 : index
    %281 = vector.load %arg7[%280, %c0_75, %c0_76] : memref<8x8x128xbf16, #tpu.memory_space<vmem>>, vector<1x8x128xbf16>
    %282 = vector.shape_cast %281 : vector<1x8x128xbf16> to vector<8x128xbf16>
    %283 = vector.shape_cast %279 : vector<8x128xbf16> to vector<1x8x128xbf16>
    tpu.vector_store %arg7[%280, %c0_75, %c0_76], %283 {strides = array<i32>} : memref<8x8x128xbf16, #tpu.memory_space<vmem>>, vector<1x8x128xbf16>,
    %c3_i32 = arith.constant 3 : i32
    %c7_i32_77 = arith.constant 7 : i32
    %284 = arith.subi %c7_i32_77, %c3_i32 : i32
    %285 = arith.addi %12, %c3_i32 : i32
    %286 = vector.broadcast %285 : i32 to vector<8x1xi32>
    %287 = arith.cmpi slt, %286, %11 : vector<8x1xi32>
    %288 = arith.addi %14, %284 : i32
    %289 = vector.broadcast %288 : i32 to vector<8x1xi32>
    %290 = arith.cmpi slt, %289, %11 : vector<8x1xi32>
    %c0_78 = arith.constant 0 : index
    %291 = arith.index_cast %c3_i32 : i32 to index
    %c0_79 = arith.constant 0 : index
    %c0_80 = arith.constant 0 : index
    %292 = vector.load %arg1[%c0_78, %291, %c0_79, %c0_80] : memref<1x8x8x512xbf16, #tpu.memory_space<vmem>>, vector<1x1x8x512xbf16>
    %293 = vector.shape_cast %292 : vector<1x1x8x512xbf16> to vector<8x512xbf16>
    %294 = arith.extf %293 : vector<8x512xbf16> to vector<8x512xf32>
    %295 = vector.broadcast %8 : vector<1x512xf32> to vector<8x512xf32>
    %296 = arith.addf %294, %295 : vector<8x512xf32>
    %297 = arith.truncf %231 : vector<8x128xf32> to vector<8x128xbf16>
    %cst_81 = arith.constant dense<0.000000e+00> : vector<8x512xf32>
    %298 = tpu.matmul %297, %4, %cst_81 {dimension_numbers = #tpu.dot_dimension_numbers<[1], [0], [0], [1], [0, 0, 1, 1], [], []>} : vector<8x128xbf16>, vector<128x512xbf16>, vector<8x512xf32> -> vector<8x512xf32>
    %299 = arith.addf %296, %298 : vector<8x512xf32>
    %300 = vector.extract_strided_slice %299 {offsets = [0, 0], sizes = [8, 384], strides = [1, 1]} : vector<8x512xf32> to vector<8x384xf32>
    %301 = arith.negf %300 : vector<8x384xf32>
    %302 = math.exp %301 : vector<8x384xf32>
    %cst_82 = arith.constant 1.000000e+00 : f32
    %303 = vector.broadcast %cst_82 : f32 to vector<8x384xf32>
    %304 = arith.addf %303, %302 : vector<8x384xf32>
    %305 = arith.divf %303, %304 : vector<8x384xf32>
    %306 = vector.extract_strided_slice %305 {offsets = [0, 0], sizes = [8, 128], strides = [1, 1]} : vector<8x384xf32> to vector<8x128xf32>
    %307 = vector.extract_strided_slice %305 {offsets = [0, 128], sizes = [8, 128], strides = [1, 1]} : vector<8x384xf32> to vector<8x128xf32>
    %308 = vector.extract_strided_slice %305 {offsets = [0, 256], sizes = [8, 128], strides = [1, 1]} : vector<8x384xf32> to vector<8x128xf32>
    %309 = vector.extract_strided_slice %299 {offsets = [0, 384], sizes = [8, 128], strides = [1, 1]} : vector<8x512xf32> to vector<8x128xf32>
    %310 = math.tanh %309 : vector<8x128xf32>
    %311 = arith.mulf %307, %234 : vector<8x128xf32>
    %312 = arith.mulf %306, %310 : vector<8x128xf32>
    %313 = arith.addf %311, %312 : vector<8x128xf32>
    %314 = math.tanh %313 : vector<8x128xf32>
    %315 = arith.mulf %308, %314 : vector<8x128xf32>
    %316 = vector.shape_cast %287 : vector<8x1xi1> to vector<8x1xi1>
    %317 = vector.broadcast %316 : vector<8x1xi1> to vector<8x128xi1>
    %318 = arith.select %317, %315, %231 : vector<8x128xi1>, vector<8x128xf32>
    %319 = vector.shape_cast %287 : vector<8x1xi1> to vector<8x1xi1>
    %320 = vector.broadcast %319 : vector<8x1xi1> to vector<8x128xi1>
    %321 = arith.select %320, %313, %234 : vector<8x128xi1>, vector<8x128xf32>
    %cst_83 = arith.constant 0.000000e+00 : f32
    %322 = vector.shape_cast %287 : vector<8x1xi1> to vector<8x1xi1>
    %323 = vector.broadcast %322 : vector<8x1xi1> to vector<8x128xi1>
    %324 = vector.broadcast %cst_83 : f32 to vector<8x128xf32>
    %325 = arith.select %323, %315, %324 : vector<8x128xi1>, vector<8x128xf32>
    %c0_84 = arith.constant 0 : index
    %326 = arith.index_cast %284 : i32 to index
    %c0_85 = arith.constant 0 : index
    %c0_86 = arith.constant 0 : index
    %327 = vector.load %arg2[%c0_84, %326, %c0_85, %c0_86] : memref<1x8x8x512xbf16, #tpu.memory_space<vmem>>, vector<1x1x8x512xbf16>
    %328 = vector.shape_cast %327 : vector<1x1x8x512xbf16> to vector<8x512xbf16>
    %329 = arith.extf %328 : vector<8x512xbf16> to vector<8x512xf32>
    %330 = vector.broadcast %10 : vector<1x512xf32> to vector<8x512xf32>
    %331 = arith.addf %329, %330 : vector<8x512xf32>
    %332 = arith.truncf %266 : vector<8x128xf32> to vector<8x128xbf16>
    %cst_87 = arith.constant dense<0.000000e+00> : vector<8x512xf32>
    %333 = tpu.matmul %332, %6, %cst_87 {dimension_numbers = #tpu.dot_dimension_numbers<[1], [0], [0], [1], [0, 0, 1, 1], [], []>} : vector<8x128xbf16>, vector<128x512xbf16>, vector<8x512xf32> -> vector<8x512xf32>
    %334 = arith.addf %331, %333 : vector<8x512xf32>
    %335 = vector.extract_strided_slice %334 {offsets = [0, 0], sizes = [8, 384], strides = [1, 1]} : vector<8x512xf32> to vector<8x384xf32>
    %336 = arith.negf %335 : vector<8x384xf32>
    %337 = math.exp %336 : vector<8x384xf32>
    %cst_88 = arith.constant 1.000000e+00 : f32
    %338 = vector.broadcast %cst_88 : f32 to vector<8x384xf32>
    %339 = arith.addf %338, %337 : vector<8x384xf32>
    %340 = arith.divf %338, %339 : vector<8x384xf32>
    %341 = vector.extract_strided_slice %340 {offsets = [0, 0], sizes = [8, 128], strides = [1, 1]} : vector<8x384xf32> to vector<8x128xf32>
    %342 = vector.extract_strided_slice %340 {offsets = [0, 128], sizes = [8, 128], strides = [1, 1]} : vector<8x384xf32> to vector<8x128xf32>
    %343 = vector.extract_strided_slice %340 {offsets = [0, 256], sizes = [8, 128], strides = [1, 1]} : vector<8x384xf32> to vector<8x128xf32>
    %344 = vector.extract_strided_slice %334 {offsets = [0, 384], sizes = [8, 128], strides = [1, 1]} : vector<8x512xf32> to vector<8x128xf32>
    %345 = math.tanh %344 : vector<8x128xf32>
    %346 = arith.mulf %342, %269 : vector<8x128xf32>
    %347 = arith.mulf %341, %345 : vector<8x128xf32>
    %348 = arith.addf %346, %347 : vector<8x128xf32>
    %349 = math.tanh %348 : vector<8x128xf32>
    %350 = arith.mulf %343, %349 : vector<8x128xf32>
    %351 = vector.shape_cast %290 : vector<8x1xi1> to vector<8x1xi1>
    %352 = vector.broadcast %351 : vector<8x1xi1> to vector<8x128xi1>
    %353 = arith.select %352, %350, %266 : vector<8x128xi1>, vector<8x128xf32>
    %354 = vector.shape_cast %290 : vector<8x1xi1> to vector<8x1xi1>
    %355 = vector.broadcast %354 : vector<8x1xi1> to vector<8x128xi1>
    %356 = arith.select %355, %348, %269 : vector<8x128xi1>, vector<8x128xf32>
    %cst_89 = arith.constant 0.000000e+00 : f32
    %357 = vector.shape_cast %290 : vector<8x1xi1> to vector<8x1xi1>
    %358 = vector.broadcast %357 : vector<8x1xi1> to vector<8x128xi1>
    %359 = vector.broadcast %cst_89 : f32 to vector<8x128xf32>
    %360 = arith.select %358, %350, %359 : vector<8x128xi1>, vector<8x128xf32>
    %361 = arith.truncf %325 : vector<8x128xf32> to vector<8x128xbf16>
    %362 = arith.index_cast %c3_i32 : i32 to index
    %c0_90 = arith.constant 0 : index
    %c0_91 = arith.constant 0 : index
    %363 = vector.load %arg6[%362, %c0_90, %c0_91] : memref<8x8x128xbf16, #tpu.memory_space<vmem>>, vector<1x8x128xbf16>
    %364 = vector.shape_cast %363 : vector<1x8x128xbf16> to vector<8x128xbf16>
    %365 = vector.shape_cast %361 : vector<8x128xbf16> to vector<1x8x128xbf16>
    tpu.vector_store %arg6[%362, %c0_90, %c0_91], %365 {strides = array<i32>} : memref<8x8x128xbf16, #tpu.memory_space<vmem>>, vector<1x8x128xbf16>,
    %366 = arith.truncf %360 : vector<8x128xf32> to vector<8x128xbf16>
    %367 = arith.index_cast %284 : i32 to index
    %c0_92 = arith.constant 0 : index
    %c0_93 = arith.constant 0 : index
    %368 = vector.load %arg7[%367, %c0_92, %c0_93] : memref<8x8x128xbf16, #tpu.memory_space<vmem>>, vector<1x8x128xbf16>
    %369 = vector.shape_cast %368 : vector<1x8x128xbf16> to vector<8x128xbf16>
    %370 = vector.shape_cast %366 : vector<8x128xbf16> to vector<1x8x128xbf16>
    tpu.vector_store %arg7[%367, %c0_92, %c0_93], %370 {strides = array<i32>} : memref<8x8x128xbf16, #tpu.memory_space<vmem>>, vector<1x8x128xbf16>,
    %c4_i32 = arith.constant 4 : i32
    %c7_i32_94 = arith.constant 7 : i32
    %371 = arith.subi %c7_i32_94, %c4_i32 : i32
    %372 = arith.addi %12, %c4_i32 : i32
    %373 = vector.broadcast %372 : i32 to vector<8x1xi32>
    %374 = arith.cmpi slt, %373, %11 : vector<8x1xi32>
    %375 = arith.addi %14, %371 : i32
    %376 = vector.broadcast %375 : i32 to vector<8x1xi32>
    %377 = arith.cmpi slt, %376, %11 : vector<8x1xi32>
    %c0_95 = arith.constant 0 : index
    %378 = arith.index_cast %c4_i32 : i32 to index
    %c0_96 = arith.constant 0 : index
    %c0_97 = arith.constant 0 : index
    %379 = vector.load %arg1[%c0_95, %378, %c0_96, %c0_97] : memref<1x8x8x512xbf16, #tpu.memory_space<vmem>>, vector<1x1x8x512xbf16>
    %380 = vector.shape_cast %379 : vector<1x1x8x512xbf16> to vector<8x512xbf16>
    %381 = arith.extf %380 : vector<8x512xbf16> to vector<8x512xf32>
    %382 = vector.broadcast %8 : vector<1x512xf32> to vector<8x512xf32>
    %383 = arith.addf %381, %382 : vector<8x512xf32>
    %384 = arith.truncf %318 : vector<8x128xf32> to vector<8x128xbf16>
    %cst_98 = arith.constant dense<0.000000e+00> : vector<8x512xf32>
    %385 = tpu.matmul %384, %4, %cst_98 {dimension_numbers = #tpu.dot_dimension_numbers<[1], [0], [0], [1], [0, 0, 1, 1], [], []>} : vector<8x128xbf16>, vector<128x512xbf16>, vector<8x512xf32> -> vector<8x512xf32>
    %386 = arith.addf %383, %385 : vector<8x512xf32>
    %387 = vector.extract_strided_slice %386 {offsets = [0, 0], sizes = [8, 384], strides = [1, 1]} : vector<8x512xf32> to vector<8x384xf32>
    %388 = arith.negf %387 : vector<8x384xf32>
    %389 = math.exp %388 : vector<8x384xf32>
    %cst_99 = arith.constant 1.000000e+00 : f32
    %390 = vector.broadcast %cst_99 : f32 to vector<8x384xf32>
    %391 = arith.addf %390, %389 : vector<8x384xf32>
    %392 = arith.divf %390, %391 : vector<8x384xf32>
    %393 = vector.extract_strided_slice %392 {offsets = [0, 0], sizes = [8, 128], strides = [1, 1]} : vector<8x384xf32> to vector<8x128xf32>
    %394 = vector.extract_strided_slice %392 {offsets = [0, 128], sizes = [8, 128], strides = [1, 1]} : vector<8x384xf32> to vector<8x128xf32>
    %395 = vector.extract_strided_slice %392 {offsets = [0, 256], sizes = [8, 128], strides = [1, 1]} : vector<8x384xf32> to vector<8x128xf32>
    %396 = vector.extract_strided_slice %386 {offsets = [0, 384], sizes = [8, 128], strides = [1, 1]} : vector<8x512xf32> to vector<8x128xf32>
    %397 = math.tanh %396 : vector<8x128xf32>
    %398 = arith.mulf %394, %321 : vector<8x128xf32>
    %399 = arith.mulf %393, %397 : vector<8x128xf32>
    %400 = arith.addf %398, %399 : vector<8x128xf32>
    %401 = math.tanh %400 : vector<8x128xf32>
    %402 = arith.mulf %395, %401 : vector<8x128xf32>
    %403 = vector.shape_cast %374 : vector<8x1xi1> to vector<8x1xi1>
    %404 = vector.broadcast %403 : vector<8x1xi1> to vector<8x128xi1>
    %405 = arith.select %404, %402, %318 : vector<8x128xi1>, vector<8x128xf32>
    %406 = vector.shape_cast %374 : vector<8x1xi1> to vector<8x1xi1>
    %407 = vector.broadcast %406 : vector<8x1xi1> to vector<8x128xi1>
    %408 = arith.select %407, %400, %321 : vector<8x128xi1>, vector<8x128xf32>
    %cst_100 = arith.constant 0.000000e+00 : f32
    %409 = vector.shape_cast %374 : vector<8x1xi1> to vector<8x1xi1>
    %410 = vector.broadcast %409 : vector<8x1xi1> to vector<8x128xi1>
    %411 = vector.broadcast %cst_100 : f32 to vector<8x128xf32>
    %412 = arith.select %410, %402, %411 : vector<8x128xi1>, vector<8x128xf32>
    %c0_101 = arith.constant 0 : index
    %413 = arith.index_cast %371 : i32 to index
    %c0_102 = arith.constant 0 : index
    %c0_103 = arith.constant 0 : index
    %414 = vector.load %arg2[%c0_101, %413, %c0_102, %c0_103] : memref<1x8x8x512xbf16, #tpu.memory_space<vmem>>, vector<1x1x8x512xbf16>
    %415 = vector.shape_cast %414 : vector<1x1x8x512xbf16> to vector<8x512xbf16>
    %416 = arith.extf %415 : vector<8x512xbf16> to vector<8x512xf32>
    %417 = vector.broadcast %10 : vector<1x512xf32> to vector<8x512xf32>
    %418 = arith.addf %416, %417 : vector<8x512xf32>
    %419 = arith.truncf %353 : vector<8x128xf32> to vector<8x128xbf16>
    %cst_104 = arith.constant dense<0.000000e+00> : vector<8x512xf32>
    %420 = tpu.matmul %419, %6, %cst_104 {dimension_numbers = #tpu.dot_dimension_numbers<[1], [0], [0], [1], [0, 0, 1, 1], [], []>} : vector<8x128xbf16>, vector<128x512xbf16>, vector<8x512xf32> -> vector<8x512xf32>
    %421 = arith.addf %418, %420 : vector<8x512xf32>
    %422 = vector.extract_strided_slice %421 {offsets = [0, 0], sizes = [8, 384], strides = [1, 1]} : vector<8x512xf32> to vector<8x384xf32>
    %423 = arith.negf %422 : vector<8x384xf32>
    %424 = math.exp %423 : vector<8x384xf32>
    %cst_105 = arith.constant 1.000000e+00 : f32
    %425 = vector.broadcast %cst_105 : f32 to vector<8x384xf32>
    %426 = arith.addf %425, %424 : vector<8x384xf32>
    %427 = arith.divf %425, %426 : vector<8x384xf32>
    %428 = vector.extract_strided_slice %427 {offsets = [0, 0], sizes = [8, 128], strides = [1, 1]} : vector<8x384xf32> to vector<8x128xf32>
    %429 = vector.extract_strided_slice %427 {offsets = [0, 128], sizes = [8, 128], strides = [1, 1]} : vector<8x384xf32> to vector<8x128xf32>
    %430 = vector.extract_strided_slice %427 {offsets = [0, 256], sizes = [8, 128], strides = [1, 1]} : vector<8x384xf32> to vector<8x128xf32>
    %431 = vector.extract_strided_slice %421 {offsets = [0, 384], sizes = [8, 128], strides = [1, 1]} : vector<8x512xf32> to vector<8x128xf32>
    %432 = math.tanh %431 : vector<8x128xf32>
    %433 = arith.mulf %429, %356 : vector<8x128xf32>
    %434 = arith.mulf %428, %432 : vector<8x128xf32>
    %435 = arith.addf %433, %434 : vector<8x128xf32>
    %436 = math.tanh %435 : vector<8x128xf32>
    %437 = arith.mulf %430, %436 : vector<8x128xf32>
    %438 = vector.shape_cast %377 : vector<8x1xi1> to vector<8x1xi1>
    %439 = vector.broadcast %438 : vector<8x1xi1> to vector<8x128xi1>
    %440 = arith.select %439, %437, %353 : vector<8x128xi1>, vector<8x128xf32>
    %441 = vector.shape_cast %377 : vector<8x1xi1> to vector<8x1xi1>
    %442 = vector.broadcast %441 : vector<8x1xi1> to vector<8x128xi1>
    %443 = arith.select %442, %435, %356 : vector<8x128xi1>, vector<8x128xf32>
    %cst_106 = arith.constant 0.000000e+00 : f32
    %444 = vector.shape_cast %377 : vector<8x1xi1> to vector<8x1xi1>
    %445 = vector.broadcast %444 : vector<8x1xi1> to vector<8x128xi1>
    %446 = vector.broadcast %cst_106 : f32 to vector<8x128xf32>
    %447 = arith.select %445, %437, %446 : vector<8x128xi1>, vector<8x128xf32>
    %448 = arith.truncf %412 : vector<8x128xf32> to vector<8x128xbf16>
    %449 = arith.index_cast %c4_i32 : i32 to index
    %c0_107 = arith.constant 0 : index
    %c0_108 = arith.constant 0 : index
    %450 = vector.load %arg6[%449, %c0_107, %c0_108] : memref<8x8x128xbf16, #tpu.memory_space<vmem>>, vector<1x8x128xbf16>
    %451 = vector.shape_cast %450 : vector<1x8x128xbf16> to vector<8x128xbf16>
    %452 = vector.shape_cast %448 : vector<8x128xbf16> to vector<1x8x128xbf16>
    tpu.vector_store %arg6[%449, %c0_107, %c0_108], %452 {strides = array<i32>} : memref<8x8x128xbf16, #tpu.memory_space<vmem>>, vector<1x8x128xbf16>,
    %453 = arith.truncf %447 : vector<8x128xf32> to vector<8x128xbf16>
    %454 = arith.index_cast %371 : i32 to index
    %c0_109 = arith.constant 0 : index
    %c0_110 = arith.constant 0 : index
    %455 = vector.load %arg7[%454, %c0_109, %c0_110] : memref<8x8x128xbf16, #tpu.memory_space<vmem>>, vector<1x8x128xbf16>
    %456 = vector.shape_cast %455 : vector<1x8x128xbf16> to vector<8x128xbf16>
    %457 = vector.shape_cast %453 : vector<8x128xbf16> to vector<1x8x128xbf16>
    tpu.vector_store %arg7[%454, %c0_109, %c0_110], %457 {strides = array<i32>} : memref<8x8x128xbf16, #tpu.memory_space<vmem>>, vector<1x8x128xbf16>,
    %c5_i32 = arith.constant 5 : i32
    %c7_i32_111 = arith.constant 7 : i32
    %458 = arith.subi %c7_i32_111, %c5_i32 : i32
    %459 = arith.addi %12, %c5_i32 : i32
    %460 = vector.broadcast %459 : i32 to vector<8x1xi32>
    %461 = arith.cmpi slt, %460, %11 : vector<8x1xi32>
    %462 = arith.addi %14, %458 : i32
    %463 = vector.broadcast %462 : i32 to vector<8x1xi32>
    %464 = arith.cmpi slt, %463, %11 : vector<8x1xi32>
    %c0_112 = arith.constant 0 : index
    %465 = arith.index_cast %c5_i32 : i32 to index
    %c0_113 = arith.constant 0 : index
    %c0_114 = arith.constant 0 : index
    %466 = vector.load %arg1[%c0_112, %465, %c0_113, %c0_114] : memref<1x8x8x512xbf16, #tpu.memory_space<vmem>>, vector<1x1x8x512xbf16>
    %467 = vector.shape_cast %466 : vector<1x1x8x512xbf16> to vector<8x512xbf16>
    %468 = arith.extf %467 : vector<8x512xbf16> to vector<8x512xf32>
    %469 = vector.broadcast %8 : vector<1x512xf32> to vector<8x512xf32>
    %470 = arith.addf %468, %469 : vector<8x512xf32>
    %471 = arith.truncf %405 : vector<8x128xf32> to vector<8x128xbf16>
    %cst_115 = arith.constant dense<0.000000e+00> : vector<8x512xf32>
    %472 = tpu.matmul %471, %4, %cst_115 {dimension_numbers = #tpu.dot_dimension_numbers<[1], [0], [0], [1], [0, 0, 1, 1], [], []>} : vector<8x128xbf16>, vector<128x512xbf16>, vector<8x512xf32> -> vector<8x512xf32>
    %473 = arith.addf %470, %472 : vector<8x512xf32>
    %474 = vector.extract_strided_slice %473 {offsets = [0, 0], sizes = [8, 384], strides = [1, 1]} : vector<8x512xf32> to vector<8x384xf32>
    %475 = arith.negf %474 : vector<8x384xf32>
    %476 = math.exp %475 : vector<8x384xf32>
    %cst_116 = arith.constant 1.000000e+00 : f32
    %477 = vector.broadcast %cst_116 : f32 to vector<8x384xf32>
    %478 = arith.addf %477, %476 : vector<8x384xf32>
    %479 = arith.divf %477, %478 : vector<8x384xf32>
    %480 = vector.extract_strided_slice %479 {offsets = [0, 0], sizes = [8, 128], strides = [1, 1]} : vector<8x384xf32> to vector<8x128xf32>
    %481 = vector.extract_strided_slice %479 {offsets = [0, 128], sizes = [8, 128], strides = [1, 1]} : vector<8x384xf32> to vector<8x128xf32>
    %482 = vector.extract_strided_slice %479 {offsets = [0, 256], sizes = [8, 128], strides = [1, 1]} : vector<8x384xf32> to vector<8x128xf32>
    %483 = vector.extract_strided_slice %473 {offsets = [0, 384], sizes = [8, 128], strides = [1, 1]} : vector<8x512xf32> to vector<8x128xf32>
    %484 = math.tanh %483 : vector<8x128xf32>
    %485 = arith.mulf %481, %408 : vector<8x128xf32>
    %486 = arith.mulf %480, %484 : vector<8x128xf32>
    %487 = arith.addf %485, %486 : vector<8x128xf32>
    %488 = math.tanh %487 : vector<8x128xf32>
    %489 = arith.mulf %482, %488 : vector<8x128xf32>
    %490 = vector.shape_cast %461 : vector<8x1xi1> to vector<8x1xi1>
    %491 = vector.broadcast %490 : vector<8x1xi1> to vector<8x128xi1>
    %492 = arith.select %491, %489, %405 : vector<8x128xi1>, vector<8x128xf32>
    %493 = vector.shape_cast %461 : vector<8x1xi1> to vector<8x1xi1>
    %494 = vector.broadcast %493 : vector<8x1xi1> to vector<8x128xi1>
    %495 = arith.select %494, %487, %408 : vector<8x128xi1>, vector<8x128xf32>
    %cst_117 = arith.constant 0.000000e+00 : f32
    %496 = vector.shape_cast %461 : vector<8x1xi1> to vector<8x1xi1>
    %497 = vector.broadcast %496 : vector<8x1xi1> to vector<8x128xi1>
    %498 = vector.broadcast %cst_117 : f32 to vector<8x128xf32>
    %499 = arith.select %497, %489, %498 : vector<8x128xi1>, vector<8x128xf32>
    %c0_118 = arith.constant 0 : index
    %500 = arith.index_cast %458 : i32 to index
    %c0_119 = arith.constant 0 : index
    %c0_120 = arith.constant 0 : index
    %501 = vector.load %arg2[%c0_118, %500, %c0_119, %c0_120] : memref<1x8x8x512xbf16, #tpu.memory_space<vmem>>, vector<1x1x8x512xbf16>
    %502 = vector.shape_cast %501 : vector<1x1x8x512xbf16> to vector<8x512xbf16>
    %503 = arith.extf %502 : vector<8x512xbf16> to vector<8x512xf32>
    %504 = vector.broadcast %10 : vector<1x512xf32> to vector<8x512xf32>
    %505 = arith.addf %503, %504 : vector<8x512xf32>
    %506 = arith.truncf %440 : vector<8x128xf32> to vector<8x128xbf16>
    %cst_121 = arith.constant dense<0.000000e+00> : vector<8x512xf32>
    %507 = tpu.matmul %506, %6, %cst_121 {dimension_numbers = #tpu.dot_dimension_numbers<[1], [0], [0], [1], [0, 0, 1, 1], [], []>} : vector<8x128xbf16>, vector<128x512xbf16>, vector<8x512xf32> -> vector<8x512xf32>
    %508 = arith.addf %505, %507 : vector<8x512xf32>
    %509 = vector.extract_strided_slice %508 {offsets = [0, 0], sizes = [8, 384], strides = [1, 1]} : vector<8x512xf32> to vector<8x384xf32>
    %510 = arith.negf %509 : vector<8x384xf32>
    %511 = math.exp %510 : vector<8x384xf32>
    %cst_122 = arith.constant 1.000000e+00 : f32
    %512 = vector.broadcast %cst_122 : f32 to vector<8x384xf32>
    %513 = arith.addf %512, %511 : vector<8x384xf32>
    %514 = arith.divf %512, %513 : vector<8x384xf32>
    %515 = vector.extract_strided_slice %514 {offsets = [0, 0], sizes = [8, 128], strides = [1, 1]} : vector<8x384xf32> to vector<8x128xf32>
    %516 = vector.extract_strided_slice %514 {offsets = [0, 128], sizes = [8, 128], strides = [1, 1]} : vector<8x384xf32> to vector<8x128xf32>
    %517 = vector.extract_strided_slice %514 {offsets = [0, 256], sizes = [8, 128], strides = [1, 1]} : vector<8x384xf32> to vector<8x128xf32>
    %518 = vector.extract_strided_slice %508 {offsets = [0, 384], sizes = [8, 128], strides = [1, 1]} : vector<8x512xf32> to vector<8x128xf32>
    %519 = math.tanh %518 : vector<8x128xf32>
    %520 = arith.mulf %516, %443 : vector<8x128xf32>
    %521 = arith.mulf %515, %519 : vector<8x128xf32>
    %522 = arith.addf %520, %521 : vector<8x128xf32>
    %523 = math.tanh %522 : vector<8x128xf32>
    %524 = arith.mulf %517, %523 : vector<8x128xf32>
    %525 = vector.shape_cast %464 : vector<8x1xi1> to vector<8x1xi1>
    %526 = vector.broadcast %525 : vector<8x1xi1> to vector<8x128xi1>
    %527 = arith.select %526, %524, %440 : vector<8x128xi1>, vector<8x128xf32>
    %528 = vector.shape_cast %464 : vector<8x1xi1> to vector<8x1xi1>
    %529 = vector.broadcast %528 : vector<8x1xi1> to vector<8x128xi1>
    %530 = arith.select %529, %522, %443 : vector<8x128xi1>, vector<8x128xf32>
    %cst_123 = arith.constant 0.000000e+00 : f32
    %531 = vector.shape_cast %464 : vector<8x1xi1> to vector<8x1xi1>
    %532 = vector.broadcast %531 : vector<8x1xi1> to vector<8x128xi1>
    %533 = vector.broadcast %cst_123 : f32 to vector<8x128xf32>
    %534 = arith.select %532, %524, %533 : vector<8x128xi1>, vector<8x128xf32>
    %535 = arith.truncf %499 : vector<8x128xf32> to vector<8x128xbf16>
    %536 = arith.index_cast %c5_i32 : i32 to index
    %c0_124 = arith.constant 0 : index
    %c0_125 = arith.constant 0 : index
    %537 = vector.load %arg6[%536, %c0_124, %c0_125] : memref<8x8x128xbf16, #tpu.memory_space<vmem>>, vector<1x8x128xbf16>
    %538 = vector.shape_cast %537 : vector<1x8x128xbf16> to vector<8x128xbf16>
    %539 = vector.shape_cast %535 : vector<8x128xbf16> to vector<1x8x128xbf16>
    tpu.vector_store %arg6[%536, %c0_124, %c0_125], %539 {strides = array<i32>} : memref<8x8x128xbf16, #tpu.memory_space<vmem>>, vector<1x8x128xbf16>,
    %540 = arith.truncf %534 : vector<8x128xf32> to vector<8x128xbf16>
    %541 = arith.index_cast %458 : i32 to index
    %c0_126 = arith.constant 0 : index
    %c0_127 = arith.constant 0 : index
    %542 = vector.load %arg7[%541, %c0_126, %c0_127] : memref<8x8x128xbf16, #tpu.memory_space<vmem>>, vector<1x8x128xbf16>
    %543 = vector.shape_cast %542 : vector<1x8x128xbf16> to vector<8x128xbf16>
    %544 = vector.shape_cast %540 : vector<8x128xbf16> to vector<1x8x128xbf16>
    tpu.vector_store %arg7[%541, %c0_126, %c0_127], %544 {strides = array<i32>} : memref<8x8x128xbf16, #tpu.memory_space<vmem>>, vector<1x8x128xbf16>,
    %c6_i32 = arith.constant 6 : i32
    %c7_i32_128 = arith.constant 7 : i32
    %545 = arith.subi %c7_i32_128, %c6_i32 : i32
    %546 = arith.addi %12, %c6_i32 : i32
    %547 = vector.broadcast %546 : i32 to vector<8x1xi32>
    %548 = arith.cmpi slt, %547, %11 : vector<8x1xi32>
    %549 = arith.addi %14, %545 : i32
    %550 = vector.broadcast %549 : i32 to vector<8x1xi32>
    %551 = arith.cmpi slt, %550, %11 : vector<8x1xi32>
    %c0_129 = arith.constant 0 : index
    %552 = arith.index_cast %c6_i32 : i32 to index
    %c0_130 = arith.constant 0 : index
    %c0_131 = arith.constant 0 : index
    %553 = vector.load %arg1[%c0_129, %552, %c0_130, %c0_131] : memref<1x8x8x512xbf16, #tpu.memory_space<vmem>>, vector<1x1x8x512xbf16>
    %554 = vector.shape_cast %553 : vector<1x1x8x512xbf16> to vector<8x512xbf16>
    %555 = arith.extf %554 : vector<8x512xbf16> to vector<8x512xf32>
    %556 = vector.broadcast %8 : vector<1x512xf32> to vector<8x512xf32>
    %557 = arith.addf %555, %556 : vector<8x512xf32>
    %558 = arith.truncf %492 : vector<8x128xf32> to vector<8x128xbf16>
    %cst_132 = arith.constant dense<0.000000e+00> : vector<8x512xf32>
    %559 = tpu.matmul %558, %4, %cst_132 {dimension_numbers = #tpu.dot_dimension_numbers<[1], [0], [0], [1], [0, 0, 1, 1], [], []>} : vector<8x128xbf16>, vector<128x512xbf16>, vector<8x512xf32> -> vector<8x512xf32>
    %560 = arith.addf %557, %559 : vector<8x512xf32>
    %561 = vector.extract_strided_slice %560 {offsets = [0, 0], sizes = [8, 384], strides = [1, 1]} : vector<8x512xf32> to vector<8x384xf32>
    %562 = arith.negf %561 : vector<8x384xf32>
    %563 = math.exp %562 : vector<8x384xf32>
    %cst_133 = arith.constant 1.000000e+00 : f32
    %564 = vector.broadcast %cst_133 : f32 to vector<8x384xf32>
    %565 = arith.addf %564, %563 : vector<8x384xf32>
    %566 = arith.divf %564, %565 : vector<8x384xf32>
    %567 = vector.extract_strided_slice %566 {offsets = [0, 0], sizes = [8, 128], strides = [1, 1]} : vector<8x384xf32> to vector<8x128xf32>
    %568 = vector.extract_strided_slice %566 {offsets = [0, 128], sizes = [8, 128], strides = [1, 1]} : vector<8x384xf32> to vector<8x128xf32>
    %569 = vector.extract_strided_slice %566 {offsets = [0, 256], sizes = [8, 128], strides = [1, 1]} : vector<8x384xf32> to vector<8x128xf32>
    %570 = vector.extract_strided_slice %560 {offsets = [0, 384], sizes = [8, 128], strides = [1, 1]} : vector<8x512xf32> to vector<8x128xf32>
    %571 = math.tanh %570 : vector<8x128xf32>
    %572 = arith.mulf %568, %495 : vector<8x128xf32>
    %573 = arith.mulf %567, %571 : vector<8x128xf32>
    %574 = arith.addf %572, %573 : vector<8x128xf32>
    %575 = math.tanh %574 : vector<8x128xf32>
    %576 = arith.mulf %569, %575 : vector<8x128xf32>
    %577 = vector.shape_cast %548 : vector<8x1xi1> to vector<8x1xi1>
    %578 = vector.broadcast %577 : vector<8x1xi1> to vector<8x128xi1>
    %579 = arith.select %578, %576, %492 : vector<8x128xi1>, vector<8x128xf32>
    %580 = vector.shape_cast %548 : vector<8x1xi1> to vector<8x1xi1>
    %581 = vector.broadcast %580 : vector<8x1xi1> to vector<8x128xi1>
    %582 = arith.select %581, %574, %495 : vector<8x128xi1>, vector<8x128xf32>
    %cst_134 = arith.constant 0.000000e+00 : f32
    %583 = vector.shape_cast %548 : vector<8x1xi1> to vector<8x1xi1>
    %584 = vector.broadcast %583 : vector<8x1xi1> to vector<8x128xi1>
    %585 = vector.broadcast %cst_134 : f32 to vector<8x128xf32>
    %586 = arith.select %584, %576, %585 : vector<8x128xi1>, vector<8x128xf32>
    %c0_135 = arith.constant 0 : index
    %587 = arith.index_cast %545 : i32 to index
    %c0_136 = arith.constant 0 : index
    %c0_137 = arith.constant 0 : index
    %588 = vector.load %arg2[%c0_135, %587, %c0_136, %c0_137] : memref<1x8x8x512xbf16, #tpu.memory_space<vmem>>, vector<1x1x8x512xbf16>
    %589 = vector.shape_cast %588 : vector<1x1x8x512xbf16> to vector<8x512xbf16>
    %590 = arith.extf %589 : vector<8x512xbf16> to vector<8x512xf32>
    %591 = vector.broadcast %10 : vector<1x512xf32> to vector<8x512xf32>
    %592 = arith.addf %590, %591 : vector<8x512xf32>
    %593 = arith.truncf %527 : vector<8x128xf32> to vector<8x128xbf16>
    %cst_138 = arith.constant dense<0.000000e+00> : vector<8x512xf32>
    %594 = tpu.matmul %593, %6, %cst_138 {dimension_numbers = #tpu.dot_dimension_numbers<[1], [0], [0], [1], [0, 0, 1, 1], [], []>} : vector<8x128xbf16>, vector<128x512xbf16>, vector<8x512xf32> -> vector<8x512xf32>
    %595 = arith.addf %592, %594 : vector<8x512xf32>
    %596 = vector.extract_strided_slice %595 {offsets = [0, 0], sizes = [8, 384], strides = [1, 1]} : vector<8x512xf32> to vector<8x384xf32>
    %597 = arith.negf %596 : vector<8x384xf32>
    %598 = math.exp %597 : vector<8x384xf32>
    %cst_139 = arith.constant 1.000000e+00 : f32
    %599 = vector.broadcast %cst_139 : f32 to vector<8x384xf32>
    %600 = arith.addf %599, %598 : vector<8x384xf32>
    %601 = arith.divf %599, %600 : vector<8x384xf32>
    %602 = vector.extract_strided_slice %601 {offsets = [0, 0], sizes = [8, 128], strides = [1, 1]} : vector<8x384xf32> to vector<8x128xf32>
    %603 = vector.extract_strided_slice %601 {offsets = [0, 128], sizes = [8, 128], strides = [1, 1]} : vector<8x384xf32> to vector<8x128xf32>
    %604 = vector.extract_strided_slice %601 {offsets = [0, 256], sizes = [8, 128], strides = [1, 1]} : vector<8x384xf32> to vector<8x128xf32>
    %605 = vector.extract_strided_slice %595 {offsets = [0, 384], sizes = [8, 128], strides = [1, 1]} : vector<8x512xf32> to vector<8x128xf32>
    %606 = math.tanh %605 : vector<8x128xf32>
    %607 = arith.mulf %603, %530 : vector<8x128xf32>
    %608 = arith.mulf %602, %606 : vector<8x128xf32>
    %609 = arith.addf %607, %608 : vector<8x128xf32>
    %610 = math.tanh %609 : vector<8x128xf32>
    %611 = arith.mulf %604, %610 : vector<8x128xf32>
    %612 = vector.shape_cast %551 : vector<8x1xi1> to vector<8x1xi1>
    %613 = vector.broadcast %612 : vector<8x1xi1> to vector<8x128xi1>
    %614 = arith.select %613, %611, %527 : vector<8x128xi1>, vector<8x128xf32>
    %615 = vector.shape_cast %551 : vector<8x1xi1> to vector<8x1xi1>
    %616 = vector.broadcast %615 : vector<8x1xi1> to vector<8x128xi1>
    %617 = arith.select %616, %609, %530 : vector<8x128xi1>, vector<8x128xf32>
    %cst_140 = arith.constant 0.000000e+00 : f32
    %618 = vector.shape_cast %551 : vector<8x1xi1> to vector<8x1xi1>
    %619 = vector.broadcast %618 : vector<8x1xi1> to vector<8x128xi1>
    %620 = vector.broadcast %cst_140 : f32 to vector<8x128xf32>
    %621 = arith.select %619, %611, %620 : vector<8x128xi1>, vector<8x128xf32>
    %622 = arith.truncf %586 : vector<8x128xf32> to vector<8x128xbf16>
    %623 = arith.index_cast %c6_i32 : i32 to index
    %c0_141 = arith.constant 0 : index
    %c0_142 = arith.constant 0 : index
    %624 = vector.load %arg6[%623, %c0_141, %c0_142] : memref<8x8x128xbf16, #tpu.memory_space<vmem>>, vector<1x8x128xbf16>
    %625 = vector.shape_cast %624 : vector<1x8x128xbf16> to vector<8x128xbf16>
    %626 = vector.shape_cast %622 : vector<8x128xbf16> to vector<1x8x128xbf16>
    tpu.vector_store %arg6[%623, %c0_141, %c0_142], %626 {strides = array<i32>} : memref<8x8x128xbf16, #tpu.memory_space<vmem>>, vector<1x8x128xbf16>,
    %627 = arith.truncf %621 : vector<8x128xf32> to vector<8x128xbf16>
    %628 = arith.index_cast %545 : i32 to index
    %c0_143 = arith.constant 0 : index
    %c0_144 = arith.constant 0 : index
    %629 = vector.load %arg7[%628, %c0_143, %c0_144] : memref<8x8x128xbf16, #tpu.memory_space<vmem>>, vector<1x8x128xbf16>
    %630 = vector.shape_cast %629 : vector<1x8x128xbf16> to vector<8x128xbf16>
    %631 = vector.shape_cast %627 : vector<8x128xbf16> to vector<1x8x128xbf16>
    tpu.vector_store %arg7[%628, %c0_143, %c0_144], %631 {strides = array<i32>} : memref<8x8x128xbf16, #tpu.memory_space<vmem>>, vector<1x8x128xbf16>,
    %c7_i32_145 = arith.constant 7 : i32
    %c7_i32_146 = arith.constant 7 : i32
    %632 = arith.subi %c7_i32_146, %c7_i32_145 : i32
    %633 = arith.addi %12, %c7_i32_145 : i32
    %634 = vector.broadcast %633 : i32 to vector<8x1xi32>
    %635 = arith.cmpi slt, %634, %11 : vector<8x1xi32>
    %636 = arith.addi %14, %632 : i32
    %637 = vector.broadcast %636 : i32 to vector<8x1xi32>
    %638 = arith.cmpi slt, %637, %11 : vector<8x1xi32>
    %c0_147 = arith.constant 0 : index
    %639 = arith.index_cast %c7_i32_145 : i32 to index
    %c0_148 = arith.constant 0 : index
    %c0_149 = arith.constant 0 : index
    %640 = vector.load %arg1[%c0_147, %639, %c0_148, %c0_149] : memref<1x8x8x512xbf16, #tpu.memory_space<vmem>>, vector<1x1x8x512xbf16>
    %641 = vector.shape_cast %640 : vector<1x1x8x512xbf16> to vector<8x512xbf16>
    %642 = arith.extf %641 : vector<8x512xbf16> to vector<8x512xf32>
    %643 = vector.broadcast %8 : vector<1x512xf32> to vector<8x512xf32>
    %644 = arith.addf %642, %643 : vector<8x512xf32>
    %645 = arith.truncf %579 : vector<8x128xf32> to vector<8x128xbf16>
    %cst_150 = arith.constant dense<0.000000e+00> : vector<8x512xf32>
    %646 = tpu.matmul %645, %4, %cst_150 {dimension_numbers = #tpu.dot_dimension_numbers<[1], [0], [0], [1], [0, 0, 1, 1], [], []>} : vector<8x128xbf16>, vector<128x512xbf16>, vector<8x512xf32> -> vector<8x512xf32>
    %647 = arith.addf %644, %646 : vector<8x512xf32>
    %648 = vector.extract_strided_slice %647 {offsets = [0, 0], sizes = [8, 384], strides = [1, 1]} : vector<8x512xf32> to vector<8x384xf32>
    %649 = arith.negf %648 : vector<8x384xf32>
    %650 = math.exp %649 : vector<8x384xf32>
    %cst_151 = arith.constant 1.000000e+00 : f32
    %651 = vector.broadcast %cst_151 : f32 to vector<8x384xf32>
    %652 = arith.addf %651, %650 : vector<8x384xf32>
    %653 = arith.divf %651, %652 : vector<8x384xf32>
    %654 = vector.extract_strided_slice %653 {offsets = [0, 0], sizes = [8, 128], strides = [1, 1]} : vector<8x384xf32> to vector<8x128xf32>
    %655 = vector.extract_strided_slice %653 {offsets = [0, 128], sizes = [8, 128], strides = [1, 1]} : vector<8x384xf32> to vector<8x128xf32>
    %656 = vector.extract_strided_slice %653 {offsets = [0, 256], sizes = [8, 128], strides = [1, 1]} : vector<8x384xf32> to vector<8x128xf32>
    %657 = vector.extract_strided_slice %647 {offsets = [0, 384], sizes = [8, 128], strides = [1, 1]} : vector<8x512xf32> to vector<8x128xf32>
    %658 = math.tanh %657 : vector<8x128xf32>
    %659 = arith.mulf %655, %582 : vector<8x128xf32>
    %660 = arith.mulf %654, %658 : vector<8x128xf32>
    %661 = arith.addf %659, %660 : vector<8x128xf32>
    %662 = math.tanh %661 : vector<8x128xf32>
    %663 = arith.mulf %656, %662 : vector<8x128xf32>
    %664 = vector.shape_cast %635 : vector<8x1xi1> to vector<8x1xi1>
    %665 = vector.broadcast %664 : vector<8x1xi1> to vector<8x128xi1>
    %666 = arith.select %665, %663, %579 : vector<8x128xi1>, vector<8x128xf32>
    %667 = vector.shape_cast %635 : vector<8x1xi1> to vector<8x1xi1>
    %668 = vector.broadcast %667 : vector<8x1xi1> to vector<8x128xi1>
    %669 = arith.select %668, %661, %582 : vector<8x128xi1>, vector<8x128xf32>
    %cst_152 = arith.constant 0.000000e+00 : f32
    %670 = vector.shape_cast %635 : vector<8x1xi1> to vector<8x1xi1>
    %671 = vector.broadcast %670 : vector<8x1xi1> to vector<8x128xi1>
    %672 = vector.broadcast %cst_152 : f32 to vector<8x128xf32>
    %673 = arith.select %671, %663, %672 : vector<8x128xi1>, vector<8x128xf32>
    %c0_153 = arith.constant 0 : index
    %674 = arith.index_cast %632 : i32 to index
    %c0_154 = arith.constant 0 : index
    %c0_155 = arith.constant 0 : index
    %675 = vector.load %arg2[%c0_153, %674, %c0_154, %c0_155] : memref<1x8x8x512xbf16, #tpu.memory_space<vmem>>, vector<1x1x8x512xbf16>
    %676 = vector.shape_cast %675 : vector<1x1x8x512xbf16> to vector<8x512xbf16>
    %677 = arith.extf %676 : vector<8x512xbf16> to vector<8x512xf32>
    %678 = vector.broadcast %10 : vector<1x512xf32> to vector<8x512xf32>
    %679 = arith.addf %677, %678 : vector<8x512xf32>
    %680 = arith.truncf %614 : vector<8x128xf32> to vector<8x128xbf16>
    %cst_156 = arith.constant dense<0.000000e+00> : vector<8x512xf32>
    %681 = tpu.matmul %680, %6, %cst_156 {dimension_numbers = #tpu.dot_dimension_numbers<[1], [0], [0], [1], [0, 0, 1, 1], [], []>} : vector<8x128xbf16>, vector<128x512xbf16>, vector<8x512xf32> -> vector<8x512xf32>
    %682 = arith.addf %679, %681 : vector<8x512xf32>
    %683 = vector.extract_strided_slice %682 {offsets = [0, 0], sizes = [8, 384], strides = [1, 1]} : vector<8x512xf32> to vector<8x384xf32>
    %684 = arith.negf %683 : vector<8x384xf32>
    %685 = math.exp %684 : vector<8x384xf32>
    %cst_157 = arith.constant 1.000000e+00 : f32
    %686 = vector.broadcast %cst_157 : f32 to vector<8x384xf32>
    %687 = arith.addf %686, %685 : vector<8x384xf32>
    %688 = arith.divf %686, %687 : vector<8x384xf32>
    %689 = vector.extract_strided_slice %688 {offsets = [0, 0], sizes = [8, 128], strides = [1, 1]} : vector<8x384xf32> to vector<8x128xf32>
    %690 = vector.extract_strided_slice %688 {offsets = [0, 128], sizes = [8, 128], strides = [1, 1]} : vector<8x384xf32> to vector<8x128xf32>
    %691 = vector.extract_strided_slice %688 {offsets = [0, 256], sizes = [8, 128], strides = [1, 1]} : vector<8x384xf32> to vector<8x128xf32>
    %692 = vector.extract_strided_slice %682 {offsets = [0, 384], sizes = [8, 128], strides = [1, 1]} : vector<8x512xf32> to vector<8x128xf32>
    %693 = math.tanh %692 : vector<8x128xf32>
    %694 = arith.mulf %690, %617 : vector<8x128xf32>
    %695 = arith.mulf %689, %693 : vector<8x128xf32>
    %696 = arith.addf %694, %695 : vector<8x128xf32>
    %697 = math.tanh %696 : vector<8x128xf32>
    %698 = arith.mulf %691, %697 : vector<8x128xf32>
    %699 = vector.shape_cast %638 : vector<8x1xi1> to vector<8x1xi1>
    %700 = vector.broadcast %699 : vector<8x1xi1> to vector<8x128xi1>
    %701 = arith.select %700, %698, %614 : vector<8x128xi1>, vector<8x128xf32>
    %702 = vector.shape_cast %638 : vector<8x1xi1> to vector<8x1xi1>
    %703 = vector.broadcast %702 : vector<8x1xi1> to vector<8x128xi1>
    %704 = arith.select %703, %696, %617 : vector<8x128xi1>, vector<8x128xf32>
    %cst_158 = arith.constant 0.000000e+00 : f32
    %705 = vector.shape_cast %638 : vector<8x1xi1> to vector<8x1xi1>
    %706 = vector.broadcast %705 : vector<8x1xi1> to vector<8x128xi1>
    %707 = vector.broadcast %cst_158 : f32 to vector<8x128xf32>
    %708 = arith.select %706, %698, %707 : vector<8x128xi1>, vector<8x128xf32>
    %709 = arith.truncf %673 : vector<8x128xf32> to vector<8x128xbf16>
    %710 = arith.index_cast %c7_i32_145 : i32 to index
    %c0_159 = arith.constant 0 : index
    %c0_160 = arith.constant 0 : index
    %711 = vector.load %arg6[%710, %c0_159, %c0_160] : memref<8x8x128xbf16, #tpu.memory_space<vmem>>, vector<1x8x128xbf16>
    %712 = vector.shape_cast %711 : vector<1x8x128xbf16> to vector<8x128xbf16>
    %713 = vector.shape_cast %709 : vector<8x128xbf16> to vector<1x8x128xbf16>
    tpu.vector_store %arg6[%710, %c0_159, %c0_160], %713 {strides = array<i32>} : memref<8x8x128xbf16, #tpu.memory_space<vmem>>, vector<1x8x128xbf16>,
    %714 = arith.truncf %708 : vector<8x128xf32> to vector<8x128xbf16>
    %715 = arith.index_cast %632 : i32 to index
    %c0_161 = arith.constant 0 : index
    %c0_162 = arith.constant 0 : index
    %716 = vector.load %arg7[%715, %c0_161, %c0_162] : memref<8x8x128xbf16, #tpu.memory_space<vmem>>, vector<1x8x128xbf16>
    %717 = vector.shape_cast %716 : vector<1x8x128xbf16> to vector<8x128xbf16>
    %718 = vector.shape_cast %714 : vector<8x128xbf16> to vector<1x8x128xbf16>
    tpu.vector_store %arg7[%715, %c0_161, %c0_162], %718 {strides = array<i32>} : memref<8x8x128xbf16, #tpu.memory_space<vmem>>, vector<1x8x128xbf16>,
    %c8_i32_163 = arith.constant 8 : i32
    %c0_164 = arith.constant 0 : index
    %c0_165 = arith.constant 0 : index
    %c0_166 = arith.constant 0 : index
    %719 = vector.load %arg8[%c0_164, %c0_165, %c0_166] : memref<2x8x128xf32, #tpu.memory_space<vmem>>, vector<1x8x128xf32>
    %720 = vector.shape_cast %719 : vector<1x8x128xf32> to vector<8x128xf32>
    %721 = vector.shape_cast %666 : vector<8x128xf32> to vector<1x8x128xf32>
    tpu.vector_store %arg8[%c0_164, %c0_165, %c0_166], %721 {strides = array<i32>} : memref<2x8x128xf32, #tpu.memory_space<vmem>>, vector<1x8x128xf32>,
    %c1_167 = arith.constant 1 : index
    %c0_168 = arith.constant 0 : index
    %c0_169 = arith.constant 0 : index
    %722 = vector.load %arg8[%c1_167, %c0_168, %c0_169] : memref<2x8x128xf32, #tpu.memory_space<vmem>>, vector<1x8x128xf32>
    %723 = vector.shape_cast %722 : vector<1x8x128xf32> to vector<8x128xf32>
    %724 = vector.shape_cast %701 : vector<8x128xf32> to vector<1x8x128xf32>
    tpu.vector_store %arg8[%c1_167, %c0_168, %c0_169], %724 {strides = array<i32>} : memref<2x8x128xf32, #tpu.memory_space<vmem>>, vector<1x8x128xf32>,
    %c0_170 = arith.constant 0 : index
    %c0_171 = arith.constant 0 : index
    %c0_172 = arith.constant 0 : index
    %725 = vector.load %arg9[%c0_170, %c0_171, %c0_172] : memref<2x8x128xf32, #tpu.memory_space<vmem>>, vector<1x8x128xf32>
    %726 = vector.shape_cast %725 : vector<1x8x128xf32> to vector<8x128xf32>
    %727 = vector.shape_cast %669 : vector<8x128xf32> to vector<1x8x128xf32>
    tpu.vector_store %arg9[%c0_170, %c0_171, %c0_172], %727 {strides = array<i32>} : memref<2x8x128xf32, #tpu.memory_space<vmem>>, vector<1x8x128xf32>,
    %c1_173 = arith.constant 1 : index
    %c0_174 = arith.constant 0 : index
    %c0_175 = arith.constant 0 : index
    %728 = vector.load %arg9[%c1_173, %c0_174, %c0_175] : memref<2x8x128xf32, #tpu.memory_space<vmem>>, vector<1x8x128xf32>
    %729 = vector.shape_cast %728 : vector<1x8x128xf32> to vector<8x128xf32>
    %730 = vector.shape_cast %704 : vector<8x128xf32> to vector<1x8x128xf32>
    tpu.vector_store %arg9[%c1_173, %c0_174, %c0_175], %730 {strides = array<i32>} : memref<2x8x128xf32, #tpu.memory_space<vmem>>, vector<1x8x128xf32>,
    return
  }
  func.func @transform_0(%arg0: i32) -> (i32, i32, i32, i32) {
    %c0_i32 = arith.constant 0 : i32
    %c0_i32_0 = arith.constant 0 : i32
    %c0_i32_1 = arith.constant 0 : i32
    %c0_i32_2 = arith.constant 0 : i32
    return %c0_i32, %arg0, %c0_i32_0, %c0_i32_1 : i32, i32, i32, i32
  }
  func.func @transform_1(%arg0: i32) -> (i32, i32, i32, i32) {
    %c0_i32 = arith.constant 0 : i32
    %0 = arith.subi %c0_i32, %arg0 : i32
    %c1_i32 = arith.constant 1 : i32
    %c0_i32_0 = arith.constant 0 : i32
    %c0_i32_1 = arith.constant 0 : i32
    %c0_i32_2 = arith.constant 0 : i32
    return %c1_i32, %0, %c0_i32_0, %c0_i32_1 : i32, i32, i32, i32
  }
  func.func @transform_2(%arg0: i32) -> (i32, i32) {
    %c0_i32 = arith.constant 0 : i32
    %c0_i32_0 = arith.constant 0 : i32
    %c0_i32_1 = arith.constant 0 : i32
    return %c0_i32, %c0_i32_0 : i32, i32
  }
  func.func @transform_3(%arg0: i32) -> (i32, i32, i32) {
    %c0_i32 = arith.constant 0 : i32
    %c0_i32_0 = arith.constant 0 : i32
    %c0_i32_1 = arith.constant 0 : i32
    %c0_i32_2 = arith.constant 0 : i32
    return %c0_i32, %c0_i32_0, %c0_i32_1 : i32, i32, i32
  }
  func.func @transform_4(%arg0: i32) -> (i32, i32, i32) {
    %c0_i32 = arith.constant 0 : i32
    %c0_i32_0 = arith.constant 0 : i32
    %c0_i32_1 = arith.constant 0 : i32
    %c0_i32_2 = arith.constant 0 : i32
    return %c0_i32, %c0_i32_0, %c0_i32_1 : i32, i32, i32
  }
  func.func @transform_5(%arg0: i32) -> (i32, i32, i32) {
    %c0_i32 = arith.constant 0 : i32
    %c0_i32_0 = arith.constant 0 : i32
    %c0_i32_1 = arith.constant 0 : i32
    return %arg0, %c0_i32, %c0_i32_0 : i32, i32, i32
  }
  func.func @transform_6(%arg0: i32) -> (i32, i32, i32) {
    %c0_i32 = arith.constant 0 : i32
    %0 = arith.subi %c0_i32, %arg0 : i32
    %c0_i32_0 = arith.constant 0 : i32
    %c0_i32_1 = arith.constant 0 : i32
    %c0_i32_2 = arith.constant 0 : i32
    return %0, %c0_i32_0, %c0_i32_1 : i32, i32, i32
  }
  func.func @transform_7(%arg0: i32) -> (i32, i32, i32) {
    %c0_i32 = arith.constant 0 : i32
    %c0_i32_0 = arith.constant 0 : i32
    %c0_i32_1 = arith.constant 0 : i32
    %c0_i32_2 = arith.constant 0 : i32
    return %c0_i32, %c0_i32_0, %c0_i32_1 : i32, i32, i32
  }
}

</mosaic_0001>

<llo_original>
// kernel: neg.1
$region0: #{neg.1}
  #allocation0 [shape = 's32[1]{0}', space=sflag, size = 0x4, scoped, tag = 'scoped memory for neg.1']
  %s0 = inlined_call_operand.vmem [shape: s32[4], index: 0, kind: input, shape index: {}]
  %s1 = inlined_call_operand.vmem [shape: s32[4], index: 1, kind: output, shape index: {}]
  %v2 = vld [vmem:[%s0] sm:$0x1]
  %3 = xla_tuple %v2
  %4 = xla_tuple %3
  %v5 = vsub.s32 0, %v2
  %6 = xla_tuple %v5
  %7 = vst [vmem:[%s1] sm:$0x1] %v5

// kernel: bilstm_forward.2
$region0: #{bilstm_forward.2}
  #allocation0 [shape = 'u32[]', space=smem, size = 0x4, offset = 0x4, fixed_abs, tag = 'smem constant byte address 0x4 - core index']
  #allocation1 [shape = 'u32[144,128]{1,0:T(1,128)}', space=vmem, size = 0x12000, scoped, tag = 'internal scratch']
  #allocation2 [shape = 'f32[2,8,128]{2,1,0:T(8,128)}', space=vmem, size = 0x2000, scoped, tag = 'scratch operand']
  %s0 = inlined_call_operand.vmem [shape: bf16[2,8,8,512], index: 0, kind: input, shape index: {}, may-alias: {0,1}]
  %s1 = inlined_call_operand.vmem [shape: bf16[2,8,8,512], index: 1, kind: input, shape index: {}, may-alias: {0,1}]
  %s2 = inlined_call_operand.vmem [shape: s32[8,1], index: 2, kind: input, shape index: {}]
  %s3 = inlined_call_operand.vmem [shape: bf16[2,128,512], index: 3, kind: input, shape index: {}]
  %s4 = inlined_call_operand.vmem [shape: f32[2,1,512], index: 4, kind: input, shape index: {}]
  %s5 = inlined_call_operand.vmem [shape: bf16[8,8,128], index: 5, kind: output, shape index: {0}]
  %s6 = inlined_call_operand.vmem [shape: bf16[8,8,128], index: 6, kind: output, shape index: {1}]
  %s7 = inlined_call_operand.vmem [shape: f32[2,8,128], index: 7, kind: output, shape index: {2}]
  %8 = xla_tuple %s5, %s6, %s7
  %s9 = sld [smem:[#allocation0]]
  $region50: #{bilstm_forward.2} parent=0
    _
  %s11 = ssub.s32 1, %s9
  %s12 = scalar_select 0, %s11, %s9
  // Predicated region
  $region2: #{bilstm_forward.2} parent=0 // pred_check
    _
  $region3: #{bilstm_forward.2} parent=0 // pred_check_branch
    %14 = sbr.rel (0) target = $region5
  $region4: #{bilstm_forward.2} parent=0 // pred_region
    _
  $region5: #{bilstm_forward.2} parent=0 // pred_fallthru
    _
  // Predicated region
  $region6: #{bilstm_forward.2} parent=0 // pred_check
    _
  $region7: #{bilstm_forward.2} parent=0 // pred_check_branch
    %16 = sbr.rel (0) target = $region9
  $region8: #{bilstm_forward.2} parent=0 // pred_region
    %s17 = ssub.s32 0, 0
    %s18 = smul.u32 8, %s17
    %p19 = scmp.lt.s32.totalorder %s18, 7
    %s20 = scalar_select %p19, %s18, 7
    %s21 = smul.addr %s20, 4
    %s22 = sadd.s32 %s21, 32
    %s23 = smul.addr %s22, 4
    %s24 = scalar_lea.vmem %s1, %s23
    %s25 = ssub.s32 0, 0
    %s26 = smul.u32 8, %s25
  $region9: #{bilstm_forward.2} parent=0 // pred_fallthru
    _
  // Predicated region
  $region10: #{bilstm_forward.2} parent=0 // pred_check
    _
  $region11: #{bilstm_forward.2} parent=0 // pred_check_branch
    %28 = sbr.rel (0) target = $region13
  $region12: #{bilstm_forward.2} parent=0 // pred_region
    _
  $region13: #{bilstm_forward.2} parent=0 // pred_fallthru
    _
  // Predicated region
  $region14: #{bilstm_forward.2} parent=0 // pred_check
    _
  $region15: #{bilstm_forward.2} parent=0 // pred_check_branch
    %30 = sbr.rel (0) target = $region17
  $region16: #{bilstm_forward.2} parent=0 // pred_region
    _
  $region17: #{bilstm_forward.2} parent=0 // pred_fallthru
    _
  // Predicated region
  $region18: #{bilstm_forward.2} parent=0 // pred_check
    _
  $region19: #{bilstm_forward.2} parent=0 // pred_check_branch
    %32 = sbr.rel (0) target = $region21
  $region20: #{bilstm_forward.2} parent=0 // pred_region
    _
  $region21: #{bilstm_forward.2} parent=0 // pred_fallthru
    _
  %s33 = ssub.s32 0, 0
  %s34 = smul.u32 8, %s33
  %p35 = scmp.lt.s32.totalorder %s34, 7
  %s36 = scalar_select %p35, %s34, 7
  %s37 = smul.addr %s36, 4
  %s38 = sadd.s32 %s37, 32
  %s39 = smul.addr %s38, 4
  %s40 = scalar_lea.vmem %s1, %s39
  %s41 = ssub.s32 0, 0
  %s42 = smul.u32 8, %s41
  %p43 = scmp.lt.s32.totalorder %s42, 7
  %s44 = scalar_select %p43, %s42, 7
  %s45 = smul.addr %s44, 4
  %s46 = scalar_lea.vmem %s6, %s45
  %s47 = ssub.s32 0, 0
  %s48 = smul.u32 8, %s47
  %p49 = scmp.lt.s32.totalorder %s48, 7
  %s50 = scalar_select %p49, %s48, 7
  %s51 = smul.addr %s50, 4
  %s52 = sadd.s32 %s51, 32
  %s53 = smul.addr %s52, 4
  %s54 = scalar_lea.vmem %s1, %s53
  %s55 = ssub.s32 0, 0
  %s56 = smul.u32 8, %s55
  %s57 = ssub.s32 0, 0
  %s58 = smul.u32 8, %s57
  %p59 = scmp.lt.s32.totalorder %s58, 7
  %s60 = scalar_select %p59, %s58, 7
  %s61 = smul.addr %s60, 4
  %s62 = scalar_lea.vmem %s6, %s61
  %s63 = ssub.s32 0, 0
  %s64 = smul.u32 8, %s63
  %p66 = scmp.eq.s32.totalorder 0, 0
  // Predicated region
  $region22: #{bilstm_forward.2} parent=0 // pred_check
    %p67 = pneg %p66
  $region23: #{bilstm_forward.2} parent=0 // pred_check_branch
    %69 = sbr.rel (%p67) target = $region25
  $region24: #{bilstm_forward.2} parent=0 // pred_region
    %70 = vst [vmem:[%s7] sm:$0xff] 0.0
    %71 = vst [vmem:[%s7 + $0x8] sm:$0xff] 0.0
    %72 = vst [vmem:[#allocation2] sm:$0xff] 0.0
    %73 = vst [vmem:[#allocation2 + $0x8] sm:$0xff] 0.0
  $region25: #{bilstm_forward.2} parent=0 // pred_fallthru
    _
  %v74 = vld [vmem:[%s3] sm:$0xff]
  %v75 = vld [vmem:[%s3 + $0x8] sm:$0xff]
  %v76 = vld [vmem:[%s3 + $0x10] sm:$0xff]
  %v77 = vld [vmem:[%s3 + $0x18] sm:$0xff]
  %v78 = vld [vmem:[%s3 + $0x20] sm:$0xff]
  %v79 = vld [vmem:[%s3 + $0x28] sm:$0xff]
  %v80 = vld [vmem:[%s3 + $0x30] sm:$0xff]
  %v81 = vld [vmem:[%s3 + $0x38] sm:$0xff]
  %v82 = vld [vmem:[%s3 + $0x40] sm:$0xff]
  %v83 = vld [vmem:[%s3 + $0x48] sm:$0xff]
  %v84 = vld [vmem:[%s3 + $0x50] sm:$0xff]
  %v85 = vld [vmem:[%s3 + $0x58] sm:$0xff]
  %v86 = vld [vmem:[%s3 + $0x60] sm:$0xff]
  %v87 = vld [vmem:[%s3 + $0x68] sm:$0xff]
  %v88 = vld [vmem:[%s3 + $0x70] sm:$0xff]
  %v89 = vld [vmem:[%s3 + $0x78] sm:$0xff]
  %v90 = vld [vmem:[%s3 + $0x80] sm:$0xff]
  %v91 = vld [vmem:[%s3 + $0x88] sm:$0xff]
  %v92 = vld [vmem:[%s3 + $0x90] sm:$0xff]
  %v93 = vld [vmem:[%s3 + $0x98] sm:$0xff]
  %v94 = vld [vmem:[%s3 + $0xa0] sm:$0xff]
  %v95 = vld [vmem:[%s3 + $0xa8] sm:$0xff]
  %v96 = vld [vmem:[%s3 + $0xb0] sm:$0xff]
  %v97 = vld [vmem:[%s3 + $0xb8] sm:$0xff]
  %v98 = vld [vmem:[%s3 + $0xc0] sm:$0xff]
  %v99 = vld [vmem:[%s3 + $0xc8] sm:$0xff]
  %v100 = vld [vmem:[%s3 + $0xd0] sm:$0xff]
  %v101 = vld [vmem:[%s3 + $0xd8] sm:$0xff]
  %v102 = vld [vmem:[%s3 + $0xe0] sm:$0xff]
  %v103 = vld [vmem:[%s3 + $0xe8] sm:$0xff]
  %v104 = vld [vmem:[%s3 + $0xf0] sm:$0xff]
  %v105 = vld [vmem:[%s3 + $0xf8] sm:$0xff]
  %s106 = scalar_lea.vmem %s3, 256
  %v107 = vld [vmem:[%s106] sm:$0xff]
  %v108 = vld [vmem:[%s106 + $0x8] sm:$0xff]
  %v109 = vld [vmem:[%s106 + $0x10] sm:$0xff]
  %v110 = vld [vmem:[%s106 + $0x18] sm:$0xff]
  %v111 = vld [vmem:[%s106 + $0x20] sm:$0xff]
  %v112 = vld [vmem:[%s106 + $0x28] sm:$0xff]
  %v113 = vld [vmem:[%s106 + $0x30] sm:$0xff]
  %v114 = vld [vmem:[%s106 + $0x38] sm:$0xff]
  %v115 = vld [vmem:[%s106 + $0x40] sm:$0xff]
  %v116 = vld [vmem:[%s106 + $0x48] sm:$0xff]
  %v117 = vld [vmem:[%s106 + $0x50] sm:$0xff]
  %v118 = vld [vmem:[%s106 + $0x58] sm:$0xff]
  %v119 = vld [vmem:[%s106 + $0x60] sm:$0xff]
  %v120 = vld [vmem:[%s106 + $0x68] sm:$0xff]
  %v121 = vld [vmem:[%s106 + $0x70] sm:$0xff]
  %v122 = vld [vmem:[%s106 + $0x78] sm:$0xff]
  %v123 = vld [vmem:[%s106 + $0x80] sm:$0xff]
  %v124 = vld [vmem:[%s106 + $0x88] sm:$0xff]
  %v125 = vld [vmem:[%s106 + $0x90] sm:$0xff]
  %v126 = vld [vmem:[%s106 + $0x98] sm:$0xff]
  %v127 = vld [vmem:[%s106 + $0xa0] sm:$0xff]
  %v128 = vld [vmem:[%s106 + $0xa8] sm:$0xff]
  %v129 = vld [vmem:[%s106 + $0xb0] sm:$0xff]
  %v130 = vld [vmem:[%s106 + $0xb8] sm:$0xff]
  %v131 = vld [vmem:[%s106 + $0xc0] sm:$0xff]
  %v132 = vld [vmem:[%s106 + $0xc8] sm:$0xff]
  %v133 = vld [vmem:[%s106 + $0xd0] sm:$0xff]
  %v134 = vld [vmem:[%s106 + $0xd8] sm:$0xff]
  %v135 = vld [vmem:[%s106 + $0xe0] sm:$0xff]
  %v136 = vld [vmem:[%s106 + $0xe8] sm:$0xff]
  %v137 = vld [vmem:[%s106 + $0xf0] sm:$0xff]
  %v138 = vld [vmem:[%s106 + $0xf8] sm:$0xff]
  %v139 = vld [vmem:[%s4] sm:$0xf]
  %s140 = scalar_lea.vmem %s4, 4
  %v141 = vld [vmem:[%s140] sm:$0xf]
  %v142 = vld [vmem:[%s2] sm:$0xff]
  %s143 = smul.u32 0, 8
  %s144 = ssub.s32 0, 0
  %s145 = smul.u32 %s144, 8
  %v146 = vld [vmem:[%s7] sm:$0xff]
  %v147 = vld [vmem:[#allocation2] sm:$0xff]
  %s148 = scalar_lea.vmem %s7, 8
  %v149 = vld [vmem:[%s148] sm:$0xff]
  %s150 = scalar_lea.vmem [#allocation2], 8
  %v151 = vld [vmem:[%s150] sm:$0xff]
  %v152 = vstv %s143
  %vm153 = vcmp.lt.s32.totalorder %v152, %v142
  %s154 = sadd.s32 %s145, 7
  %v155 = vstv %s154
  %vm156 = vcmp.lt.s32.totalorder %v155, %v142
  %v157 = vld [vmem:[%s0] sm:$0xff]
  %v158 = vld [vmem:[%s0 + $0x8] sm:$0xff]
  %v159 = vunpack.c.l.bf16 %v157
  %v160 = vunpack.c.h.bf16 %v157
  %v161 = vunpack.c.l.bf16 %v158
  %v162 = vunpack.c.h.bf16 %v158
  %v164 = vlaneseq
  %v165 = vshrl.u32 %v164, 7
  %v166 = vsub.s32 0, %v165
  %v167 = vrot.slane %v139, %v166
  %v168 = vlaneseq
  %v169 = vshrl.u32 %v168, 7
  %v170 = vsub.s32 1, %v169
  %v171 = vrot.slane %v139, %v170
  %v172 = vlaneseq
  %v173 = vshrl.u32 %v172, 7
  %v174 = vsub.s32 2, %v173
  %v175 = vrot.slane %v139, %v174
  %v176 = vlaneseq
  %v177 = vshrl.u32 %v176, 7
  %v178 = vsub.s32 3, %v177
  %v179 = vrot.slane %v139, %v178
  %v184 = vadd.f32 %v159, %v167
  %v185 = vadd.f32 %v160, %v171
  %v186 = vadd.f32 %v161, %v175
  %v187 = vadd.f32 %v162, %v179
  %v188 = vpack.c.bf16 %v146, %v146
  %v221 = vunpack.c.l.b16 %v74
  %v222 = vunpack.c.h.b16 %v74
  %v223 = vunpack.c.l.b16 %v75
  %v224 = vunpack.c.h.b16 %v75
  %v225 = vunpack.c.l.b16 %v76
  %v226 = vunpack.c.h.b16 %v76
  %v227 = vunpack.c.l.b16 %v77
  %v228 = vunpack.c.h.b16 %v77
  %v229 = vunpack.c.l.b16 %v78
  %v230 = vunpack.c.h.b16 %v78
  %v231 = vunpack.c.l.b16 %v79
  %v232 = vunpack.c.h.b16 %v79
  %v233 = vunpack.c.l.b16 %v80
  %v234 = vunpack.c.h.b16 %v80
  %v235 = vunpack.c.l.b16 %v81
  %v236 = vunpack.c.h.b16 %v81
  %v237 = vunpack.c.l.b16 %v82
  %v238 = vunpack.c.h.b16 %v82
  %v239 = vunpack.c.l.b16 %v83
  %v240 = vunpack.c.h.b16 %v83
  %v241 = vunpack.c.l.b16 %v84
  %v242 = vunpack.c.h.b16 %v84
  %v243 = vunpack.c.l.b16 %v85
  %v244 = vunpack.c.h.b16 %v85
  %v245 = vunpack.c.l.b16 %v86
  %v246 = vunpack.c.h.b16 %v86
  %v247 = vunpack.c.l.b16 %v87
  %v248 = vunpack.c.h.b16 %v87
  %v249 = vunpack.c.l.b16 %v88
  %v250 = vunpack.c.h.b16 %v88
  %v251 = vunpack.c.l.b16 %v89
  %v252 = vunpack.c.h.b16 %v89
  %v253 = vunpack.c.l.b16 %v90
  %v254 = vunpack.c.h.b16 %v90
  %v255 = vunpack.c.l.b16 %v91
  %v256 = vunpack.c.h.b16 %v91
  %v257 = vunpack.c.l.b16 %v92
  %v258 = vunpack.c.h.b16 %v92
  %v259 = vunpack.c.l.b16 %v93
  %v260 = vunpack.c.h.b16 %v93
  %v261 = vunpack.c.l.b16 %v94
  %v262 = vunpack.c.h.b16 %v94
  %v263 = vunpack.c.l.b16 %v95
  %v264 = vunpack.c.h.b16 %v95
  %v265 = vunpack.c.l.b16 %v96
  %v266 = vunpack.c.h.b16 %v96
  %v267 = vunpack.c.l.b16 %v97
  %v268 = vunpack.c.h.b16 %v97
  %v269 = vunpack.c.l.b16 %v98
  %v270 = vunpack.c.h.b16 %v98
  %v271 = vunpack.c.l.b16 %v99
  %v272 = vunpack.c.h.b16 %v99
  %v273 = vunpack.c.l.b16 %v100
  %v274 = vunpack.c.h.b16 %v100
  %v275 = vunpack.c.l.b16 %v101
  %v276 = vunpack.c.h.b16 %v101
  %v277 = vunpack.c.l.b16 %v102
  %v278 = vunpack.c.h.b16 %v102
  %v279 = vunpack.c.l.b16 %v103
  %v280 = vunpack.c.h.b16 %v103
  %v281 = vunpack.c.l.b16 %v104
  %v282 = vunpack.c.h.b16 %v104
  %v283 = vunpack.c.l.b16 %v105
  %v284 = vunpack.c.h.b16 %v105
  %v285 = vpack.c.b16 %v225, %v221
  %v286 = vpack.c.b16 %v226, %v222
  %v287 = vpack.c.b16 %v227, %v223
  %v288 = vpack.c.b16 %v228, %v224
  %v289 = vpack.c.b16 %v233, %v229
  %v290 = vpack.c.b16 %v234, %v230
  %v291 = vpack.c.b16 %v235, %v231
  %v292 = vpack.c.b16 %v236, %v232
  %v293 = vpack.c.b16 %v241, %v237
  %v294 = vpack.c.b16 %v242, %v238
  %v295 = vpack.c.b16 %v243, %v239
  %v296 = vpack.c.b16 %v244, %v240
  %v297 = vpack.c.b16 %v249, %v245
  %v298 = vpack.c.b16 %v250, %v246
  %v299 = vpack.c.b16 %v251, %v247
  %v300 = vpack.c.b16 %v252, %v248
  %v301 = vpack.c.b16 %v257, %v253
  %v302 = vpack.c.b16 %v258, %v254
  %v303 = vpack.c.b16 %v259, %v255
  %v304 = vpack.c.b16 %v260, %v256
  %v305 = vpack.c.b16 %v265, %v261
  %v306 = vpack.c.b16 %v266, %v262
  %v307 = vpack.c.b16 %v267, %v263
  %v308 = vpack.c.b16 %v268, %v264
  %v309 = vpack.c.b16 %v273, %v269
  %v310 = vpack.c.b16 %v274, %v270
  %v311 = vpack.c.b16 %v275, %v271
  %v312 = vpack.c.b16 %v276, %v272
  %v313 = vpack.c.b16 %v281, %v277
  %v314 = vpack.c.b16 %v282, %v278
  %v315 = vpack.c.b16 %v283, %v279
  %v316 = vpack.c.b16 %v284, %v280
  %349 = vmatprep.subr.bf16.mxu0 %v286
  %350 = vmatpush1.bf16.msra.mxu0 %v285
  %351 = vmatprep.subr.bf16.mxu0 %v290
  %352 = vmatpush1.bf16.msra.mxu0 %v289
  %353 = vmatprep.subr.bf16.mxu0 %v294
  %354 = vmatpush1.bf16.msra.mxu0 %v293
  %355 = vmatprep.subr.bf16.mxu0 %v298
  %356 = vmatpush1.bf16.msra.mxu0 %v297
  %357 = vmatprep.subr.bf16.mxu0 %v302
  %358 = vmatpush1.bf16.msra.mxu0 %v301
  %359 = vmatprep.subr.bf16.mxu0 %v306
  %360 = vmatpush1.bf16.msra.mxu0 %v305
  %361 = vmatprep.subr.bf16.mxu0 %v310
  %362 = vmatpush1.bf16.msra.mxu0 %v309
  %363 = vmatprep.subr.bf16.mxu0 %v314
  %364 = vmatpush1.bf16.msra.mxu0 %v313
  %365 = vmatprep.subr.bf16.mxu0 0
  %366 = vmatpush1.bf16.msra.mxu0 0
  %367 = vmatprep.subr.bf16.mxu0 0
  %368 = vmatpush1.bf16.msra.mxu0 0
  %369 = vmatprep.subr.bf16.mxu0 0
  %370 = vmatpush1.bf16.msra.mxu0 0
  %371 = vmatprep.subr.bf16.mxu0 0
  %372 = vmatpush1.bf16.msra.mxu0 0
  %373 = vmatprep.subr.bf16.mxu0 0
  %374 = vmatpush1.bf16.msra.mxu0 0
  %375 = vmatprep.subr.bf16.mxu0 0
  %376 = vmatpush1.bf16.msra.mxu0 0
  %377 = vmatprep.subr.bf16.mxu0 0
  %378 = vmatpush1.bf16.msra.mxu0 0
  %379 = vmatprep.subr.bf16.mxu0 0
  %380 = vmatpush1.bf16.msra.mxu0 0
  %381 = vmatprep.mubr.bf16.mxu0 0
  %382 = vmatmul.mubr.bf16.gmra.mrb[0].mxu0 %v188
  %v383 = vpop.f32.mrb[0].mxu0
  %v384 = vadd.f32 0.0, %v383
  %v385 = vpop.f32.mrb[0].mxu0
  %v386 = vadd.f32 0.0, %v385
  %v387 = vpop.f32.mrb[0].mxu0
  %v388 = vpop.f32.mrb[0].mxu0
  %389 = vdwg.mxu0
  %390 = vmatprep.subr.bf16.mxu0 %v288
  %391 = vmatpush1.bf16.msra.mxu0 %v287
  %392 = vmatprep.subr.bf16.mxu0 %v292
  %393 = vmatpush1.bf16.msra.mxu0 %v291
  %394 = vmatprep.subr.bf16.mxu0 %v296
  %395 = vmatpush1.bf16.msra.mxu0 %v295
  %396 = vmatprep.subr.bf16.mxu0 %v300
  %397 = vmatpush1.bf16.msra.mxu0 %v299
  %398 = vmatprep.subr.bf16.mxu0 %v304
  %399 = vmatpush1.bf16.msra.mxu0 %v303
  %400 = vmatprep.subr.bf16.mxu0 %v308
  %401 = vmatpush1.bf16.msra.mxu0 %v307
  %402 = vmatprep.subr.bf16.mxu0 %v312
  %403 = vmatpush1.bf16.msra.mxu0 %v311
  %404 = vmatprep.subr.bf16.mxu0 %v316
  %405 = vmatpush1.bf16.msra.mxu0 %v315
  %406 = vmatprep.subr.bf16.mxu0 0
  %407 = vmatpush1.bf16.msra.mxu0 0
  %408 = vmatprep.subr.bf16.mxu0 0
  %409 = vmatpush1.bf16.msra.mxu0 0
  %410 = vmatprep.subr.bf16.mxu0 0
  %411 = vmatpush1.bf16.msra.mxu0 0
  %412 = vmatprep.subr.bf16.mxu0 0
  %413 = vmatpush1.bf16.msra.mxu0 0
  %414 = vmatprep.subr.bf16.mxu0 0
  %415 = vmatpush1.bf16.msra.mxu0 0
  %416 = vmatprep.subr.bf16.mxu0 0
  %417 = vmatpush1.bf16.msra.mxu0 0
  %418 = vmatprep.subr.bf16.mxu0 0
  %419 = vmatpush1.bf16.msra.mxu0 0
  %420 = vmatprep.subr.bf16.mxu0 0
  %421 = vmatpush1.bf16.msra.mxu0 0
  %422 = vmatprep.mubr.bf16.mxu0 0
  %423 = vmatmul.mubr.bf16.gmra.mrb[0].mxu0 %v188
  %v424 = vpop.f32.mrb[0].mxu0
  %v425 = vadd.f32 0.0, %v424
  %v426 = vpop.f32.mrb[0].mxu0
  %v427 = vadd.f32 0.0, %v426
  %v428 = vpop.f32.mrb[0].mxu0
  %v429 = vpop.f32.mrb[0].mxu0
  %430 = vdwg.mxu0
  %v431 = vadd.f32 %v184, %v384
  %v432 = vadd.f32 %v185, %v386
  %v433 = vadd.f32 %v186, %v425
  %v434 = vadd.f32 %v187, %v427
  %v435 = vxor.u32 %v431, 2147483648
  %v436 = vxor.u32 %v432, 2147483648
  %v437 = vxor.u32 %v433, 2147483648
  %v438 = vmul.f32 %v435, 1.442695
  %v439 = vpow.pop %v438
  %v440 = vmul.f32 %v436, 1.442695
  %v441 = vpow.pop %v440
  %v442 = vmul.f32 %v437, 1.442695
  %v443 = vpow.pop %v442
  %v444 = vadd.f32 %v439, 1.0
  %v445 = vadd.f32 %v441, 1.0
  %v446 = vadd.f32 %v443, 1.0
  %v447 = vrcp.pop %v444
  %v448 = vmul.f32 1.0, %v447
  %v449 = vrcp.pop %v445
  %v450 = vmul.f32 1.0, %v449
  %v451 = vrcp.pop %v446
  %v452 = vmul.f32 1.0, %v451
  %v453 = vtanh.pop %v434
  %v454 = vmul.f32 %v450, %v147
  %v455 = vmul.f32 %v448, %v453
  %v456 = vadd.f32 %v454, %v455
  %v457 = vtanh.pop %v456
  %v458 = vmul.f32 %v452, %v457
  %v459 = vsel %vm153, 1, 0
  %460 = vset.pattern.permute.xlu0 0
  %461 = vperm.xlu0 %460, %v459
  %v462 = vpop.permute.xlu0 %461
  %vm463 = vcmp.eq.s32.totalorder %v462, 1
  %v464 = vsel %vm463, %v458, %v146
  %v465 = vsel %vm463, %v456, %v147
  %v466 = vsel %vm463, %v458, 0.0
  %s467 = scalar_lea.vmem %s54, 112
  %v468 = vld [vmem:[%s467] sm:$0xff]
  %v469 = vld [vmem:[%s467 + $0x8] sm:$0xff]
  %v470 = vunpack.c.l.bf16 %v468
  %v471 = vunpack.c.h.bf16 %v468
  %v472 = vunpack.c.l.bf16 %v469
  %v473 = vunpack.c.h.bf16 %v469
  %v475 = vlaneseq
  %v476 = vshrl.u32 %v475, 7
  %v477 = vsub.s32 0, %v476
  %v478 = vrot.slane %v141, %v477
  %v479 = vlaneseq
  %v480 = vshrl.u32 %v479, 7
  %v481 = vsub.s32 1, %v480
  %v482 = vrot.slane %v141, %v481
  %v483 = vlaneseq
  %v484 = vshrl.u32 %v483, 7
  %v485 = vsub.s32 2, %v484
  %v486 = vrot.slane %v141, %v485
  %v487 = vlaneseq
  %v488 = vshrl.u32 %v487, 7
  %v489 = vsub.s32 3, %v488
  %v490 = vrot.slane %v141, %v489
  %v495 = vadd.f32 %v470, %v478
  %v496 = vadd.f32 %v471, %v482
  %v497 = vadd.f32 %v472, %v486
  %v498 = vadd.f32 %v473, %v490
  %v499 = vpack.c.bf16 %v149, %v149
  %v532 = vunpack.c.l.b16 %v107
  %v533 = vunpack.c.h.b16 %v107
  %v534 = vunpack.c.l.b16 %v108
  %v535 = vunpack.c.h.b16 %v108
  %v536 = vunpack.c.l.b16 %v109
  %v537 = vunpack.c.h.b16 %v109
  %v538 = vunpack.c.l.b16 %v110
  %v539 = vunpack.c.h.b16 %v110
  %v540 = vunpack.c.l.b16 %v111
  %v541 = vunpack.c.h.b16 %v111
  %v542 = vunpack.c.l.b16 %v112
  %v543 = vunpack.c.h.b16 %v112
  %v544 = vunpack.c.l.b16 %v113
  %v545 = vunpack.c.h.b16 %v113
  %v546 = vunpack.c.l.b16 %v114
  %v547 = vunpack.c.h.b16 %v114
  %v548 = vunpack.c.l.b16 %v115
  %v549 = vunpack.c.h.b16 %v115
  %v550 = vunpack.c.l.b16 %v116
  %v551 = vunpack.c.h.b16 %v116
  %v552 = vunpack.c.l.b16 %v117
  %v553 = vunpack.c.h.b16 %v117
  %v554 = vunpack.c.l.b16 %v118
  %v555 = vunpack.c.h.b16 %v118
  %v556 = vunpack.c.l.b16 %v119
  %v557 = vunpack.c.h.b16 %v119
  %v558 = vunpack.c.l.b16 %v120
  %v559 = vunpack.c.h.b16 %v120
  %v560 = vunpack.c.l.b16 %v121
  %v561 = vunpack.c.h.b16 %v121
  %v562 = vunpack.c.l.b16 %v122
  %v563 = vunpack.c.h.b16 %v122
  %v564 = vunpack.c.l.b16 %v123
  %v565 = vunpack.c.h.b16 %v123
  %v566 = vunpack.c.l.b16 %v124
  %v567 = vunpack.c.h.b16 %v124
  %v568 = vunpack.c.l.b16 %v125
  %v569 = vunpack.c.h.b16 %v125
  %v570 = vunpack.c.l.b16 %v126
  %v571 = vunpack.c.h.b16 %v126
  %v572 = vunpack.c.l.b16 %v127
  %v573 = vunpack.c.h.b16 %v127
  %v574 = vunpack.c.l.b16 %v128
  %v575 = vunpack.c.h.b16 %v128
  %v576 = vunpack.c.l.b16 %v129
  %v577 = vunpack.c.h.b16 %v129
  %v578 = vunpack.c.l.b16 %v130
  %v579 = vunpack.c.h.b16 %v130
  %v580 = vunpack.c.l.b16 %v131
  %v581 = vunpack.c.h.b16 %v131
  %v582 = vunpack.c.l.b16 %v132
  %v583 = vunpack.c.h.b16 %v132
  %v584 = vunpack.c.l.b16 %v133
  %v585 = vunpack.c.h.b16 %v133
  %v586 = vunpack.c.l.b16 %v134
  %v587 = vunpack.c.h.b16 %v134
  %v588 = vunpack.c.l.b16 %v135
  %v589 = vunpack.c.h.b16 %v135
  %v590 = vunpack.c.l.b16 %v136
  %v591 = vunpack.c.h.b16 %v136
  %v592 = vunpack.c.l.b16 %v137
  %v593 = vunpack.c.h.b16 %v137
  %v594 = vunpack.c.l.b16 %v138
  %v595 = vunpack.c.h.b16 %v138
  %v596 = vpack.c.b16 %v536, %v532
  %v597 = vpack.c.b16 %v537, %v533
  %v598 = vpack.c.b16 %v538, %v534
  %v599 = vpack.c.b16 %v539, %v535
  %v600 = vpack.c.b16 %v544, %v540
  %v601 = vpack.c.b16 %v545, %v541
  %v602 = vpack.c.b16 %v546, %v542
  %v603 = vpack.c.b16 %v547, %v543
  %v604 = vpack.c.b16 %v552, %v548
  %v605 = vpack.c.b16 %v553, %v549
  %v606 = vpack.c.b16 %v554, %v550
  %v607 = vpack.c.b16 %v555, %v551
  %v608 = vpack.c.b16 %v560, %v556
  %v609 = vpack.c.b16 %v561, %v557
  %v610 = vpack.c.b16 %v562, %v558
  %v611 = vpack.c.b16 %v563, %v559
  %v612 = vpack.c.b16 %v568, %v564
  %v613 = vpack.c.b16 %v569, %v565
  %v614 = vpack.c.b16 %v570, %v566
  %v615 = vpack.c.b16 %v571, %v567
  %v616 = vpack.c.b16 %v576, %v572
  %v617 = vpack.c.b16 %v577, %v573
  %v618 = vpack.c.b16 %v578, %v574
  %v619 = vpack.c.b16 %v579, %v575
  %v620 = vpack.c.b16 %v584, %v580
  %v621 = vpack.c.b16 %v585, %v581
  %v622 = vpack.c.b16 %v586, %v582
  %v623 = vpack.c.b16 %v587, %v583
  %v624 = vpack.c.b16 %v592, %v588
  %v625 = vpack.c.b16 %v593, %v589
  %v626 = vpack.c.b16 %v594, %v590
  %v627 = vpack.c.b16 %v595, %v591
  %660 = vmatprep.subr.bf16.mxu0 %v597
  %661 = vmatpush1.bf16.msra.mxu0 %v596
  %662 = vmatprep.subr.bf16.mxu0 %v601
  %663 = vmatpush1.bf16.msra.mxu0 %v600
  %664 = vmatprep.subr.bf16.mxu0 %v605
  %665 = vmatpush1.bf16.msra.mxu0 %v604
  %666 = vmatprep.subr.bf16.mxu0 %v609
  %667 = vmatpush1.bf16.msra.mxu0 %v608
  %668 = vmatprep.subr.bf16.mxu0 %v613
  %669 = vmatpush1.bf16.msra.mxu0 %v612
  %670 = vmatprep.subr.bf16.mxu0 %v617
  %671 = vmatpush1.bf16.msra.mxu0 %v616
  %672 = vmatprep.subr.bf16.mxu0 %v621
  %673 = vmatpush1.bf16.msra.mxu0 %v620
  %674 = vmatprep.subr.bf16.mxu0 %v625
  %675 = vmatpush1.bf16.msra.mxu0 %v624
  %676 = vmatprep.subr.bf16.mxu0 0
  %677 = vmatpush1.bf16.msra.mxu0 0
  %678 = vmatprep.subr.bf16.mxu0 0
  %679 = vmatpush1.bf16.msra.mxu0 0
  %680 = vmatprep.subr.bf16.mxu0 0
  %681 = vmatpush1.bf16.msra.mxu0 0
  %682 = vmatprep.subr.bf16.mxu0 0
  %683 = vmatpush1.bf16.msra.mxu0 0
  %684 = vmatprep.subr.bf16.mxu0 0
  %685 = vmatpush1.bf16.msra.mxu0 0
  %686 = vmatprep.subr.bf16.mxu0 0
  %687 = vmatpush1.bf16.msra.mxu0 0
  %688 = vmatprep.subr.bf16.mxu0 0
  %689 = vmatpush1.bf16.msra.mxu0 0
  %690 = vmatprep.subr.bf16.mxu0 0
  %691 = vmatpush1.bf16.msra.mxu0 0
  %692 = vmatprep.mubr.bf16.mxu0 0
  %693 = vmatmul.mubr.bf16.gmra.mrb[0].mxu0 %v499
  %v694 = vpop.f32.mrb[0].mxu0
  %v695 = vadd.f32 0.0, %v694
  %v696 = vpop.f32.mrb[0].mxu0
  %v697 = vadd.f32 0.0, %v696
  %v698 = vpop.f32.mrb[0].mxu0
  %v699 = vpop.f32.mrb[0].mxu0
  %700 = vdwg.mxu0
  %701 = vmatprep.subr.bf16.mxu0 %v599
  %702 = vmatpush1.bf16.msra.mxu0 %v598
  %703 = vmatprep.subr.bf16.mxu0 %v603
  %704 = vmatpush1.bf16.msra.mxu0 %v602
  %705 = vmatprep.subr.bf16.mxu0 %v607
  %706 = vmatpush1.bf16.msra.mxu0 %v606
  %707 = vmatprep.subr.bf16.mxu0 %v611
  %708 = vmatpush1.bf16.msra.mxu0 %v610
  %709 = vmatprep.subr.bf16.mxu0 %v615
  %710 = vmatpush1.bf16.msra.mxu0 %v614
  %711 = vmatprep.subr.bf16.mxu0 %v619
  %712 = vmatpush1.bf16.msra.mxu0 %v618
  %713 = vmatprep.subr.bf16.mxu0 %v623
  %714 = vmatpush1.bf16.msra.mxu0 %v622
  %715 = vmatprep.subr.bf16.mxu0 %v627
  %716 = vmatpush1.bf16.msra.mxu0 %v626
  %717 = vmatprep.subr.bf16.mxu0 0
  %718 = vmatpush1.bf16.msra.mxu0 0
  %719 = vmatprep.subr.bf16.mxu0 0
  %720 = vmatpush1.bf16.msra.mxu0 0
  %721 = vmatprep.subr.bf16.mxu0 0
  %722 = vmatpush1.bf16.msra.mxu0 0
  %723 = vmatprep.subr.bf16.mxu0 0
  %724 = vmatpush1.bf16.msra.mxu0 0
  %725 = vmatprep.subr.bf16.mxu0 0
  %726 = vmatpush1.bf16.msra.mxu0 0
  %727 = vmatprep.subr.bf16.mxu0 0
  %728 = vmatpush1.bf16.msra.mxu0 0
  %729 = vmatprep.subr.bf16.mxu0 0
  %730 = vmatpush1.bf16.msra.mxu0 0
  %731 = vmatprep.subr.bf16.mxu0 0
  %732 = vmatpush1.bf16.msra.mxu0 0
  %733 = vmatprep.mubr.bf16.mxu0 0
  %734 = vmatmul.mubr.bf16.gmra.mrb[0].mxu0 %v499
  %v735 = vpop.f32.mrb[0].mxu0
  %v736 = vadd.f32 0.0, %v735
  %v737 = vpop.f32.mrb[0].mxu0
  %v738 = vadd.f32 0.0, %v737
  %v739 = vpop.f32.mrb[0].mxu0
  %v740 = vpop.f32.mrb[0].mxu0
  %741 = vdwg.mxu0
  %v742 = vadd.f32 %v495, %v695
  %v743 = vadd.f32 %v496, %v697
  %v744 = vadd.f32 %v497, %v736
  %v745 = vadd.f32 %v498, %v738
  %v746 = vxor.u32 %v742, 2147483648
  %v747 = vxor.u32 %v743, 2147483648
  %v748 = vxor.u32 %v744, 2147483648
  %v749 = vmul.f32 %v746, 1.442695
  %v750 = vpow.pop %v749
  %v751 = vmul.f32 %v747, 1.442695
  %v752 = vpow.pop %v751
  %v753 = vmul.f32 %v748, 1.442695
  %v754 = vpow.pop %v753
  %v755 = vadd.f32 %v750, 1.0
  %v756 = vadd.f32 %v752, 1.0
  %v757 = vadd.f32 %v754, 1.0
  %v758 = vrcp.pop %v755
  %v759 = vmul.f32 1.0, %v758
  %v760 = vrcp.pop %v756
  %v761 = vmul.f32 1.0, %v760
  %v762 = vrcp.pop %v757
  %v763 = vmul.f32 1.0, %v762
  %v764 = vtanh.pop %v745
  %v765 = vmul.f32 %v761, %v151
  %v766 = vmul.f32 %v759, %v764
  %v767 = vadd.f32 %v765, %v766
  %v768 = vtanh.pop %v767
  %v769 = vmul.f32 %v763, %v768
  %v770 = vsel %vm156, 1, 0
  %771 = vset.pattern.permute.xlu0 0
  %772 = vperm.xlu0 %771, %v770
  %v773 = vpop.permute.xlu0 %772
  %vm774 = vcmp.eq.s32.totalorder %v773, 1
  %v775 = vsel %vm774, %v769, %v149
  %v776 = vsel %vm774, %v767, %v151
  %v777 = vsel %vm774, %v769, 0.0
  %v778 = vpack.c.bf16 %v466, %v466
  %779 = vst [vmem:[%s5] sm:$0xf] %v778
  %v780 = vpack.c.bf16 %v777, %v777
  %s781 = scalar_lea.vmem %s62, 28
  %782 = vst [vmem:[%s781] sm:$0xf] %v780
  %s783 = sadd.s32 %s143, 1
  %v784 = vstv %s783
  %vm785 = vcmp.lt.s32.totalorder %v784, %v142
  %s786 = sadd.s32 %s145, 6
  %v787 = vstv %s786
  %vm788 = vcmp.lt.s32.totalorder %v787, %v142
  %s789 = scalar_lea.vmem %s0, 16
  %v790 = vld [vmem:[%s789] sm:$0xff]
  %v791 = vld [vmem:[%s789 + $0x8] sm:$0xff]
  %v792 = vunpack.c.l.bf16 %v790
  %v793 = vunpack.c.h.bf16 %v790
  %v794 = vunpack.c.l.bf16 %v791
  %v795 = vunpack.c.h.bf16 %v791
  %v796 = vadd.f32 %v792, %v167
  %v797 = vadd.f32 %v793, %v171
  %v798 = vadd.f32 %v794, %v175
  %v799 = vadd.f32 %v795, %v179
  %v800 = vpack.c.bf16 %v464, %v464
  %801 = vmatprep.subr.bf16.mxu0 %v286
  %802 = vmatpush1.bf16.msra.mxu0 %v285
  %803 = vmatprep.subr.bf16.mxu0 %v290
  %804 = vmatpush1.bf16.msra.mxu0 %v289
  %805 = vmatprep.subr.bf16.mxu0 %v294
  %806 = vmatpush1.bf16.msra.mxu0 %v293
  %807 = vmatprep.subr.bf16.mxu0 %v298
  %808 = vmatpush1.bf16.msra.mxu0 %v297
  %809 = vmatprep.subr.bf16.mxu0 %v302
  %810 = vmatpush1.bf16.msra.mxu0 %v301
  %811 = vmatprep.subr.bf16.mxu0 %v306
  %812 = vmatpush1.bf16.msra.mxu0 %v305
  %813 = vmatprep.subr.bf16.mxu0 %v310
  %814 = vmatpush1.bf16.msra.mxu0 %v309
  %815 = vmatprep.subr.bf16.mxu0 %v314
  %816 = vmatpush1.bf16.msra.mxu0 %v313
  %817 = vmatprep.subr.bf16.mxu0 0
  %818 = vmatpush1.bf16.msra.mxu0 0
  %819 = vmatprep.subr.bf16.mxu0 0
  %820 = vmatpush1.bf16.msra.mxu0 0
  %821 = vmatprep.subr.bf16.mxu0 0
  %822 = vmatpush1.bf16.msra.mxu0 0
  %823 = vmatprep.subr.bf16.mxu0 0
  %824 = vmatpush1.bf16.msra.mxu0 0
  %825 = vmatprep.subr.bf16.mxu0 0
  %826 = vmatpush1.bf16.msra.mxu0 0
  %827 = vmatprep.subr.bf16.mxu0 0
  %828 = vmatpush1.bf16.msra.mxu0 0
  %829 = vmatprep.subr.bf16.mxu0 0
  %830 = vmatpush1.bf16.msra.mxu0 0
  %831 = vmatprep.subr.bf16.mxu0 0
  %832 = vmatpush1.bf16.msra.mxu0 0
  %833 = vmatprep.mubr.bf16.mxu0 0
  %834 = vmatmul.mubr.bf16.gmra.mrb[0].mxu0 %v800
  %v835 = vpop.f32.mrb[0].mxu0
  %v836 = vadd.f32 0.0, %v835
  %v837 = vpop.f32.mrb[0].mxu0
  %v838 = vadd.f32 0.0, %v837
  %v839 = vpop.f32.mrb[0].mxu0
  %v840 = vpop.f32.mrb[0].mxu0
  %841 = vdwg.mxu0
  %842 = vmatprep.subr.bf16.mxu0 %v288
  %843 = vmatpush1.bf16.msra.mxu0 %v287
  %844 = vmatprep.subr.bf16.mxu0 %v292
  %845 = vmatpush1.bf16.msra.mxu0 %v291
  %846 = vmatprep.subr.bf16.mxu0 %v296
  %847 = vmatpush1.bf16.msra.mxu0 %v295
  %848 = vmatprep.subr.bf16.mxu0 %v300
  %849 = vmatpush1.bf16.msra.mxu0 %v299
  %850 = vmatprep.subr.bf16.mxu0 %v304
  %851 = vmatpush1.bf16.msra.mxu0 %v303
  %852 = vmatprep.subr.bf16.mxu0 %v308
  %853 = vmatpush1.bf16.msra.mxu0 %v307
  %854 = vmatprep.subr.bf16.mxu0 %v312
  %855 = vmatpush1.bf16.msra.mxu0 %v311
  %856 = vmatprep.subr.bf16.mxu0 %v316
  %857 = vmatpush1.bf16.msra.mxu0 %v315
  %858 = vmatprep.subr.bf16.mxu0 0
  %859 = vmatpush1.bf16.msra.mxu0 0
  %860 = vmatprep.subr.bf16.mxu0 0
  %861 = vmatpush1.bf16.msra.mxu0 0
  %862 = vmatprep.subr.bf16.mxu0 0
  %863 = vmatpush1.bf16.msra.mxu0 0
  %864 = vmatprep.subr.bf16.mxu0 0
  %865 = vmatpush1.bf16.msra.mxu0 0
  %866 = vmatprep.subr.bf16.mxu0 0
  %867 = vmatpush1.bf16.msra.mxu0 0
  %868 = vmatprep.subr.bf16.mxu0 0
  %869 = vmatpush1.bf16.msra.mxu0 0
  %870 = vmatprep.subr.bf16.mxu0 0
  %871 = vmatpush1.bf16.msra.mxu0 0
  %872 = vmatprep.subr.bf16.mxu0 0
  %873 = vmatpush1.bf16.msra.mxu0 0
  %874 = vmatprep.mubr.bf16.mxu0 0
  %875 = vmatmul.mubr.bf16.gmra.mrb[0].mxu0 %v800
  %v876 = vpop.f32.mrb[0].mxu0
  %v877 = vadd.f32 0.0, %v876
  %v878 = vpop.f32.mrb[0].mxu0
  %v879 = vadd.f32 0.0, %v878
  %v880 = vpop.f32.mrb[0].mxu0
  %v881 = vpop.f32.mrb[0].mxu0
  %882 = vdwg.mxu0
  %v883 = vadd.f32 %v796, %v836
  %v884 = vadd.f32 %v797, %v838
  %v885 = vadd.f32 %v798, %v877
  %v886 = vadd.f32 %v799, %v879
  %v887 = vxor.u32 %v883, 2147483648
  %v888 = vxor.u32 %v884, 2147483648
  %v889 = vxor.u32 %v885, 2147483648
  %v890 = vmul.f32 %v887, 1.442695
  %v891 = vpow.pop %v890
  %v892 = vmul.f32 %v888, 1.442695
  %v893 = vpow.pop %v892
  %v894 = vmul.f32 %v889, 1.442695
  %v895 = vpow.pop %v894
  %v896 = vadd.f32 %v891, 1.0
  %v897 = vadd.f32 %v893, 1.0
  %v898 = vadd.f32 %v895, 1.0
  %v899 = vrcp.pop %v896
  %v900 = vmul.f32 1.0, %v899
  %v901 = vrcp.pop %v897
  %v902 = vmul.f32 1.0, %v901
  %v903 = vrcp.pop %v898
  %v904 = vmul.f32 1.0, %v903
  %v905 = vtanh.pop %v886
  %v906 = vmul.f32 %v902, %v465
  %v907 = vmul.f32 %v900, %v905
  %v908 = vadd.f32 %v906, %v907
  %v909 = vtanh.pop %v908
  %v910 = vmul.f32 %v904, %v909
  %v911 = vsel %vm785, 1, 0
  %912 = vset.pattern.permute.xlu0 0
  %913 = vperm.xlu0 %912, %v911
  %v914 = vpop.permute.xlu0 %913
  %vm915 = vcmp.eq.s32.totalorder %v914, 1
  %v916 = vsel %vm915, %v910, %v464
  %v917 = vsel %vm915, %v908, %v465
  %v918 = vsel %vm915, %v910, 0.0
  %s919 = scalar_lea.vmem %s54, 96
  %v920 = vld [vmem:[%s919] sm:$0xff]
  %v921 = vld [vmem:[%s919 + $0x8] sm:$0xff]
  %v922 = vunpack.c.l.bf16 %v920
  %v923 = vunpack.c.h.bf16 %v920
  %v924 = vunpack.c.l.bf16 %v921
  %v925 = vunpack.c.h.bf16 %v921
  %v926 = vadd.f32 %v922, %v478
  %v927 = vadd.f32 %v923, %v482
  %v928 = vadd.f32 %v924, %v486
  %v929 = vadd.f32 %v925, %v490
  %v930 = vpack.c.bf16 %v775, %v775
  %931 = vmatprep.subr.bf16.mxu0 %v597
  %932 = vmatpush1.bf16.msra.mxu0 %v596
  %933 = vmatprep.subr.bf16.mxu0 %v601
  %934 = vmatpush1.bf16.msra.mxu0 %v600
  %935 = vmatprep.subr.bf16.mxu0 %v605
  %936 = vmatpush1.bf16.msra.mxu0 %v604
  %937 = vmatprep.subr.bf16.mxu0 %v609
  %938 = vmatpush1.bf16.msra.mxu0 %v608
  %939 = vmatprep.subr.bf16.mxu0 %v613
  %940 = vmatpush1.bf16.msra.mxu0 %v612
  %941 = vmatprep.subr.bf16.mxu0 %v617
  %942 = vmatpush1.bf16.msra.mxu0 %v616
  %943 = vmatprep.subr.bf16.mxu0 %v621
  %944 = vmatpush1.bf16.msra.mxu0 %v620
  %945 = vmatprep.subr.bf16.mxu0 %v625
  %946 = vmatpush1.bf16.msra.mxu0 %v624
  %947 = vmatprep.subr.bf16.mxu0 0
  %948 = vmatpush1.bf16.msra.mxu0 0
  %949 = vmatprep.subr.bf16.mxu0 0
  %950 = vmatpush1.bf16.msra.mxu0 0
  %951 = vmatprep.subr.bf16.mxu0 0
  %952 = vmatpush1.bf16.msra.mxu0 0
  %953 = vmatprep.subr.bf16.mxu0 0
  %954 = vmatpush1.bf16.msra.mxu0 0
  %955 = vmatprep.subr.bf16.mxu0 0
  %956 = vmatpush1.bf16.msra.mxu0 0
  %957 = vmatprep.subr.bf16.mxu0 0
  %958 = vmatpush1.bf16.msra.mxu0 0
  %959 = vmatprep.subr.bf16.mxu0 0
  %960 = vmatpush1.bf16.msra.mxu0 0
  %961 = vmatprep.subr.bf16.mxu0 0
  %962 = vmatpush1.bf16.msra.mxu0 0
  %963 = vmatprep.mubr.bf16.mxu0 0
  %964 = vmatmul.mubr.bf16.gmra.mrb[0].mxu0 %v930
  %v965 = vpop.f32.mrb[0].mxu0
  %v966 = vadd.f32 0.0, %v965
  %v967 = vpop.f32.mrb[0].mxu0
  %v968 = vadd.f32 0.0, %v967
  %v969 = vpop.f32.mrb[0].mxu0
  %v970 = vpop.f32.mrb[0].mxu0
  %971 = vdwg.mxu0
  %972 = vmatprep.subr.bf16.mxu0 %v599
  %973 = vmatpush1.bf16.msra.mxu0 %v598
  %974 = vmatprep.subr.bf16.mxu0 %v603
  %975 = vmatpush1.bf16.msra.mxu0 %v602
  %976 = vmatprep.subr.bf16.mxu0 %v607
  %977 = vmatpush1.bf16.msra.mxu0 %v606
  %978 = vmatprep.subr.bf16.mxu0 %v611
  %979 = vmatpush1.bf16.msra.mxu0 %v610
  %980 = vmatprep.subr.bf16.mxu0 %v615
  %981 = vmatpush1.bf16.msra.mxu0 %v614
  %982 = vmatprep.subr.bf16.mxu0 %v619
  %983 = vmatpush1.bf16.msra.mxu0 %v618
  %984 = vmatprep.subr.bf16.mxu0 %v623
  %985 = vmatpush1.bf16.msra.mxu0 %v622
  %986 = vmatprep.subr.bf16.mxu0 %v627
  %987 = vmatpush1.bf16.msra.mxu0 %v626
  %988 = vmatprep.subr.bf16.mxu0 0
  %989 = vmatpush1.bf16.msra.mxu0 0
  %990 = vmatprep.subr.bf16.mxu0 0
  %991 = vmatpush1.bf16.msra.mxu0 0
  %992 = vmatprep.subr.bf16.mxu0 0
  %993 = vmatpush1.bf16.msra.mxu0 0
  %994 = vmatprep.subr.bf16.mxu0 0
  %995 = vmatpush1.bf16.msra.mxu0 0
  %996 = vmatprep.subr.bf16.mxu0 0
  %997 = vmatpush1.bf16.msra.mxu0 0
  %998 = vmatprep.subr.bf16.mxu0 0
  %999 = vmatpush1.bf16.msra.mxu0 0
  %1000 = vmatprep.subr.bf16.mxu0 0
  %1001 = vmatpush1.bf16.msra.mxu0 0
  %1002 = vmatprep.subr.bf16.mxu0 0
  %1003 = vmatpush1.bf16.msra.mxu0 0
  %1004 = vmatprep.mubr.bf16.mxu0 0
  %1005 = vmatmul.mubr.bf16.gmra.mrb[0].mxu0 %v930
  %v1006 = vpop.f32.mrb[0].mxu0
  %v1007 = vadd.f32 0.0, %v1006
  %v1008 = vpop.f32.mrb[0].mxu0
  %v1009 = vadd.f32 0.0, %v1008
  %v1010 = vpop.f32.mrb[0].mxu0
  %v1011 = vpop.f32.mrb[0].mxu0
  %1012 = vdwg.mxu0
  %v1013 = vadd.f32 %v926, %v966
  %v1014 = vadd.f32 %v927, %v968
  %v1015 = vadd.f32 %v928, %v1007
  %v1016 = vadd.f32 %v929, %v1009
  %v1017 = vxor.u32 %v1013, 2147483648
  %v1018 = vxor.u32 %v1014, 2147483648
  %v1019 = vxor.u32 %v1015, 2147483648
  %v1020 = vmul.f32 %v1017, 1.442695
  %v1021 = vpow.pop %v1020
  %v1022 = vmul.f32 %v1018, 1.442695
  %v1023 = vpow.pop %v1022
  %v1024 = vmul.f32 %v1019, 1.442695
  %v1025 = vpow.pop %v1024
  %v1026 = vadd.f32 %v1021, 1.0
  %v1027 = vadd.f32 %v1023, 1.0
  %v1028 = vadd.f32 %v1025, 1.0
  %v1029 = vrcp.pop %v1026
  %v1030 = vmul.f32 1.0, %v1029
  %v1031 = vrcp.pop %v1027
  %v1032 = vmul.f32 1.0, %v1031
  %v1033 = vrcp.pop %v1028
  %v1034 = vmul.f32 1.0, %v1033
  %v1035 = vtanh.pop %v1016
  %v1036 = vmul.f32 %v1032, %v776
  %v1037 = vmul.f32 %v1030, %v1035
  %v1038 = vadd.f32 %v1036, %v1037
  %v1039 = vtanh.pop %v1038
  %v1040 = vmul.f32 %v1034, %v1039
  %v1041 = vsel %vm788, 1, 0
  %1042 = vset.pattern.permute.xlu0 0
  %1043 = vperm.xlu0 %1042, %v1041
  %v1044 = vpop.permute.xlu0 %1043
  %vm1045 = vcmp.eq.s32.totalorder %v1044, 1
  %v1046 = vsel %vm1045, %v1040, %v775
  %v1047 = vsel %vm1045, %v1038, %v776
  %v1048 = vsel %vm1045, %v1040, 0.0
  %v1049 = vpack.c.bf16 %v918, %v918
  %s1050 = scalar_lea.vmem %s5, 4
  %1051 = vst [vmem:[%s1050] sm:$0xf] %v1049
  %v1052 = vpack.c.bf16 %v1048, %v1048
  %s1053 = scalar_lea.vmem %s62, 24
  %1054 = vst [vmem:[%s1053] sm:$0xf] %v1052
  %s1055 = sadd.s32 %s143, 2
  %v1056 = vstv %s1055
  %vm1057 = vcmp.lt.s32.totalorder %v1056, %v142
  %s1058 = sadd.s32 %s145, 5
  %v1059 = vstv %s1058
  %vm1060 = vcmp.lt.s32.totalorder %v1059, %v142
  %s1061 = scalar_lea.vmem %s0, 32
  %v1062 = vld [vmem:[%s1061] sm:$0xff]
  %v1063 = vld [vmem:[%s1061 + $0x8] sm:$0xff]
  %v1064 = vunpack.c.l.bf16 %v1062
  %v1065 = vunpack.c.h.bf16 %v1062
  %v1066 = vunpack.c.l.bf16 %v1063
  %v1067 = vunpack.c.h.bf16 %v1063
  %v1068 = vadd.f32 %v1064, %v167
  %v1069 = vadd.f32 %v1065, %v171
  %v1070 = vadd.f32 %v1066, %v175
  %v1071 = vadd.f32 %v1067, %v179
  %v1072 = vpack.c.bf16 %v916, %v916
  %1073 = vmatprep.subr.bf16.mxu0 %v286
  %1074 = vmatpush1.bf16.msra.mxu0 %v285
  %1075 = vmatprep.subr.bf16.mxu0 %v290
  %1076 = vmatpush1.bf16.msra.mxu0 %v289
  %1077 = vmatprep.subr.bf16.mxu0 %v294
  %1078 = vmatpush1.bf16.msra.mxu0 %v293
  %1079 = vmatprep.subr.bf16.mxu0 %v298
  %1080 = vmatpush1.bf16.msra.mxu0 %v297
  %1081 = vmatprep.subr.bf16.mxu0 %v302
  %1082 = vmatpush1.bf16.msra.mxu0 %v301
  %1083 = vmatprep.subr.bf16.mxu0 %v306
  %1084 = vmatpush1.bf16.msra.mxu0 %v305
  %1085 = vmatprep.subr.bf16.mxu0 %v310
  %1086 = vmatpush1.bf16.msra.mxu0 %v309
  %1087 = vmatprep.subr.bf16.mxu0 %v314
  %1088 = vmatpush1.bf16.msra.mxu0 %v313
  %1089 = vmatprep.subr.bf16.mxu0 0
  %1090 = vmatpush1.bf16.msra.mxu0 0
  %1091 = vmatprep.subr.bf16.mxu0 0
  %1092 = vmatpush1.bf16.msra.mxu0 0
  %1093 = vmatprep.subr.bf16.mxu0 0
  %1094 = vmatpush1.bf16.msra.mxu0 0
  %1095 = vmatprep.subr.bf16.mxu0 0
  %1096 = vmatpush1.bf16.msra.mxu0 0
  %1097 = vmatprep.subr.bf16.mxu0 0
  %1098 = vmatpush1.bf16.msra.mxu0 0
  %1099 = vmatprep.subr.bf16.mxu0 0
  %1100 = vmatpush1.bf16.msra.mxu0 0
  %1101 = vmatprep.subr.bf16.mxu0 0
  %1102 = vmatpush1.bf16.msra.mxu0 0
  %1103 = vmatprep.subr.bf16.mxu0 0
  %1104 = vmatpush1.bf16.msra.mxu0 0
  %1105 = vmatprep.mubr.bf16.mxu0 0
  %1106 = vmatmul.mubr.bf16.gmra.mrb[0].mxu0 %v1072
  %v1107 = vpop.f32.mrb[0].mxu0
  %v1108 = vadd.f32 0.0, %v1107
  %v1109 = vpop.f32.mrb[0].mxu0
  %v1110 = vadd.f32 0.0, %v1109
  %v1111 = vpop.f32.mrb[0].mxu0
  %v1112 = vpop.f32.mrb[0].mxu0
  %1113 = vdwg.mxu0
  %1114 = vmatprep.subr.bf16.mxu0 %v288
  %1115 = vmatpush1.bf16.msra.mxu0 %v287
  %1116 = vmatprep.subr.bf16.mxu0 %v292
  %1117 = vmatpush1.bf16.msra.mxu0 %v291
  %1118 = vmatprep.subr.bf16.mxu0 %v296
  %1119 = vmatpush1.bf16.msra.mxu0 %v295
  %1120 = vmatprep.subr.bf16.mxu0 %v300
  %1121 = vmatpush1.bf16.msra.mxu0 %v299
  %1122 = vmatprep.subr.bf16.mxu0 %v304
  %1123 = vmatpush1.bf16.msra.mxu0 %v303
  %1124 = vmatprep.subr.bf16.mxu0 %v308
  %1125 = vmatpush1.bf16.msra.mxu0 %v307
  %1126 = vmatprep.subr.bf16.mxu0 %v312
  %1127 = vmatpush1.bf16.msra.mxu0 %v311
  %1128 = vmatprep.subr.bf16.mxu0 %v316
  %1129 = vmatpush1.bf16.msra.mxu0 %v315
  %1130 = vmatprep.subr.bf16.mxu0 0
  %1131 = vmatpush1.bf16.msra.mxu0 0
  %1132 = vmatprep.subr.bf16.mxu0 0
  %1133 = vmatpush1.bf16.msra.mxu0 0
  %1134 = vmatprep.subr.bf16.mxu0 0
  %1135 = vmatpush1.bf16.msra.mxu0 0
  %1136 = vmatprep.subr.bf16.mxu0 0
  %1137 = vmatpush1.bf16.msra.mxu0 0
  %1138 = vmatprep.subr.bf16.mxu0 0
  %1139 = vmatpush1.bf16.msra.mxu0 0
  %1140 = vmatprep.subr.bf16.mxu0 0
  %1141 = vmatpush1.bf16.msra.mxu0 0
  %1142 = vmatprep.subr.bf16.mxu0 0
  %1143 = vmatpush1.bf16.msra.mxu0 0
  %1144 = vmatprep.subr.bf16.mxu0 0
  %1145 = vmatpush1.bf16.msra.mxu0 0
  %1146 = vmatprep.mubr.bf16.mxu0 0
  %1147 = vmatmul.mubr.bf16.gmra.mrb[0].mxu0 %v1072
  %v1148 = vpop.f32.mrb[0].mxu0
  %v1149 = vadd.f32 0.0, %v1148
  %v1150 = vpop.f32.mrb[0].mxu0
  %v1151 = vadd.f32 0.0, %v1150
  %v1152 = vpop.f32.mrb[0].mxu0
  %v1153 = vpop.f32.mrb[0].mxu0
  %1154 = vdwg.mxu0
  %v1155 = vadd.f32 %v1068, %v1108
  %v1156 = vadd.f32 %v1069, %v1110
  %v1157 = vadd.f32 %v1070, %v1149
  %v1158 = vadd.f32 %v1071, %v1151
  %v1159 = vxor.u32 %v1155, 2147483648
  %v1160 = vxor.u32 %v1156, 2147483648
  %v1161 = vxor.u32 %v1157, 2147483648
  %v1162 = vmul.f32 %v1159, 1.442695
  %v1163 = vpow.pop %v1162
  %v1164 = vmul.f32 %v1160, 1.442695
  %v1165 = vpow.pop %v1164
  %v1166 = vmul.f32 %v1161, 1.442695
  %v1167 = vpow.pop %v1166
  %v1168 = vadd.f32 %v1163, 1.0
  %v1169 = vadd.f32 %v1165, 1.0
  %v1170 = vadd.f32 %v1167, 1.0
  %v1171 = vrcp.pop %v1168
  %v1172 = vmul.f32 1.0, %v1171
  %v1173 = vrcp.pop %v1169
  %v1174 = vmul.f32 1.0, %v1173
  %v1175 = vrcp.pop %v1170
  %v1176 = vmul.f32 1.0, %v1175
  %v1177 = vtanh.pop %v1158
  %v1178 = vmul.f32 %v1174, %v917
  %v1179 = vmul.f32 %v1172, %v1177
  %v1180 = vadd.f32 %v1178, %v1179
  %v1181 = vtanh.pop %v1180
  %v1182 = vmul.f32 %v1176, %v1181
  %v1183 = vsel %vm1057, 1, 0
  %1184 = vset.pattern.permute.xlu0 0
  %1185 = vperm.xlu0 %1184, %v1183
  %v1186 = vpop.permute.xlu0 %1185
  %vm1187 = vcmp.eq.s32.totalorder %v1186, 1
  %v1188 = vsel %vm1187, %v1182, %v916
  %v1189 = vsel %vm1187, %v1180, %v917
  %v1190 = vsel %vm1187, %v1182, 0.0
  %s1191 = scalar_lea.vmem %s54, 80
  %v1192 = vld [vmem:[%s1191] sm:$0xff]
  %v1193 = vld [vmem:[%s1191 + $0x8] sm:$0xff]
  %v1194 = vunpack.c.l.bf16 %v1192
  %v1195 = vunpack.c.h.bf16 %v1192
  %v1196 = vunpack.c.l.bf16 %v1193
  %v1197 = vunpack.c.h.bf16 %v1193
  %v1198 = vadd.f32 %v1194, %v478
  %v1199 = vadd.f32 %v1195, %v482
  %v1200 = vadd.f32 %v1196, %v486
  %v1201 = vadd.f32 %v1197, %v490
  %v1202 = vpack.c.bf16 %v1046, %v1046
  %1203 = vmatprep.subr.bf16.mxu0 %v597
  %1204 = vmatpush1.bf16.msra.mxu0 %v596
  %1205 = vmatprep.subr.bf16.mxu0 %v601
  %1206 = vmatpush1.bf16.msra.mxu0 %v600
  %1207 = vmatprep.subr.bf16.mxu0 %v605
  %1208 = vmatpush1.bf16.msra.mxu0 %v604
  %1209 = vmatprep.subr.bf16.mxu0 %v609
  %1210 = vmatpush1.bf16.msra.mxu0 %v608
  %1211 = vmatprep.subr.bf16.mxu0 %v613
  %1212 = vmatpush1.bf16.msra.mxu0 %v612
  %1213 = vmatprep.subr.bf16.mxu0 %v617
  %1214 = vmatpush1.bf16.msra.mxu0 %v616
  %1215 = vmatprep.subr.bf16.mxu0 %v621
  %1216 = vmatpush1.bf16.msra.mxu0 %v620
  %1217 = vmatprep.subr.bf16.mxu0 %v625
  %1218 = vmatpush1.bf16.msra.mxu0 %v624
  %1219 = vmatprep.subr.bf16.mxu0 0
  %1220 = vmatpush1.bf16.msra.mxu0 0
  %1221 = vmatprep.subr.bf16.mxu0 0
  %1222 = vmatpush1.bf16.msra.mxu0 0
  %1223 = vmatprep.subr.bf16.mxu0 0
  %1224 = vmatpush1.bf16.msra.mxu0 0
  %1225 = vmatprep.subr.bf16.mxu0 0
  %1226 = vmatpush1.bf16.msra.mxu0 0
  %1227 = vmatprep.subr.bf16.mxu0 0
  %1228 = vmatpush1.bf16.msra.mxu0 0
  %1229 = vmatprep.subr.bf16.mxu0 0
  %1230 = vmatpush1.bf16.msra.mxu0 0
  %1231 = vmatprep.subr.bf16.mxu0 0
  %1232 = vmatpush1.bf16.msra.mxu0 0
  %1233 = vmatprep.subr.bf16.mxu0 0
  %1234 = vmatpush1.bf16.msra.mxu0 0
  %1235 = vmatprep.mubr.bf16.mxu0 0
  %1236 = vmatmul.mubr.bf16.gmra.mrb[0].mxu0 %v1202
  %v1237 = vpop.f32.mrb[0].mxu0
  %v1238 = vadd.f32 0.0, %v1237
  %v1239 = vpop.f32.mrb[0].mxu0
  %v1240 = vadd.f32 0.0, %v1239
  %v1241 = vpop.f32.mrb[0].mxu0
  %v1242 = vpop.f32.mrb[0].mxu0
  %1243 = vdwg.mxu0
  %1244 = vmatprep.subr.bf16.mxu0 %v599
  %1245 = vmatpush1.bf16.msra.mxu0 %v598
  %1246 = vmatprep.subr.bf16.mxu0 %v603
  %1247 = vmatpush1.bf16.msra.mxu0 %v602
  %1248 = vmatprep.subr.bf16.mxu0 %v607
  %1249 = vmatpush1.bf16.msra.mxu0 %v606
  %1250 = vmatprep.subr.bf16.mxu0 %v611
  %1251 = vmatpush1.bf16.msra.mxu0 %v610
  %1252 = vmatprep.subr.bf16.mxu0 %v615
  %1253 = vmatpush1.bf16.msra.mxu0 %v614
  %1254 = vmatprep.subr.bf16.mxu0 %v619
  %1255 = vmatpush1.bf16.msra.mxu0 %v618
  %1256 = vmatprep.subr.bf16.mxu0 %v623
  %1257 = vmatpush1.bf16.msra.mxu0 %v622
  %1258 = vmatprep.subr.bf16.mxu0 %v627
  %1259 = vmatpush1.bf16.msra.mxu0 %v626
  %1260 = vmatprep.subr.bf16.mxu0 0
  %1261 = vmatpush1.bf16.msra.mxu0 0
  %1262 = vmatprep.subr.bf16.mxu0 0
  %1263 = vmatpush1.bf16.msra.mxu0 0
  %1264 = vmatprep.subr.bf16.mxu0 0
  %1265 = vmatpush1.bf16.msra.mxu0 0
  %1266 = vmatprep.subr.bf16.mxu0 0
  %1267 = vmatpush1.bf16.msra.mxu0 0
  %1268 = vmatprep.subr.bf16.mxu0 0
  %1269 = vmatpush1.bf16.msra.mxu0 0
  %1270 = vmatprep.subr.bf16.mxu0 0
  %1271 = vmatpush1.bf16.msra.mxu0 0
  %1272 = vmatprep.subr.bf16.mxu0 0
  %1273 = vmatpush1.bf16.msra.mxu0 0
  %1274 = vmatprep.subr.bf16.mxu0 0
  %1275 = vmatpush1.bf16.msra.mxu0 0
  %1276 = vmatprep.mubr.bf16.mxu0 0
  %1277 = vmatmul.mubr.bf16.gmra.mrb[0].mxu0 %v1202
  %v1278 = vpop.f32.mrb[0].mxu0
  %v1279 = vadd.f32 0.0, %v1278
  %v1280 = vpop.f32.mrb[0].mxu0
  %v1281 = vadd.f32 0.0, %v1280
  %v1282 = vpop.f32.mrb[0].mxu0
  %v1283 = vpop.f32.mrb[0].mxu0
  %1284 = vdwg.mxu0
  %v1285 = vadd.f32 %v1198, %v1238
  %v1286 = vadd.f32 %v1199, %v1240
  %v1287 = vadd.f32 %v1200, %v1279
  %v1288 = vadd.f32 %v1201, %v1281
  %v1289 = vxor.u32 %v1285, 2147483648
  %v1290 = vxor.u32 %v1286, 2147483648
  %v1291 = vxor.u32 %v1287, 2147483648
  %v1292 = vmul.f32 %v1289, 1.442695
  %v1293 = vpow.pop %v1292
  %v1294 = vmul.f32 %v1290, 1.442695
  %v1295 = vpow.pop %v1294
  %v1296 = vmul.f32 %v1291, 1.442695
  %v1297 = vpow.pop %v1296
  %v1298 = vadd.f32 %v1293, 1.0
  %v1299 = vadd.f32 %v1295, 1.0
  %v1300 = vadd.f32 %v1297, 1.0
  %v1301 = vrcp.pop %v1298
  %v1302 = vmul.f32 1.0, %v1301
  %v1303 = vrcp.pop %v1299
  %v1304 = vmul.f32 1.0, %v1303
  %v1305 = vrcp.pop %v1300
  %v1306 = vmul.f32 1.0, %v1305
  %v1307 = vtanh.pop %v1288
  %v1308 = vmul.f32 %v1304, %v1047
  %v1309 = vmul.f32 %v1302, %v1307
  %v1310 = vadd.f32 %v1308, %v1309
  %v1311 = vtanh.pop %v1310
  %v1312 = vmul.f32 %v1306, %v1311
  %v1313 = vsel %vm1060, 1, 0
  %1314 = vset.pattern.permute.xlu0 0
  %1315 = vperm.xlu0 %1314, %v1313
  %v1316 = vpop.permute.xlu0 %1315
  %vm1317 = vcmp.eq.s32.totalorder %v1316, 1
  %v1318 = vsel %vm1317, %v1312, %v1046
  %v1319 = vsel %vm1317, %v1310, %v1047
  %v1320 = vsel %vm1317, %v1312, 0.0
  %v1321 = vpack.c.bf16 %v1190, %v1190
  %s1322 = scalar_lea.vmem %s5, 8
  %1323 = vst [vmem:[%s1322] sm:$0xf] %v1321
  %v1324 = vpack.c.bf16 %v1320, %v1320
  %s1325 = scalar_lea.vmem %s62, 20
  %1326 = vst [vmem:[%s1325] sm:$0xf] %v1324
  %s1327 = sadd.s32 %s143, 3
  %v1328 = vstv %s1327
  %vm1329 = vcmp.lt.s32.totalorder %v1328, %v142
  %s1330 = sadd.s32 %s145, 4
  %v1331 = vstv %s1330
  %vm1332 = vcmp.lt.s32.totalorder %v1331, %v142
  %s1333 = scalar_lea.vmem %s0, 48
  %v1334 = vld [vmem:[%s1333] sm:$0xff]
  %v1335 = vld [vmem:[%s1333 + $0x8] sm:$0xff]
  %v1336 = vunpack.c.l.bf16 %v1334
  %v1337 = vunpack.c.h.bf16 %v1334
  %v1338 = vunpack.c.l.bf16 %v1335
  %v1339 = vunpack.c.h.bf16 %v1335
  %v1340 = vadd.f32 %v1336, %v167
  %v1341 = vadd.f32 %v1337, %v171
  %v1342 = vadd.f32 %v1338, %v175
  %v1343 = vadd.f32 %v1339, %v179
  %v1344 = vpack.c.bf16 %v1188, %v1188
  %1345 = vmatprep.subr.bf16.mxu0 %v286
  %1346 = vmatpush1.bf16.msra.mxu0 %v285
  %1347 = vmatprep.subr.bf16.mxu0 %v290
  %1348 = vmatpush1.bf16.msra.mxu0 %v289
  %1349 = vmatprep.subr.bf16.mxu0 %v294
  %1350 = vmatpush1.bf16.msra.mxu0 %v293
  %1351 = vmatprep.subr.bf16.mxu0 %v298
  %1352 = vmatpush1.bf16.msra.mxu0 %v297
  %1353 = vmatprep.subr.bf16.mxu0 %v302
  %1354 = vmatpush1.bf16.msra.mxu0 %v301
  %1355 = vmatprep.subr.bf16.mxu0 %v306
  %1356 = vmatpush1.bf16.msra.mxu0 %v305
  %1357 = vmatprep.subr.bf16.mxu0 %v310
  %1358 = vmatpush1.bf16.msra.mxu0 %v309
  %1359 = vmatprep.subr.bf16.mxu0 %v314
  %1360 = vmatpush1.bf16.msra.mxu0 %v313
  %1361 = vmatprep.subr.bf16.mxu0 0
  %1362 = vmatpush1.bf16.msra.mxu0 0
  %1363 = vmatprep.subr.bf16.mxu0 0
  %1364 = vmatpush1.bf16.msra.mxu0 0
  %1365 = vmatprep.subr.bf16.mxu0 0
  %1366 = vmatpush1.bf16.msra.mxu0 0
  %1367 = vmatprep.subr.bf16.mxu0 0
  %1368 = vmatpush1.bf16.msra.mxu0 0
  %1369 = vmatprep.subr.bf16.mxu0 0
  %1370 = vmatpush1.bf16.msra.mxu0 0
  %1371 = vmatprep.subr.bf16.mxu0 0
  %1372 = vmatpush1.bf16.msra.mxu0 0
  %1373 = vmatprep.subr.bf16.mxu0 0
  %1374 = vmatpush1.bf16.msra.mxu0 0
  %1375 = vmatprep.subr.bf16.mxu0 0
  %1376 = vmatpush1.bf16.msra.mxu0 0
  %1377 = vmatprep.mubr.bf16.mxu0 0
  %1378 = vmatmul.mubr.bf16.gmra.mrb[0].mxu0 %v1344
  %v1379 = vpop.f32.mrb[0].mxu0
  %v1380 = vadd.f32 0.0, %v1379
  %v1381 = vpop.f32.mrb[0].mxu0
  %v1382 = vadd.f32 0.0, %v1381
  %v1383 = vpop.f32.mrb[0].mxu0
  %v1384 = vpop.f32.mrb[0].mxu0
  %1385 = vdwg.mxu0
  %1386 = vmatprep.subr.bf16.mxu0 %v288
  %1387 = vmatpush1.bf16.msra.mxu0 %v287
  %1388 = vmatprep.subr.bf16.mxu0 %v292
  %1389 = vmatpush1.bf16.msra.mxu0 %v291
  %1390 = vmatprep.subr.bf16.mxu0 %v296
  %1391 = vmatpush1.bf16.msra.mxu0 %v295
  %1392 = vmatprep.subr.bf16.mxu0 %v300
  %1393 = vmatpush1.bf16.msra.mxu0 %v299
  %1394 = vmatprep.subr.bf16.mxu0 %v304
  %1395 = vmatpush1.bf16.msra.mxu0 %v303
  %1396 = vmatprep.subr.bf16.mxu0 %v308
  %1397 = vmatpush1.bf16.msra.mxu0 %v307
  %1398 = vmatprep.subr.bf16.mxu0 %v312
  %1399 = vmatpush1.bf16.msra.mxu0 %v311
  %1400 = vmatprep.subr.bf16.mxu0 %v316
  %1401 = vmatpush1.bf16.msra.mxu0 %v315
  %1402 = vmatprep.subr.bf16.mxu0 0
  %1403 = vmatpush1.bf16.msra.mxu0 0
  %1404 = vmatprep.subr.bf16.mxu0 0
  %1405 = vmatpush1.bf16.msra.mxu0 0
  %1406 = vmatprep.subr.bf16.mxu0 0
  %1407 = vmatpush1.bf16.msra.mxu0 0
  %1408 = vmatprep.subr.bf16.mxu0 0
  %1409 = vmatpush1.bf16.msra.mxu0 0
  %1410 = vmatprep.subr.bf16.mxu0 0
  %1411 = vmatpush1.bf16.msra.mxu0 0
  %1412 = vmatprep.subr.bf16.mxu0 0
  %1413 = vmatpush1.bf16.msra.mxu0 0
  %1414 = vmatprep.subr.bf16.mxu0 0
  %1415 = vmatpush1.bf16.msra.mxu0 0
  %1416 = vmatprep.subr.bf16.mxu0 0
  %1417 = vmatpush1.bf16.msra.mxu0 0
  %1418 = vmatprep.mubr.bf16.mxu0 0
  %1419 = vmatmul.mubr.bf16.gmra.mrb[0].mxu0 %v1344
  %v1420 = vpop.f32.mrb[0].mxu0
  %v1421 = vadd.f32 0.0, %v1420
  %v1422 = vpop.f32.mrb[0].mxu0
  %v1423 = vadd.f32 0.0, %v1422
  %v1424 = vpop.f32.mrb[0].mxu0
  %v1425 = vpop.f32.mrb[0].mxu0
  %1426 = vdwg.mxu0
  %v1427 = vadd.f32 %v1340, %v1380
  %v1428 = vadd.f32 %v1341, %v1382
  %v1429 = vadd.f32 %v1342, %v1421
  %v1430 = vadd.f32 %v1343, %v1423
  %v1431 = vxor.u32 %v1427, 2147483648
  %v1432 = vxor.u32 %v1428, 2147483648
  %v1433 = vxor.u32 %v1429, 2147483648
  %v1434 = vmul.f32 %v1431, 1.442695
  %v1435 = vpow.pop %v1434
  %v1436 = vmul.f32 %v1432, 1.442695
  %v1437 = vpow.pop %v1436
  %v1438 = vmul.f32 %v1433, 1.442695
  %v1439 = vpow.pop %v1438
  %v1440 = vadd.f32 %v1435, 1.0
  %v1441 = vadd.f32 %v1437, 1.0
  %v1442 = vadd.f32 %v1439, 1.0
  %v1443 = vrcp.pop %v1440
  %v1444 = vmul.f32 1.0, %v1443
  %v1445 = vrcp.pop %v1441
  %v1446 = vmul.f32 1.0, %v1445
  %v1447 = vrcp.pop %v1442
  %v1448 = vmul.f32 1.0, %v1447
  %v1449 = vtanh.pop %v1430
  %v1450 = vmul.f32 %v1446, %v1189
  %v1451 = vmul.f32 %v1444, %v1449
  %v1452 = vadd.f32 %v1450, %v1451
  %v1453 = vtanh.pop %v1452
  %v1454 = vmul.f32 %v1448, %v1453
  %v1455 = vsel %vm1329, 1, 0
  %1456 = vset.pattern.permute.xlu0 0
  %1457 = vperm.xlu0 %1456, %v1455
  %v1458 = vpop.permute.xlu0 %1457
  %vm1459 = vcmp.eq.s32.totalorder %v1458, 1
  %v1460 = vsel %vm1459, %v1454, %v1188
  %v1461 = vsel %vm1459, %v1452, %v1189
  %v1462 = vsel %vm1459, %v1454, 0.0
  %s1463 = scalar_lea.vmem %s54, 64
  %v1464 = vld [vmem:[%s1463] sm:$0xff]
  %v1465 = vld [vmem:[%s1463 + $0x8] sm:$0xff]
  %v1466 = vunpack.c.l.bf16 %v1464
  %v1467 = vunpack.c.h.bf16 %v1464
  %v1468 = vunpack.c.l.bf16 %v1465
  %v1469 = vunpack.c.h.bf16 %v1465
  %v1470 = vadd.f32 %v1466, %v478
  %v1471 = vadd.f32 %v1467, %v482
  %v1472 = vadd.f32 %v1468, %v486
  %v1473 = vadd.f32 %v1469, %v490
  %v1474 = vpack.c.bf16 %v1318, %v1318
  %1475 = vmatprep.subr.bf16.mxu0 %v597
  %1476 = vmatpush1.bf16.msra.mxu0 %v596
  %1477 = vmatprep.subr.bf16.mxu0 %v601
  %1478 = vmatpush1.bf16.msra.mxu0 %v600
  %1479 = vmatprep.subr.bf16.mxu0 %v605
  %1480 = vmatpush1.bf16.msra.mxu0 %v604
  %1481 = vmatprep.subr.bf16.mxu0 %v609
  %1482 = vmatpush1.bf16.msra.mxu0 %v608
  %1483 = vmatprep.subr.bf16.mxu0 %v613
  %1484 = vmatpush1.bf16.msra.mxu0 %v612
  %1485 = vmatprep.subr.bf16.mxu0 %v617
  %1486 = vmatpush1.bf16.msra.mxu0 %v616
  %1487 = vmatprep.subr.bf16.mxu0 %v621
  %1488 = vmatpush1.bf16.msra.mxu0 %v620
  %1489 = vmatprep.subr.bf16.mxu0 %v625
  %1490 = vmatpush1.bf16.msra.mxu0 %v624
  %1491 = vmatprep.subr.bf16.mxu0 0
  %1492 = vmatpush1.bf16.msra.mxu0 0
  %1493 = vmatprep.subr.bf16.mxu0 0
  %1494 = vmatpush1.bf16.msra.mxu0 0
  %1495 = vmatprep.subr.bf16.mxu0 0
  %1496 = vmatpush1.bf16.msra.mxu0 0
  %1497 = vmatprep.subr.bf16.mxu0 0
  %1498 = vmatpush1.bf16.msra.mxu0 0
  %1499 = vmatprep.subr.bf16.mxu0 0
  %1500 = vmatpush1.bf16.msra.mxu0 0
  %1501 = vmatprep.subr.bf16.mxu0 0
  %1502 = vmatpush1.bf16.msra.mxu0 0
  %1503 = vmatprep.subr.bf16.mxu0 0
  %1504 = vmatpush1.bf16.msra.mxu0 0
  %1505 = vmatprep.subr.bf16.mxu0 0
  %1506 = vmatpush1.bf16.msra.mxu0 0
  %1507 = vmatprep.mubr.bf16.mxu0 0
  %1508 = vmatmul.mubr.bf16.gmra.mrb[0].mxu0 %v1474
  %v1509 = vpop.f32.mrb[0].mxu0
  %v1510 = vadd.f32 0.0, %v1509
  %v1511 = vpop.f32.mrb[0].mxu0
  %v1512 = vadd.f32 0.0, %v1511
  %v1513 = vpop.f32.mrb[0].mxu0
  %v1514 = vpop.f32.mrb[0].mxu0
  %1515 = vdwg.mxu0
  %1516 = vmatprep.subr.bf16.mxu0 %v599
  %1517 = vmatpush1.bf16.msra.mxu0 %v598
  %1518 = vmatprep.subr.bf16.mxu0 %v603
  %1519 = vmatpush1.bf16.msra.mxu0 %v602
  %1520 = vmatprep.subr.bf16.mxu0 %v607
  %1521 = vmatpush1.bf16.msra.mxu0 %v606
  %1522 = vmatprep.subr.bf16.mxu0 %v611
  %1523 = vmatpush1.bf16.msra.mxu0 %v610
  %1524 = vmatprep.subr.bf16.mxu0 %v615
  %1525 = vmatpush1.bf16.msra.mxu0 %v614
  %1526 = vmatprep.subr.bf16.mxu0 %v619
  %1527 = vmatpush1.bf16.msra.mxu0 %v618
  %1528 = vmatprep.subr.bf16.mxu0 %v623
  %1529 = vmatpush1.bf16.msra.mxu0 %v622
  %1530 = vmatprep.subr.bf16.mxu0 %v627
  %1531 = vmatpush1.bf16.msra.mxu0 %v626
  %1532 = vmatprep.subr.bf16.mxu0 0
  %1533 = vmatpush1.bf16.msra.mxu0 0
  %1534 = vmatprep.subr.bf16.mxu0 0
  %1535 = vmatpush1.bf16.msra.mxu0 0
  %1536 = vmatprep.subr.bf16.mxu0 0
  %1537 = vmatpush1.bf16.msra.mxu0 0
  %1538 = vmatprep.subr.bf16.mxu0 0
  %1539 = vmatpush1.bf16.msra.mxu0 0
  %1540 = vmatprep.subr.bf16.mxu0 0
  %1541 = vmatpush1.bf16.msra.mxu0 0
  %1542 = vmatprep.subr.bf16.mxu0 0
  %1543 = vmatpush1.bf16.msra.mxu0 0
  %1544 = vmatprep.subr.bf16.mxu0 0
  %1545 = vmatpush1.bf16.msra.mxu0 0
  %1546 = vmatprep.subr.bf16.mxu0 0
  %1547 = vmatpush1.bf16.msra.mxu0 0
  %1548 = vmatprep.mubr.bf16.mxu0 0
  %1549 = vmatmul.mubr.bf16.gmra.mrb[0].mxu0 %v1474
  %v1550 = vpop.f32.mrb[0].mxu0
  %v1551 = vadd.f32 0.0, %v1550
  %v1552 = vpop.f32.mrb[0].mxu0
  %v1553 = vadd.f32 0.0, %v1552
  %v1554 = vpop.f32.mrb[0].mxu0
  %v1555 = vpop.f32.mrb[0].mxu0
  %1556 = vdwg.mxu0
  %v1557 = vadd.f32 %v1470, %v1510
  %v1558 = vadd.f32 %v1471, %v1512
  %v1559 = vadd.f32 %v1472, %v1551
  %v1560 = vadd.f32 %v1473, %v1553
  %v1561 = vxor.u32 %v1557, 2147483648
  %v1562 = vxor.u32 %v1558, 2147483648
  %v1563 = vxor.u32 %v1559, 2147483648
  %v1564 = vmul.f32 %v1561, 1.442695
  %v1565 = vpow.pop %v1564
  %v1566 = vmul.f32 %v1562, 1.442695
  %v1567 = vpow.pop %v1566
  %v1568 = vmul.f32 %v1563, 1.442695
  %v1569 = vpow.pop %v1568
  %v1570 = vadd.f32 %v1565, 1.0
  %v1571 = vadd.f32 %v1567, 1.0
  %v1572 = vadd.f32 %v1569, 1.0
  %v1573 = vrcp.pop %v1570
  %v1574 = vmul.f32 1.0, %v1573
  %v1575 = vrcp.pop %v1571
  %v1576 = vmul.f32 1.0, %v1575
  %v1577 = vrcp.pop %v1572
  %v1578 = vmul.f32 1.0, %v1577
  %v1579 = vtanh.pop %v1560
  %v1580 = vmul.f32 %v1576, %v1319
  %v1581 = vmul.f32 %v1574, %v1579
  %v1582 = vadd.f32 %v1580, %v1581
  %v1583 = vtanh.pop %v1582
  %v1584 = vmul.f32 %v1578, %v1583
  %v1585 = vsel %vm1332, 1, 0
  %1586 = vset.pattern.permute.xlu0 0
  %1587 = vperm.xlu0 %1586, %v1585
  %v1588 = vpop.permute.xlu0 %1587
  %vm1589 = vcmp.eq.s32.totalorder %v1588, 1
  %v1590 = vsel %vm1589, %v1584, %v1318
  %v1591 = vsel %vm1589, %v1582, %v1319
  %v1592 = vsel %vm1589, %v1584, 0.0
  %v1593 = vpack.c.bf16 %v1462, %v1462
  %s1594 = scalar_lea.vmem %s5, 12
  %1595 = vst [vmem:[%s1594] sm:$0xf] %v1593
  %v1596 = vpack.c.bf16 %v1592, %v1592
  %s1597 = scalar_lea.vmem %s62, 16
  %1598 = vst [vmem:[%s1597] sm:$0xf] %v1596
  %s1599 = sadd.s32 %s143, 4
  %v1600 = vstv %s1599
  %vm1601 = vcmp.lt.s32.totalorder %v1600, %v142
  %s1602 = sadd.s32 %s145, 3
  %v1603 = vstv %s1602
  %vm1604 = vcmp.lt.s32.totalorder %v1603, %v142
  %s1605 = scalar_lea.vmem %s0, 64
  %v1606 = vld [vmem:[%s1605] sm:$0xff]
  %v1607 = vld [vmem:[%s1605 + $0x8] sm:$0xff]
  %v1608 = vunpack.c.l.bf16 %v1606
  %v1609 = vunpack.c.h.bf16 %v1606
  %v1610 = vunpack.c.l.bf16 %v1607
  %v1611 = vunpack.c.h.bf16 %v1607
  %v1612 = vadd.f32 %v1608, %v167
  %v1613 = vadd.f32 %v1609, %v171
  %v1614 = vadd.f32 %v1610, %v175
  %v1615 = vadd.f32 %v1611, %v179
  %v1616 = vpack.c.bf16 %v1460, %v1460
  %1617 = vmatprep.subr.bf16.mxu0 %v286
  %1618 = vmatpush1.bf16.msra.mxu0 %v285
  %1619 = vmatprep.subr.bf16.mxu0 %v290
  %1620 = vmatpush1.bf16.msra.mxu0 %v289
  %1621 = vmatprep.subr.bf16.mxu0 %v294
  %1622 = vmatpush1.bf16.msra.mxu0 %v293
  %1623 = vmatprep.subr.bf16.mxu0 %v298
  %1624 = vmatpush1.bf16.msra.mxu0 %v297
  %1625 = vmatprep.subr.bf16.mxu0 %v302
  %1626 = vmatpush1.bf16.msra.mxu0 %v301
  %1627 = vmatprep.subr.bf16.mxu0 %v306
  %1628 = vmatpush1.bf16.msra.mxu0 %v305
  %1629 = vmatprep.subr.bf16.mxu0 %v310
  %1630 = vmatpush1.bf16.msra.mxu0 %v309
  %1631 = vmatprep.subr.bf16.mxu0 %v314
  %1632 = vmatpush1.bf16.msra.mxu0 %v313
  %1633 = vmatprep.subr.bf16.mxu0 0
  %1634 = vmatpush1.bf16.msra.mxu0 0
  %1635 = vmatprep.subr.bf16.mxu0 0
  %1636 = vmatpush1.bf16.msra.mxu0 0
  %1637 = vmatprep.subr.bf16.mxu0 0
  %1638 = vmatpush1.bf16.msra.mxu0 0
  %1639 = vmatprep.subr.bf16.mxu0 0
  %1640 = vmatpush1.bf16.msra.mxu0 0
  %1641 = vmatprep.subr.bf16.mxu0 0
  %1642 = vmatpush1.bf16.msra.mxu0 0
  %1643 = vmatprep.subr.bf16.mxu0 0
  %1644 = vmatpush1.bf16.msra.mxu0 0
  %1645 = vmatprep.subr.bf16.mxu0 0
  %1646 = vmatpush1.bf16.msra.mxu0 0
  %1647 = vmatprep.subr.bf16.mxu0 0
  %1648 = vmatpush1.bf16.msra.mxu0 0
  %1649 = vmatprep.mubr.bf16.mxu0 0
  %1650 = vmatmul.mubr.bf16.gmra.mrb[0].mxu0 %v1616
  %v1651 = vpop.f32.mrb[0].mxu0
  %v1652 = vadd.f32 0.0, %v1651
  %v1653 = vpop.f32.mrb[0].mxu0
  %v1654 = vadd.f32 0.0, %v1653
  %v1655 = vpop.f32.mrb[0].mxu0
  %v1656 = vpop.f32.mrb[0].mxu0
  %1657 = vdwg.mxu0
  %1658 = vmatprep.subr.bf16.mxu0 %v288
  %1659 = vmatpush1.bf16.msra.mxu0 %v287
  %1660 = vmatprep.subr.bf16.mxu0 %v292
  %1661 = vmatpush1.bf16.msra.mxu0 %v291
  %1662 = vmatprep.subr.bf16.mxu0 %v296
  %1663 = vmatpush1.bf16.msra.mxu0 %v295
  %1664 = vmatprep.subr.bf16.mxu0 %v300
  %1665 = vmatpush1.bf16.msra.mxu0 %v299
  %1666 = vmatprep.subr.bf16.mxu0 %v304
  %1667 = vmatpush1.bf16.msra.mxu0 %v303
  %1668 = vmatprep.subr.bf16.mxu0 %v308
  %1669 = vmatpush1.bf16.msra.mxu0 %v307
  %1670 = vmatprep.subr.bf16.mxu0 %v312
  %1671 = vmatpush1.bf16.msra.mxu0 %v311
  %1672 = vmatprep.subr.bf16.mxu0 %v316
  %1673 = vmatpush1.bf16.msra.mxu0 %v315
  %1674 = vmatprep.subr.bf16.mxu0 0
  %1675 = vmatpush1.bf16.msra.mxu0 0
  %1676 = vmatprep.subr.bf16.mxu0 0
  %1677 = vmatpush1.bf16.msra.mxu0 0
  %1678 = vmatprep.subr.bf16.mxu0 0
  %1679 = vmatpush1.bf16.msra.mxu0 0
  %1680 = vmatprep.subr.bf16.mxu0 0
  %1681 = vmatpush1.bf16.msra.mxu0 0
  %1682 = vmatprep.subr.bf16.mxu0 0
  %1683 = vmatpush1.bf16.msra.mxu0 0
  %1684 = vmatprep.subr.bf16.mxu0 0
  %1685 = vmatpush1.bf16.msra.mxu0 0
  %1686 = vmatprep.subr.bf16.mxu0 0
  %1687 = vmatpush1.bf16.msra.mxu0 0
  %1688 = vmatprep.subr.bf16.mxu0 0
  %1689 = vmatpush1.bf16.msra.mxu0 0
  %1690 = vmatprep.mubr.bf16.mxu0 0
  %1691 = vmatmul.mubr.bf16.gmra.mrb[0].mxu0 %v1616
  %v1692 = vpop.f32.mrb[0].mxu0
  %v1693 = vadd.f32 0.0, %v1692
  %v1694 = vpop.f32.mrb[0].mxu0
  %v1695 = vadd.f32 0.0, %v1694
  %v1696 = vpop.f32.mrb[0].mxu0
  %v1697 = vpop.f32.mrb[0].mxu0
  %1698 = vdwg.mxu0
  %v1699 = vadd.f32 %v1612, %v1652
  %v1700 = vadd.f32 %v1613, %v1654
  %v1701 = vadd.f32 %v1614, %v1693
  %v1702 = vadd.f32 %v1615, %v1695
  %v1703 = vxor.u32 %v1699, 2147483648
  %v1704 = vxor.u32 %v1700, 2147483648
  %v1705 = vxor.u32 %v1701, 2147483648
  %v1706 = vmul.f32 %v1703, 1.442695
  %v1707 = vpow.pop %v1706
  %v1708 = vmul.f32 %v1704, 1.442695
  %v1709 = vpow.pop %v1708
  %v1710 = vmul.f32 %v1705, 1.442695
  %v1711 = vpow.pop %v1710
  %v1712 = vadd.f32 %v1707, 1.0
  %v1713 = vadd.f32 %v1709, 1.0
  %v1714 = vadd.f32 %v1711, 1.0
  %v1715 = vrcp.pop %v1712
  %v1716 = vmul.f32 1.0, %v1715
  %v1717 = vrcp.pop %v1713
  %v1718 = vmul.f32 1.0, %v1717
  %v1719 = vrcp.pop %v1714
  %v1720 = vmul.f32 1.0, %v1719
  %v1721 = vtanh.pop %v1702
  %v1722 = vmul.f32 %v1718, %v1461
  %v1723 = vmul.f32 %v1716, %v1721
  %v1724 = vadd.f32 %v1722, %v1723
  %v1725 = vtanh.pop %v1724
  %v1726 = vmul.f32 %v1720, %v1725
  %v1727 = vsel %vm1601, 1, 0
  %1728 = vset.pattern.permute.xlu0 0
  %1729 = vperm.xlu0 %1728, %v1727
  %v1730 = vpop.permute.xlu0 %1729
  %vm1731 = vcmp.eq.s32.totalorder %v1730, 1
  %v1732 = vsel %vm1731, %v1726, %v1460
  %v1733 = vsel %vm1731, %v1724, %v1461
  %v1734 = vsel %vm1731, %v1726, 0.0
  %s1735 = scalar_lea.vmem %s54, 48
  %v1736 = vld [vmem:[%s1735] sm:$0xff]
  %v1737 = vld [vmem:[%s1735 + $0x8] sm:$0xff]
  %v1738 = vunpack.c.l.bf16 %v1736
  %v1739 = vunpack.c.h.bf16 %v1736
  %v1740 = vunpack.c.l.bf16 %v1737
  %v1741 = vunpack.c.h.bf16 %v1737
  %v1742 = vadd.f32 %v1738, %v478
  %v1743 = vadd.f32 %v1739, %v482
  %v1744 = vadd.f32 %v1740, %v486
  %v1745 = vadd.f32 %v1741, %v490
  %v1746 = vpack.c.bf16 %v1590, %v1590
  %1747 = vmatprep.subr.bf16.mxu0 %v597
  %1748 = vmatpush1.bf16.msra.mxu0 %v596
  %1749 = vmatprep.subr.bf16.mxu0 %v601
  %1750 = vmatpush1.bf16.msra.mxu0 %v600
  %1751 = vmatprep.subr.bf16.mxu0 %v605
  %1752 = vmatpush1.bf16.msra.mxu0 %v604
  %1753 = vmatprep.subr.bf16.mxu0 %v609
  %1754 = vmatpush1.bf16.msra.mxu0 %v608
  %1755 = vmatprep.subr.bf16.mxu0 %v613
  %1756 = vmatpush1.bf16.msra.mxu0 %v612
  %1757 = vmatprep.subr.bf16.mxu0 %v617
  %1758 = vmatpush1.bf16.msra.mxu0 %v616
  %1759 = vmatprep.subr.bf16.mxu0 %v621
  %1760 = vmatpush1.bf16.msra.mxu0 %v620
  %1761 = vmatprep.subr.bf16.mxu0 %v625
  %1762 = vmatpush1.bf16.msra.mxu0 %v624
  %1763 = vmatprep.subr.bf16.mxu0 0
  %1764 = vmatpush1.bf16.msra.mxu0 0
  %1765 = vmatprep.subr.bf16.mxu0 0
  %1766 = vmatpush1.bf16.msra.mxu0 0
  %1767 = vmatprep.subr.bf16.mxu0 0
  %1768 = vmatpush1.bf16.msra.mxu0 0
  %1769 = vmatprep.subr.bf16.mxu0 0
  %1770 = vmatpush1.bf16.msra.mxu0 0
  %1771 = vmatprep.subr.bf16.mxu0 0
  %1772 = vmatpush1.bf16.msra.mxu0 0
  %1773 = vmatprep.subr.bf16.mxu0 0
  %1774 = vmatpush1.bf16.msra.mxu0 0
  %1775 = vmatprep.subr.bf16.mxu0 0
  %1776 = vmatpush1.bf16.msra.mxu0 0
  %1777 = vmatprep.subr.bf16.mxu0 0
  %1778 = vmatpush1.bf16.msra.mxu0 0
  %1779 = vmatprep.mubr.bf16.mxu0 0
  %1780 = vmatmul.mubr.bf16.gmra.mrb[0].mxu0 %v1746
  %v1781 = vpop.f32.mrb[0].mxu0
  %v1782 = vadd.f32 0.0, %v1781
  %v1783 = vpop.f32.mrb[0].mxu0
  %v1784 = vadd.f32 0.0, %v1783
  %v1785 = vpop.f32.mrb[0].mxu0
  %v1786 = vpop.f32.mrb[0].mxu0
  %1787 = vdwg.mxu0
  %1788 = vmatprep.subr.bf16.mxu0 %v599
  %1789 = vmatpush1.bf16.msra.mxu0 %v598
  %1790 = vmatprep.subr.bf16.mxu0 %v603
  %1791 = vmatpush1.bf16.msra.mxu0 %v602
  %1792 = vmatprep.subr.bf16.mxu0 %v607
  %1793 = vmatpush1.bf16.msra.mxu0 %v606
  %1794 = vmatprep.subr.bf16.mxu0 %v611
  %1795 = vmatpush1.bf16.msra.mxu0 %v610
  %1796 = vmatprep.subr.bf16.mxu0 %v615
  %1797 = vmatpush1.bf16.msra.mxu0 %v614
  %1798 = vmatprep.subr.bf16.mxu0 %v619
  %1799 = vmatpush1.bf16.msra.mxu0 %v618
  %1800 = vmatprep.subr.bf16.mxu0 %v623
  %1801 = vmatpush1.bf16.msra.mxu0 %v622
  %1802 = vmatprep.subr.bf16.mxu0 %v627
  %1803 = vmatpush1.bf16.msra.mxu0 %v626
  %1804 = vmatprep.subr.bf16.mxu0 0
  %1805 = vmatpush1.bf16.msra.mxu0 0
  %1806 = vmatprep.subr.bf16.mxu0 0
  %1807 = vmatpush1.bf16.msra.mxu0 0
  %1808 = vmatprep.subr.bf16.mxu0 0
  %1809 = vmatpush1.bf16.msra.mxu0 0
  %1810 = vmatprep.subr.bf16.mxu0 0
  %1811 = vmatpush1.bf16.msra.mxu0 0
  %1812 = vmatprep.subr.bf16.mxu0 0
  %1813 = vmatpush1.bf16.msra.mxu0 0
  %1814 = vmatprep.subr.bf16.mxu0 0
  %1815 = vmatpush1.bf16.msra.mxu0 0
  %1816 = vmatprep.subr.bf16.mxu0 0
  %1817 = vmatpush1.bf16.msra.mxu0 0
  %1818 = vmatprep.subr.bf16.mxu0 0
  %1819 = vmatpush1.bf16.msra.mxu0 0
  %1820 = vmatprep.mubr.bf16.mxu0 0
  %1821 = vmatmul.mubr.bf16.gmra.mrb[0].mxu0 %v1746
  %v1822 = vpop.f32.mrb[0].mxu0
  %v1823 = vadd.f32 0.0, %v1822
  %v1824 = vpop.f32.mrb[0].mxu0
  %v1825 = vadd.f32 0.0, %v1824
  %v1826 = vpop.f32.mrb[0].mxu0
  %v1827 = vpop.f32.mrb[0].mxu0
  %1828 = vdwg.mxu0
  %v1829 = vadd.f32 %v1742, %v1782
  %v1830 = vadd.f32 %v1743, %v1784
  %v1831 = vadd.f32 %v1744, %v1823
  %v1832 = vadd.f32 %v1745, %v1825
  %v1833 = vxor.u32 %v1829, 2147483648
  %v1834 = vxor.u32 %v1830, 2147483648
  %v1835 = vxor.u32 %v1831, 2147483648
  %v1836 = vmul.f32 %v1833, 1.442695
  %v1837 = vpow.pop %v1836
  %v1838 = vmul.f32 %v1834, 1.442695
  %v1839 = vpow.pop %v1838
  %v1840 = vmul.f32 %v1835, 1.442695
  %v1841 = vpow.pop %v1840
  %v1842 = vadd.f32 %v1837, 1.0
  %v1843 = vadd.f32 %v1839, 1.0
  %v1844 = vadd.f32 %v1841, 1.0
  %v1845 = vrcp.pop %v1842
  %v1846 = vmul.f32 1.0, %v1845
  %v1847 = vrcp.pop %v1843
  %v1848 = vmul.f32 1.0, %v1847
  %v1849 = vrcp.pop %v1844
  %v1850 = vmul.f32 1.0, %v1849
  %v1851 = vtanh.pop %v1832
  %v1852 = vmul.f32 %v1848, %v1591
  %v1853 = vmul.f32 %v1846, %v1851
  %v1854 = vadd.f32 %v1852, %v1853
  %v1855 = vtanh.pop %v1854
  %v1856 = vmul.f32 %v1850, %v1855
  %v1857 = vsel %vm1604, 1, 0
  %1858 = vset.pattern.permute.xlu0 0
  %1859 = vperm.xlu0 %1858, %v1857
  %v1860 = vpop.permute.xlu0 %1859
  %vm1861 = vcmp.eq.s32.totalorder %v1860, 1
  %v1862 = vsel %vm1861, %v1856, %v1590
  %v1863 = vsel %vm1861, %v1854, %v1591
  %v1864 = vsel %vm1861, %v1856, 0.0
  %v1865 = vpack.c.bf16 %v1734, %v1734
  %s1866 = scalar_lea.vmem %s5, 16
  %1867 = vst [vmem:[%s1866] sm:$0xf] %v1865
  %v1868 = vpack.c.bf16 %v1864, %v1864
  %s1869 = scalar_lea.vmem %s62, 12
  %1870 = vst [vmem:[%s1869] sm:$0xf] %v1868
  %s1871 = sadd.s32 %s143, 5
  %v1872 = vstv %s1871
  %vm1873 = vcmp.lt.s32.totalorder %v1872, %v142
  %s1874 = sadd.s32 %s145, 2
  %v1875 = vstv %s1874
  %vm1876 = vcmp.lt.s32.totalorder %v1875, %v142
  %s1877 = scalar_lea.vmem %s0, 80
  %v1878 = vld [vmem:[%s1877] sm:$0xff]
  %v1879 = vld [vmem:[%s1877 + $0x8] sm:$0xff]
  %v1880 = vunpack.c.l.bf16 %v1878
  %v1881 = vunpack.c.h.bf16 %v1878
  %v1882 = vunpack.c.l.bf16 %v1879
  %v1883 = vunpack.c.h.bf16 %v1879
  %v1884 = vadd.f32 %v1880, %v167
  %v1885 = vadd.f32 %v1881, %v171
  %v1886 = vadd.f32 %v1882, %v175
  %v1887 = vadd.f32 %v1883, %v179
  %v1888 = vpack.c.bf16 %v1732, %v1732
  %1889 = vmatprep.subr.bf16.mxu0 %v286
  %1890 = vmatpush1.bf16.msra.mxu0 %v285
  %1891 = vmatprep.subr.bf16.mxu0 %v290
  %1892 = vmatpush1.bf16.msra.mxu0 %v289
  %1893 = vmatprep.subr.bf16.mxu0 %v294
  %1894 = vmatpush1.bf16.msra.mxu0 %v293
  %1895 = vmatprep.subr.bf16.mxu0 %v298
  %1896 = vmatpush1.bf16.msra.mxu0 %v297
  %1897 = vmatprep.subr.bf16.mxu0 %v302
  %1898 = vmatpush1.bf16.msra.mxu0 %v301
  %1899 = vmatprep.subr.bf16.mxu0 %v306
  %1900 = vmatpush1.bf16.msra.mxu0 %v305
  %1901 = vmatprep.subr.bf16.mxu0 %v310
  %1902 = vmatpush1.bf16.msra.mxu0 %v309
  %1903 = vmatprep.subr.bf16.mxu0 %v314
  %1904 = vmatpush1.bf16.msra.mxu0 %v313
  %1905 = vmatprep.subr.bf16.mxu0 0
  %1906 = vmatpush1.bf16.msra.mxu0 0
  %1907 = vmatprep.subr.bf16.mxu0 0
  %1908 = vmatpush1.bf16.msra.mxu0 0
  %1909 = vmatprep.subr.bf16.mxu0 0
  %1910 = vmatpush1.bf16.msra.mxu0 0
  %1911 = vmatprep.subr.bf16.mxu0 0
  %1912 = vmatpush1.bf16.msra.mxu0 0
  %1913 = vmatprep.subr.bf16.mxu0 0
  %1914 = vmatpush1.bf16.msra.mxu0 0
  %1915 = vmatprep.subr.bf16.mxu0 0
  %1916 = vmatpush1.bf16.msra.mxu0 0
  %1917 = vmatprep.subr.bf16.mxu0 0
  %1918 = vmatpush1.bf16.msra.mxu0 0
  %1919 = vmatprep.subr.bf16.mxu0 0
  %1920 = vmatpush1.bf16.msra.mxu0 0
  %1921 = vmatprep.mubr.bf16.mxu0 0
  %1922 = vmatmul.mubr.bf16.gmra.mrb[0].mxu0 %v1888
  %v1923 = vpop.f32.mrb[0].mxu0
  %v1924 = vadd.f32 0.0, %v1923
  %v1925 = vpop.f32.mrb[0].mxu0
  %v1926 = vadd.f32 0.0, %v1925
  %v1927 = vpop.f32.mrb[0].mxu0
  %v1928 = vpop.f32.mrb[0].mxu0
  %1929 = vdwg.mxu0
  %1930 = vmatprep.subr.bf16.mxu0 %v288
  %1931 = vmatpush1.bf16.msra.mxu0 %v287
  %1932 = vmatprep.subr.bf16.mxu0 %v292
  %1933 = vmatpush1.bf16.msra.mxu0 %v291
  %1934 = vmatprep.subr.bf16.mxu0 %v296
  %1935 = vmatpush1.bf16.msra.mxu0 %v295
  %1936 = vmatprep.subr.bf16.mxu0 %v300
  %1937 = vmatpush1.bf16.msra.mxu0 %v299
  %1938 = vmatprep.subr.bf16.mxu0 %v304
  %1939 = vmatpush1.bf16.msra.mxu0 %v303
  %1940 = vmatprep.subr.bf16.mxu0 %v308
  %1941 = vmatpush1.bf16.msra.mxu0 %v307
  %1942 = vmatprep.subr.bf16.mxu0 %v312
  %1943 = vmatpush1.bf16.msra.mxu0 %v311
  %1944 = vmatprep.subr.bf16.mxu0 %v316
  %1945 = vmatpush1.bf16.msra.mxu0 %v315
  %1946 = vmatprep.subr.bf16.mxu0 0
  %1947 = vmatpush1.bf16.msra.mxu0 0
  %1948 = vmatprep.subr.bf16.mxu0 0
  %1949 = vmatpush1.bf16.msra.mxu0 0
  %1950 = vmatprep.subr.bf16.mxu0 0
  %1951 = vmatpush1.bf16.msra.mxu0 0
  %1952 = vmatprep.subr.bf16.mxu0 0
  %1953 = vmatpush1.bf16.msra.mxu0 0
  %1954 = vmatprep.subr.bf16.mxu0 0
  %1955 = vmatpush1.bf16.msra.mxu0 0
  %1956 = vmatprep.subr.bf16.mxu0 0
  %1957 = vmatpush1.bf16.msra.mxu0 0
  %1958 = vmatprep.subr.bf16.mxu0 0
  %1959 = vmatpush1.bf16.msra.mxu0 0
  %1960 = vmatprep.subr.bf16.mxu0 0
  %1961 = vmatpush1.bf16.msra.mxu0 0
  %1962 = vmatprep.mubr.bf16.mxu0 0
  %1963 = vmatmul.mubr.bf16.gmra.mrb[0].mxu0 %v1888
  %v1964 = vpop.f32.mrb[0].mxu0
  %v1965 = vadd.f32 0.0, %v1964
  %v1966 = vpop.f32.mrb[0].mxu0
  %v1967 = vadd.f32 0.0, %v1966
  %v1968 = vpop.f32.mrb[0].mxu0
  %v1969 = vpop.f32.mrb[0].mxu0
  %1970 = vdwg.mxu0
  %v1971 = vadd.f32 %v1884, %v1924
  %v1972 = vadd.f32 %v1885, %v1926
  %v1973 = vadd.f32 %v1886, %v1965
  %v1974 = vadd.f32 %v1887, %v1967
  %v1975 = vxor.u32 %v1971, 2147483648
  %v1976 = vxor.u32 %v1972, 2147483648
  %v1977 = vxor.u32 %v1973, 2147483648
  %v1978 = vmul.f32 %v1975, 1.442695
  %v1979 = vpow.pop %v1978
  %v1980 = vmul.f32 %v1976, 1.442695
  %v1981 = vpow.pop %v1980
  %v1982 = vmul.f32 %v1977, 1.442695
  %v1983 = vpow.pop %v1982
  %v1984 = vadd.f32 %v1979, 1.0
  %v1985 = vadd.f32 %v1981, 1.0
  %v1986 = vadd.f32 %v1983, 1.0
  %v1987 = vrcp.pop %v1984
  %v1988 = vmul.f32 1.0, %v1987
  %v1989 = vrcp.pop %v1985
  %v1990 = vmul.f32 1.0, %v1989
  %v1991 = vrcp.pop %v1986
  %v1992 = vmul.f32 1.0, %v1991
  %v1993 = vtanh.pop %v1974
  %v1994 = vmul.f32 %v1990, %v1733
  %v1995 = vmul.f32 %v1988, %v1993
  %v1996 = vadd.f32 %v1994, %v1995
  %v1997 = vtanh.pop %v1996
  %v1998 = vmul.f32 %v1992, %v1997
  %v1999 = vsel %vm1873, 1, 0
  %2000 = vset.pattern.permute.xlu0 0
  %2001 = vperm.xlu0 %2000, %v1999
  %v2002 = vpop.permute.xlu0 %2001
  %vm2003 = vcmp.eq.s32.totalorder %v2002, 1
  %v2004 = vsel %vm2003, %v1998, %v1732
  %v2005 = vsel %vm2003, %v1996, %v1733
  %v2006 = vsel %vm2003, %v1998, 0.0
  %s2007 = scalar_lea.vmem %s54, 32
  %v2008 = vld [vmem:[%s2007] sm:$0xff]
  %v2009 = vld [vmem:[%s2007 + $0x8] sm:$0xff]
  %v2010 = vunpack.c.l.bf16 %v2008
  %v2011 = vunpack.c.h.bf16 %v2008
  %v2012 = vunpack.c.l.bf16 %v2009
  %v2013 = vunpack.c.h.bf16 %v2009
  %v2014 = vadd.f32 %v2010, %v478
  %v2015 = vadd.f32 %v2011, %v482
  %v2016 = vadd.f32 %v2012, %v486
  %v2017 = vadd.f32 %v2013, %v490
  %v2018 = vpack.c.bf16 %v1862, %v1862
  %2019 = vmatprep.subr.bf16.mxu0 %v597
  %2020 = vmatpush1.bf16.msra.mxu0 %v596
  %2021 = vmatprep.subr.bf16.mxu0 %v601
  %2022 = vmatpush1.bf16.msra.mxu0 %v600
  %2023 = vmatprep.subr.bf16.mxu0 %v605
  %2024 = vmatpush1.bf16.msra.mxu0 %v604
  %2025 = vmatprep.subr.bf16.mxu0 %v609
  %2026 = vmatpush1.bf16.msra.mxu0 %v608
  %2027 = vmatprep.subr.bf16.mxu0 %v613
  %2028 = vmatpush1.bf16.msra.mxu0 %v612
  %2029 = vmatprep.subr.bf16.mxu0 %v617
  %2030 = vmatpush1.bf16.msra.mxu0 %v616
  %2031 = vmatprep.subr.bf16.mxu0 %v621
  %2032 = vmatpush1.bf16.msra.mxu0 %v620
  %2033 = vmatprep.subr.bf16.mxu0 %v625
  %2034 = vmatpush1.bf16.msra.mxu0 %v624
  %2035 = vmatprep.subr.bf16.mxu0 0
  %2036 = vmatpush1.bf16.msra.mxu0 0
  %2037 = vmatprep.subr.bf16.mxu0 0
  %2038 = vmatpush1.bf16.msra.mxu0 0
  %2039 = vmatprep.subr.bf16.mxu0 0
  %2040 = vmatpush1.bf16.msra.mxu0 0
  %2041 = vmatprep.subr.bf16.mxu0 0
  %2042 = vmatpush1.bf16.msra.mxu0 0
  %2043 = vmatprep.subr.bf16.mxu0 0
  %2044 = vmatpush1.bf16.msra.mxu0 0
  %2045 = vmatprep.subr.bf16.mxu0 0
  %2046 = vmatpush1.bf16.msra.mxu0 0
  %2047 = vmatprep.subr.bf16.mxu0 0
  %2048 = vmatpush1.bf16.msra.mxu0 0
  %2049 = vmatprep.subr.bf16.mxu0 0
  %2050 = vmatpush1.bf16.msra.mxu0 0
  %2051 = vmatprep.mubr.bf16.mxu0 0
  %2052 = vmatmul.mubr.bf16.gmra.mrb[0].mxu0 %v2018
  %v2053 = vpop.f32.mrb[0].mxu0
  %v2054 = vadd.f32 0.0, %v2053
  %v2055 = vpop.f32.mrb[0].mxu0
  %v2056 = vadd.f32 0.0, %v2055
  %v2057 = vpop.f32.mrb[0].mxu0
  %v2058 = vpop.f32.mrb[0].mxu0
  %2059 = vdwg.mxu0
  %2060 = vmatprep.subr.bf16.mxu0 %v599
  %2061 = vmatpush1.bf16.msra.mxu0 %v598
  %2062 = vmatprep.subr.bf16.mxu0 %v603
  %2063 = vmatpush1.bf16.msra.mxu0 %v602
  %2064 = vmatprep.subr.bf16.mxu0 %v607
  %2065 = vmatpush1.bf16.msra.mxu0 %v606
  %2066 = vmatprep.subr.bf16.mxu0 %v611
  %2067 = vmatpush1.bf16.msra.mxu0 %v610
  %2068 = vmatprep.subr.bf16.mxu0 %v615
  %2069 = vmatpush1.bf16.msra.mxu0 %v614
  %2070 = vmatprep.subr.bf16.mxu0 %v619
  %2071 = vmatpush1.bf16.msra.mxu0 %v618
  %2072 = vmatprep.subr.bf16.mxu0 %v623
  %2073 = vmatpush1.bf16.msra.mxu0 %v622
  %2074 = vmatprep.subr.bf16.mxu0 %v627
  %2075 = vmatpush1.bf16.msra.mxu0 %v626
  %2076 = vmatprep.subr.bf16.mxu0 0
  %2077 = vmatpush1.bf16.msra.mxu0 0
  %2078 = vmatprep.subr.bf16.mxu0 0
  %2079 = vmatpush1.bf16.msra.mxu0 0
  %2080 = vmatprep.subr.bf16.mxu0 0
  %2081 = vmatpush1.bf16.msra.mxu0 0
  %2082 = vmatprep.subr.bf16.mxu0 0
  %2083 = vmatpush1.bf16.msra.mxu0 0
  %2084 = vmatprep.subr.bf16.mxu0 0
  %2085 = vmatpush1.bf16.msra.mxu0 0
  %2086 = vmatprep.subr.bf16.mxu0 0
  %2087 = vmatpush1.bf16.msra.mxu0 0
  %2088 = vmatprep.subr.bf16.mxu0 0
  %2089 = vmatpush1.bf16.msra.mxu0 0
  %2090 = vmatprep.subr.bf16.mxu0 0
  %2091 = vmatpush1.bf16.msra.mxu0 0
  %2092 = vmatprep.mubr.bf16.mxu0 0
  %2093 = vmatmul.mubr.bf16.gmra.mrb[0].mxu0 %v2018
  %v2094 = vpop.f32.mrb[0].mxu0
  %v2095 = vadd.f32 0.0, %v2094
  %v2096 = vpop.f32.mrb[0].mxu0
  %v2097 = vadd.f32 0.0, %v2096
  %v2098 = vpop.f32.mrb[0].mxu0
  %v2099 = vpop.f32.mrb[0].mxu0
  %2100 = vdwg.mxu0
  %v2101 = vadd.f32 %v2014, %v2054
  %v2102 = vadd.f32 %v2015, %v2056
  %v2103 = vadd.f32 %v2016, %v2095
  %v2104 = vadd.f32 %v2017, %v2097
  %v2105 = vxor.u32 %v2101, 2147483648
  %v2106 = vxor.u32 %v2102, 2147483648
  %v2107 = vxor.u32 %v2103, 2147483648
  %v2108 = vmul.f32 %v2105, 1.442695
  %v2109 = vpow.pop %v2108
  %v2110 = vmul.f32 %v2106, 1.442695
  %v2111 = vpow.pop %v2110
  %v2112 = vmul.f32 %v2107, 1.442695
  %v2113 = vpow.pop %v2112
  %v2114 = vadd.f32 %v2109, 1.0
  %v2115 = vadd.f32 %v2111, 1.0
  %v2116 = vadd.f32 %v2113, 1.0
  %v2117 = vrcp.pop %v2114
  %v2118 = vmul.f32 1.0, %v2117
  %v2119 = vrcp.pop %v2115
  %v2120 = vmul.f32 1.0, %v2119
  %v2121 = vrcp.pop %v2116
  %v2122 = vmul.f32 1.0, %v2121
  %v2123 = vtanh.pop %v2104
  %v2124 = vmul.f32 %v2120, %v1863
  %v2125 = vmul.f32 %v2118, %v2123
  %v2126 = vadd.f32 %v2124, %v2125
  %v2127 = vtanh.pop %v2126
  %v2128 = vmul.f32 %v2122, %v2127
  %v2129 = vsel %vm1876, 1, 0
  %2130 = vset.pattern.permute.xlu0 0
  %2131 = vperm.xlu0 %2130, %v2129
  %v2132 = vpop.permute.xlu0 %2131
  %vm2133 = vcmp.eq.s32.totalorder %v2132, 1
  %v2134 = vsel %vm2133, %v2128, %v1862
  %v2135 = vsel %vm2133, %v2126, %v1863
  %v2136 = vsel %vm2133, %v2128, 0.0
  %v2137 = vpack.c.bf16 %v2006, %v2006
  %s2138 = scalar_lea.vmem %s5, 20
  %2139 = vst [vmem:[%s2138] sm:$0xf] %v2137
  %v2140 = vpack.c.bf16 %v2136, %v2136
  %s2141 = scalar_lea.vmem %s62, 8
  %2142 = vst [vmem:[%s2141] sm:$0xf] %v2140
  %s2143 = sadd.s32 %s143, 6
  %v2144 = vstv %s2143
  %vm2145 = vcmp.lt.s32.totalorder %v2144, %v142
  %s2146 = sadd.s32 %s145, 1
  %v2147 = vstv %s2146
  %vm2148 = vcmp.lt.s32.totalorder %v2147, %v142
  %s2149 = scalar_lea.vmem %s0, 96
  %v2150 = vld [vmem:[%s2149] sm:$0xff]
  %v2151 = vld [vmem:[%s2149 + $0x8] sm:$0xff]
  %v2152 = vunpack.c.l.bf16 %v2150
  %v2153 = vunpack.c.h.bf16 %v2150
  %v2154 = vunpack.c.l.bf16 %v2151
  %v2155 = vunpack.c.h.bf16 %v2151
  %v2156 = vadd.f32 %v2152, %v167
  %v2157 = vadd.f32 %v2153, %v171
  %v2158 = vadd.f32 %v2154, %v175
  %v2159 = vadd.f32 %v2155, %v179
  %v2160 = vpack.c.bf16 %v2004, %v2004
  %2161 = vmatprep.subr.bf16.mxu0 %v286
  %2162 = vmatpush1.bf16.msra.mxu0 %v285
  %2163 = vmatprep.subr.bf16.mxu0 %v290
  %2164 = vmatpush1.bf16.msra.mxu0 %v289
  %2165 = vmatprep.subr.bf16.mxu0 %v294
  %2166 = vmatpush1.bf16.msra.mxu0 %v293
  %2167 = vmatprep.subr.bf16.mxu0 %v298
  %2168 = vmatpush1.bf16.msra.mxu0 %v297
  %2169 = vmatprep.subr.bf16.mxu0 %v302
  %2170 = vmatpush1.bf16.msra.mxu0 %v301
  %2171 = vmatprep.subr.bf16.mxu0 %v306
  %2172 = vmatpush1.bf16.msra.mxu0 %v305
  %2173 = vmatprep.subr.bf16.mxu0 %v310
  %2174 = vmatpush1.bf16.msra.mxu0 %v309
  %2175 = vmatprep.subr.bf16.mxu0 %v314
  %2176 = vmatpush1.bf16.msra.mxu0 %v313
  %2177 = vmatprep.subr.bf16.mxu0 0
  %2178 = vmatpush1.bf16.msra.mxu0 0
  %2179 = vmatprep.subr.bf16.mxu0 0
  %2180 = vmatpush1.bf16.msra.mxu0 0
  %2181 = vmatprep.subr.bf16.mxu0 0
  %2182 = vmatpush1.bf16.msra.mxu0 0
  %2183 = vmatprep.subr.bf16.mxu0 0
  %2184 = vmatpush1.bf16.msra.mxu0 0
  %2185 = vmatprep.subr.bf16.mxu0 0
  %2186 = vmatpush1.bf16.msra.mxu0 0
  %2187 = vmatprep.subr.bf16.mxu0 0
  %2188 = vmatpush1.bf16.msra.mxu0 0
  %2189 = vmatprep.subr.bf16.mxu0 0
  %2190 = vmatpush1.bf16.msra.mxu0 0
  %2191 = vmatprep.subr.bf16.mxu0 0
  %2192 = vmatpush1.bf16.msra.mxu0 0
  %2193 = vmatprep.mubr.bf16.mxu0 0
  %2194 = vmatmul.mubr.bf16.gmra.mrb[0].mxu0 %v2160
  %v2195 = vpop.f32.mrb[0].mxu0
  %v2196 = vadd.f32 0.0, %v2195
  %v2197 = vpop.f32.mrb[0].mxu0
  %v2198 = vadd.f32 0.0, %v2197
  %v2199 = vpop.f32.mrb[0].mxu0
  %v2200 = vpop.f32.mrb[0].mxu0
  %2201 = vdwg.mxu0
  %2202 = vmatprep.subr.bf16.mxu0 %v288
  %2203 = vmatpush1.bf16.msra.mxu0 %v287
  %2204 = vmatprep.subr.bf16.mxu0 %v292
  %2205 = vmatpush1.bf16.msra.mxu0 %v291
  %2206 = vmatprep.subr.bf16.mxu0 %v296
  %2207 = vmatpush1.bf16.msra.mxu0 %v295
  %2208 = vmatprep.subr.bf16.mxu0 %v300
  %2209 = vmatpush1.bf16.msra.mxu0 %v299
  %2210 = vmatprep.subr.bf16.mxu0 %v304
  %2211 = vmatpush1.bf16.msra.mxu0 %v303
  %2212 = vmatprep.subr.bf16.mxu0 %v308
  %2213 = vmatpush1.bf16.msra.mxu0 %v307
  %2214 = vmatprep.subr.bf16.mxu0 %v312
  %2215 = vmatpush1.bf16.msra.mxu0 %v311
  %2216 = vmatprep.subr.bf16.mxu0 %v316
  %2217 = vmatpush1.bf16.msra.mxu0 %v315
  %2218 = vmatprep.subr.bf16.mxu0 0
  %2219 = vmatpush1.bf16.msra.mxu0 0
  %2220 = vmatprep.subr.bf16.mxu0 0
  %2221 = vmatpush1.bf16.msra.mxu0 0
  %2222 = vmatprep.subr.bf16.mxu0 0
  %2223 = vmatpush1.bf16.msra.mxu0 0
  %2224 = vmatprep.subr.bf16.mxu0 0
  %2225 = vmatpush1.bf16.msra.mxu0 0
  %2226 = vmatprep.subr.bf16.mxu0 0
  %2227 = vmatpush1.bf16.msra.mxu0 0
  %2228 = vmatprep.subr.bf16.mxu0 0
  %2229 = vmatpush1.bf16.msra.mxu0 0
  %2230 = vmatprep.subr.bf16.mxu0 0
  %2231 = vmatpush1.bf16.msra.mxu0 0
  %2232 = vmatprep.subr.bf16.mxu0 0
  %2233 = vmatpush1.bf16.msra.mxu0 0
  %2234 = vmatprep.mubr.bf16.mxu0 0
  %2235 = vmatmul.mubr.bf16.gmra.mrb[0].mxu0 %v2160
  %v2236 = vpop.f32.mrb[0].mxu0
  %v2237 = vadd.f32 0.0, %v2236
  %v2238 = vpop.f32.mrb[0].mxu0
  %v2239 = vadd.f32 0.0, %v2238
  %v2240 = vpop.f32.mrb[0].mxu0
  %v2241 = vpop.f32.mrb[0].mxu0
  %2242 = vdwg.mxu0
  %v2243 = vadd.f32 %v2156, %v2196
  %v2244 = vadd.f32 %v2157, %v2198
  %v2245 = vadd.f32 %v2158, %v2237
  %v2246 = vadd.f32 %v2159, %v2239
  %v2247 = vxor.u32 %v2243, 2147483648
  %v2248 = vxor.u32 %v2244, 2147483648
  %v2249 = vxor.u32 %v2245, 2147483648
  %v2250 = vmul.f32 %v2247, 1.442695
  %v2251 = vpow.pop %v2250
  %v2252 = vmul.f32 %v2248, 1.442695
  %v2253 = vpow.pop %v2252
  %v2254 = vmul.f32 %v2249, 1.442695
  %v2255 = vpow.pop %v2254
  %v2256 = vadd.f32 %v2251, 1.0
  %v2257 = vadd.f32 %v2253, 1.0
  %v2258 = vadd.f32 %v2255, 1.0
  %v2259 = vrcp.pop %v2256
  %v2260 = vmul.f32 1.0, %v2259
  %v2261 = vrcp.pop %v2257
  %v2262 = vmul.f32 1.0, %v2261
  %v2263 = vrcp.pop %v2258
  %v2264 = vmul.f32 1.0, %v2263
  %v2265 = vtanh.pop %v2246
  %v2266 = vmul.f32 %v2262, %v2005
  %v2267 = vmul.f32 %v2260, %v2265
  %v2268 = vadd.f32 %v2266, %v2267
  %v2269 = vtanh.pop %v2268
  %v2270 = vmul.f32 %v2264, %v2269
  %v2271 = vsel %vm2145, 1, 0
  %2272 = vset.pattern.permute.xlu0 0
  %2273 = vperm.xlu0 %2272, %v2271
  %v2274 = vpop.permute.xlu0 %2273
  %vm2275 = vcmp.eq.s32.totalorder %v2274, 1
  %v2276 = vsel %vm2275, %v2270, %v2004
  %v2277 = vsel %vm2275, %v2268, %v2005
  %v2278 = vsel %vm2275, %v2270, 0.0
  %s2279 = scalar_lea.vmem %s54, 16
  %v2280 = vld [vmem:[%s2279] sm:$0xff]
  %v2281 = vld [vmem:[%s2279 + $0x8] sm:$0xff]
  %v2282 = vunpack.c.l.bf16 %v2280
  %v2283 = vunpack.c.h.bf16 %v2280
  %v2284 = vunpack.c.l.bf16 %v2281
  %v2285 = vunpack.c.h.bf16 %v2281
  %v2286 = vadd.f32 %v2282, %v478
  %v2287 = vadd.f32 %v2283, %v482
  %v2288 = vadd.f32 %v2284, %v486
  %v2289 = vadd.f32 %v2285, %v490
  %v2290 = vpack.c.bf16 %v2134, %v2134
  %2291 = vmatprep.subr.bf16.mxu0 %v597
  %2292 = vmatpush1.bf16.msra.mxu0 %v596
  %2293 = vmatprep.subr.bf16.mxu0 %v601
  %2294 = vmatpush1.bf16.msra.mxu0 %v600
  %2295 = vmatprep.subr.bf16.mxu0 %v605
  %2296 = vmatpush1.bf16.msra.mxu0 %v604
  %2297 = vmatprep.subr.bf16.mxu0 %v609
  %2298 = vmatpush1.bf16.msra.mxu0 %v608
  %2299 = vmatprep.subr.bf16.mxu0 %v613
  %2300 = vmatpush1.bf16.msra.mxu0 %v612
  %2301 = vmatprep.subr.bf16.mxu0 %v617
  %2302 = vmatpush1.bf16.msra.mxu0 %v616
  %2303 = vmatprep.subr.bf16.mxu0 %v621
  %2304 = vmatpush1.bf16.msra.mxu0 %v620
  %2305 = vmatprep.subr.bf16.mxu0 %v625
  %2306 = vmatpush1.bf16.msra.mxu0 %v624
  %2307 = vmatprep.subr.bf16.mxu0 0
  %2308 = vmatpush1.bf16.msra.mxu0 0
  %2309 = vmatprep.subr.bf16.mxu0 0
  %2310 = vmatpush1.bf16.msra.mxu0 0
  %2311 = vmatprep.subr.bf16.mxu0 0
  %2312 = vmatpush1.bf16.msra.mxu0 0
  %2313 = vmatprep.subr.bf16.mxu0 0
  %2314 = vmatpush1.bf16.msra.mxu0 0
  %2315 = vmatprep.subr.bf16.mxu0 0
  %2316 = vmatpush1.bf16.msra.mxu0 0
  %2317 = vmatprep.subr.bf16.mxu0 0
  %2318 = vmatpush1.bf16.msra.mxu0 0
  %2319 = vmatprep.subr.bf16.mxu0 0
  %2320 = vmatpush1.bf16.msra.mxu0 0
  %2321 = vmatprep.subr.bf16.mxu0 0
  %2322 = vmatpush1.bf16.msra.mxu0 0
  %2323 = vmatprep.mubr.bf16.mxu0 0
  %2324 = vmatmul.mubr.bf16.gmra.mrb[0].mxu0 %v2290
  %v2325 = vpop.f32.mrb[0].mxu0
  %v2326 = vadd.f32 0.0, %v2325
  %v2327 = vpop.f32.mrb[0].mxu0
  %v2328 = vadd.f32 0.0, %v2327
  %v2329 = vpop.f32.mrb[0].mxu0
  %v2330 = vpop.f32.mrb[0].mxu0
  %2331 = vdwg.mxu0
  %2332 = vmatprep.subr.bf16.mxu0 %v599
  %2333 = vmatpush1.bf16.msra.mxu0 %v598
  %2334 = vmatprep.subr.bf16.mxu0 %v603
  %2335 = vmatpush1.bf16.msra.mxu0 %v602
  %2336 = vmatprep.subr.bf16.mxu0 %v607
  %2337 = vmatpush1.bf16.msra.mxu0 %v606
  %2338 = vmatprep.subr.bf16.mxu0 %v611
  %2339 = vmatpush1.bf16.msra.mxu0 %v610
  %2340 = vmatprep.subr.bf16.mxu0 %v615
  %2341 = vmatpush1.bf16.msra.mxu0 %v614
  %2342 = vmatprep.subr.bf16.mxu0 %v619
  %2343 = vmatpush1.bf16.msra.mxu0 %v618
  %2344 = vmatprep.subr.bf16.mxu0 %v623
  %2345 = vmatpush1.bf16.msra.mxu0 %v622
  %2346 = vmatprep.subr.bf16.mxu0 %v627
  %2347 = vmatpush1.bf16.msra.mxu0 %v626
  %2348 = vmatprep.subr.bf16.mxu0 0
  %2349 = vmatpush1.bf16.msra.mxu0 0
  %2350 = vmatprep.subr.bf16.mxu0 0
  %2351 = vmatpush1.bf16.msra.mxu0 0
  %2352 = vmatprep.subr.bf16.mxu0 0
  %2353 = vmatpush1.bf16.msra.mxu0 0
  %2354 = vmatprep.subr.bf16.mxu0 0
  %2355 = vmatpush1.bf16.msra.mxu0 0
  %2356 = vmatprep.subr.bf16.mxu0 0
  %2357 = vmatpush1.bf16.msra.mxu0 0
  %2358 = vmatprep.subr.bf16.mxu0 0
  %2359 = vmatpush1.bf16.msra.mxu0 0
  %2360 = vmatprep.subr.bf16.mxu0 0
  %2361 = vmatpush1.bf16.msra.mxu0 0
  %2362 = vmatprep.subr.bf16.mxu0 0
  %2363 = vmatpush1.bf16.msra.mxu0 0
  %2364 = vmatprep.mubr.bf16.mxu0 0
  %2365 = vmatmul.mubr.bf16.gmra.mrb[0].mxu0 %v2290
  %v2366 = vpop.f32.mrb[0].mxu0
  %v2367 = vadd.f32 0.0, %v2366
  %v2368 = vpop.f32.mrb[0].mxu0
  %v2369 = vadd.f32 0.0, %v2368
  %v2370 = vpop.f32.mrb[0].mxu0
  %v2371 = vpop.f32.mrb[0].mxu0
  %2372 = vdwg.mxu0
  %v2373 = vadd.f32 %v2286, %v2326
  %v2374 = vadd.f32 %v2287, %v2328
  %v2375 = vadd.f32 %v2288, %v2367
  %v2376 = vadd.f32 %v2289, %v2369
  %v2377 = vxor.u32 %v2373, 2147483648
  %v2378 = vxor.u32 %v2374, 2147483648
  %v2379 = vxor.u32 %v2375, 2147483648
  %v2380 = vmul.f32 %v2377, 1.442695
  %v2381 = vpow.pop %v2380
  %v2382 = vmul.f32 %v2378, 1.442695
  %v2383 = vpow.pop %v2382
  %v2384 = vmul.f32 %v2379, 1.442695
  %v2385 = vpow.pop %v2384
  %v2386 = vadd.f32 %v2381, 1.0
  %v2387 = vadd.f32 %v2383, 1.0
  %v2388 = vadd.f32 %v2385, 1.0
  %v2389 = vrcp.pop %v2386
  %v2390 = vmul.f32 1.0, %v2389
  %v2391 = vrcp.pop %v2387
  %v2392 = vmul.f32 1.0, %v2391
  %v2393 = vrcp.pop %v2388
  %v2394 = vmul.f32 1.0, %v2393
  %v2395 = vtanh.pop %v2376
  %v2396 = vmul.f32 %v2392, %v2135
  %v2397 = vmul.f32 %v2390, %v2395
  %v2398 = vadd.f32 %v2396, %v2397
  %v2399 = vtanh.pop %v2398
  %v2400 = vmul.f32 %v2394, %v2399
  %v2401 = vsel %vm2148, 1, 0
  %2402 = vset.pattern.permute.xlu0 0
  %2403 = vperm.xlu0 %2402, %v2401
  %v2404 = vpop.permute.xlu0 %2403
  %vm2405 = vcmp.eq.s32.totalorder %v2404, 1
  %v2406 = vsel %vm2405, %v2400, %v2134
  %v2407 = vsel %vm2405, %v2398, %v2135
  %v2408 = vsel %vm2405, %v2400, 0.0
  %v2409 = vpack.c.bf16 %v2278, %v2278
  %s2410 = scalar_lea.vmem %s5, 24
  %2411 = vst [vmem:[%s2410] sm:$0xf] %v2409
  %v2412 = vpack.c.bf16 %v2408, %v2408
  %s2413 = scalar_lea.vmem %s62, 4
  %2414 = vst [vmem:[%s2413] sm:$0xf] %v2412
  %s2415 = sadd.s32 %s143, 7
  %v2416 = vstv %s2415
  %vm2417 = vcmp.lt.s32.totalorder %v2416, %v142
  %v2418 = vstv %s145
  %vm2419 = vcmp.lt.s32.totalorder %v2418, %v142
  %s2420 = scalar_lea.vmem %s0, 112
  %v2421 = vld [vmem:[%s2420] sm:$0xff]
  %v2422 = vld [vmem:[%s2420 + $0x8] sm:$0xff]
  %v2423 = vunpack.c.l.bf16 %v2421
  %v2424 = vunpack.c.h.bf16 %v2421
  %v2425 = vunpack.c.l.bf16 %v2422
  %v2426 = vunpack.c.h.bf16 %v2422
  %v2427 = vadd.f32 %v2423, %v167
  %v2428 = vadd.f32 %v2424, %v171
  %v2429 = vadd.f32 %v2425, %v175
  %v2430 = vadd.f32 %v2426, %v179
  %v2431 = vpack.c.bf16 %v2276, %v2276
  %2432 = vmatprep.subr.bf16.mxu0 %v286
  %2433 = vmatpush1.bf16.msra.mxu0 %v285
  %2434 = vmatprep.subr.bf16.mxu0 %v290
  %2435 = vmatpush1.bf16.msra.mxu0 %v289
  %2436 = vmatprep.subr.bf16.mxu0 %v294
  %2437 = vmatpush1.bf16.msra.mxu0 %v293
  %2438 = vmatprep.subr.bf16.mxu0 %v298
  %2439 = vmatpush1.bf16.msra.mxu0 %v297
  %2440 = vmatprep.subr.bf16.mxu0 %v302
  %2441 = vmatpush1.bf16.msra.mxu0 %v301
  %2442 = vmatprep.subr.bf16.mxu0 %v306
  %2443 = vmatpush1.bf16.msra.mxu0 %v305
  %2444 = vmatprep.subr.bf16.mxu0 %v310
  %2445 = vmatpush1.bf16.msra.mxu0 %v309
  %2446 = vmatprep.subr.bf16.mxu0 %v314
  %2447 = vmatpush1.bf16.msra.mxu0 %v313
  %2448 = vmatprep.subr.bf16.mxu0 0
  %2449 = vmatpush1.bf16.msra.mxu0 0
  %2450 = vmatprep.subr.bf16.mxu0 0
  %2451 = vmatpush1.bf16.msra.mxu0 0
  %2452 = vmatprep.subr.bf16.mxu0 0
  %2453 = vmatpush1.bf16.msra.mxu0 0
  %2454 = vmatprep.subr.bf16.mxu0 0
  %2455 = vmatpush1.bf16.msra.mxu0 0
  %2456 = vmatprep.subr.bf16.mxu0 0
  %2457 = vmatpush1.bf16.msra.mxu0 0
  %2458 = vmatprep.subr.bf16.mxu0 0
  %2459 = vmatpush1.bf16.msra.mxu0 0
  %2460 = vmatprep.subr.bf16.mxu0 0
  %2461 = vmatpush1.bf16.msra.mxu0 0
  %2462 = vmatprep.subr.bf16.mxu0 0
  %2463 = vmatpush1.bf16.msra.mxu0 0
  %2464 = vmatprep.mubr.bf16.mxu0 0
  %2465 = vmatmul.mubr.bf16.gmra.mrb[0].mxu0 %v2431
  %v2466 = vpop.f32.mrb[0].mxu0
  %v2467 = vadd.f32 0.0, %v2466
  %v2468 = vpop.f32.mrb[0].mxu0
  %v2469 = vadd.f32 0.0, %v2468
  %v2470 = vpop.f32.mrb[0].mxu0
  %v2471 = vpop.f32.mrb[0].mxu0
  %2472 = vdwg.mxu0
  %2473 = vmatprep.subr.bf16.mxu0 %v288
  %2474 = vmatpush1.bf16.msra.mxu0 %v287
  %2475 = vmatprep.subr.bf16.mxu0 %v292
  %2476 = vmatpush1.bf16.msra.mxu0 %v291
  %2477 = vmatprep.subr.bf16.mxu0 %v296
  %2478 = vmatpush1.bf16.msra.mxu0 %v295
  %2479 = vmatprep.subr.bf16.mxu0 %v300
  %2480 = vmatpush1.bf16.msra.mxu0 %v299
  %2481 = vmatprep.subr.bf16.mxu0 %v304
  %2482 = vmatpush1.bf16.msra.mxu0 %v303
  %2483 = vmatprep.subr.bf16.mxu0 %v308
  %2484 = vmatpush1.bf16.msra.mxu0 %v307
  %2485 = vmatprep.subr.bf16.mxu0 %v312
  %2486 = vmatpush1.bf16.msra.mxu0 %v311
  %2487 = vmatprep.subr.bf16.mxu0 %v316
  %2488 = vmatpush1.bf16.msra.mxu0 %v315
  %2489 = vmatprep.subr.bf16.mxu0 0
  %2490 = vmatpush1.bf16.msra.mxu0 0
  %2491 = vmatprep.subr.bf16.mxu0 0
  %2492 = vmatpush1.bf16.msra.mxu0 0
  %2493 = vmatprep.subr.bf16.mxu0 0
  %2494 = vmatpush1.bf16.msra.mxu0 0
  %2495 = vmatprep.subr.bf16.mxu0 0
  %2496 = vmatpush1.bf16.msra.mxu0 0
  %2497 = vmatprep.subr.bf16.mxu0 0
  %2498 = vmatpush1.bf16.msra.mxu0 0
  %2499 = vmatprep.subr.bf16.mxu0 0
  %2500 = vmatpush1.bf16.msra.mxu0 0
  %2501 = vmatprep.subr.bf16.mxu0 0
  %2502 = vmatpush1.bf16.msra.mxu0 0
  %2503 = vmatprep.subr.bf16.mxu0 0
  %2504 = vmatpush1.bf16.msra.mxu0 0
  %2505 = vmatprep.mubr.bf16.mxu0 0
  %2506 = vmatmul.mubr.bf16.gmra.mrb[0].mxu0 %v2431
  %v2507 = vpop.f32.mrb[0].mxu0
  %v2508 = vadd.f32 0.0, %v2507
  %v2509 = vpop.f32.mrb[0].mxu0
  %v2510 = vadd.f32 0.0, %v2509
  %v2511 = vpop.f32.mrb[0].mxu0
  %v2512 = vpop.f32.mrb[0].mxu0
  %2513 = vdwg.mxu0
  %v2514 = vadd.f32 %v2427, %v2467
  %v2515 = vadd.f32 %v2428, %v2469
  %v2516 = vadd.f32 %v2429, %v2508
  %v2517 = vadd.f32 %v2430, %v2510
  %v2518 = vxor.u32 %v2514, 2147483648
  %v2519 = vxor.u32 %v2515, 2147483648
  %v2520 = vxor.u32 %v2516, 2147483648
  %v2521 = vmul.f32 %v2518, 1.442695
  %v2522 = vpow.pop %v2521
  %v2523 = vmul.f32 %v2519, 1.442695
  %v2524 = vpow.pop %v2523
  %v2525 = vmul.f32 %v2520, 1.442695
  %v2526 = vpow.pop %v2525
  %v2527 = vadd.f32 %v2522, 1.0
  %v2528 = vadd.f32 %v2524, 1.0
  %v2529 = vadd.f32 %v2526, 1.0
  %v2530 = vrcp.pop %v2527
  %v2531 = vmul.f32 1.0, %v2530
  %v2532 = vrcp.pop %v2528
  %v2533 = vmul.f32 1.0, %v2532
  %v2534 = vrcp.pop %v2529
  %v2535 = vmul.f32 1.0, %v2534
  %v2536 = vtanh.pop %v2517
  %v2537 = vmul.f32 %v2533, %v2277
  %v2538 = vmul.f32 %v2531, %v2536
  %v2539 = vadd.f32 %v2537, %v2538
  %v2540 = vtanh.pop %v2539
  %v2541 = vmul.f32 %v2535, %v2540
  %v2542 = vsel %vm2417, 1, 0
  %2543 = vset.pattern.permute.xlu0 0
  %2544 = vperm.xlu0 %2543, %v2542
  %v2545 = vpop.permute.xlu0 %2544
  %vm2546 = vcmp.eq.s32.totalorder %v2545, 1
  %v2547 = vsel %vm2546, %v2541, %v2276
  %v2548 = vsel %vm2546, %v2539, %v2277
  %v2549 = vsel %vm2546, %v2541, 0.0
  %v2550 = vld [vmem:[%s54] sm:$0xff]
  %v2551 = vld [vmem:[%s54 + $0x8] sm:$0xff]
  %v2552 = vunpack.c.l.bf16 %v2550
  %v2553 = vunpack.c.h.bf16 %v2550
  %v2554 = vunpack.c.l.bf16 %v2551
  %v2555 = vunpack.c.h.bf16 %v2551
  %v2556 = vadd.f32 %v2552, %v478
  %v2557 = vadd.f32 %v2553, %v482
  %v2558 = vadd.f32 %v2554, %v486
  %v2559 = vadd.f32 %v2555, %v490
  %v2560 = vpack.c.bf16 %v2406, %v2406
  %2561 = vmatprep.subr.bf16.mxu0 %v597
  %2562 = vmatpush1.bf16.msra.mxu0 %v596
  %2563 = vmatprep.subr.bf16.mxu0 %v601
  %2564 = vmatpush1.bf16.msra.mxu0 %v600
  %2565 = vmatprep.subr.bf16.mxu0 %v605
  %2566 = vmatpush1.bf16.msra.mxu0 %v604
  %2567 = vmatprep.subr.bf16.mxu0 %v609
  %2568 = vmatpush1.bf16.msra.mxu0 %v608
  %2569 = vmatprep.subr.bf16.mxu0 %v613
  %2570 = vmatpush1.bf16.msra.mxu0 %v612
  %2571 = vmatprep.subr.bf16.mxu0 %v617
  %2572 = vmatpush1.bf16.msra.mxu0 %v616
  %2573 = vmatprep.subr.bf16.mxu0 %v621
  %2574 = vmatpush1.bf16.msra.mxu0 %v620
  %2575 = vmatprep.subr.bf16.mxu0 %v625
  %2576 = vmatpush1.bf16.msra.mxu0 %v624
  %2577 = vmatprep.subr.bf16.mxu0 0
  %2578 = vmatpush1.bf16.msra.mxu0 0
  %2579 = vmatprep.subr.bf16.mxu0 0
  %2580 = vmatpush1.bf16.msra.mxu0 0
  %2581 = vmatprep.subr.bf16.mxu0 0
  %2582 = vmatpush1.bf16.msra.mxu0 0
  %2583 = vmatprep.subr.bf16.mxu0 0
  %2584 = vmatpush1.bf16.msra.mxu0 0
  %2585 = vmatprep.subr.bf16.mxu0 0
  %2586 = vmatpush1.bf16.msra.mxu0 0
  %2587 = vmatprep.subr.bf16.mxu0 0
  %2588 = vmatpush1.bf16.msra.mxu0 0
  %2589 = vmatprep.subr.bf16.mxu0 0
  %2590 = vmatpush1.bf16.msra.mxu0 0
  %2591 = vmatprep.subr.bf16.mxu0 0
  %2592 = vmatpush1.bf16.msra.mxu0 0
  %2593 = vmatprep.mubr.bf16.mxu0 0
  %2594 = vmatmul.mubr.bf16.gmra.mrb[0].mxu0 %v2560
  %v2595 = vpop.f32.mrb[0].mxu0
  %v2596 = vadd.f32 0.0, %v2595
  %v2597 = vpop.f32.mrb[0].mxu0
  %v2598 = vadd.f32 0.0, %v2597
  %v2599 = vpop.f32.mrb[0].mxu0
  %v2600 = vpop.f32.mrb[0].mxu0
  %2601 = vdwg.mxu0
  %2602 = vmatprep.subr.bf16.mxu0 %v599
  %2603 = vmatpush1.bf16.msra.mxu0 %v598
  %2604 = vmatprep.subr.bf16.mxu0 %v603
  %2605 = vmatpush1.bf16.msra.mxu0 %v602
  %2606 = vmatprep.subr.bf16.mxu0 %v607
  %2607 = vmatpush1.bf16.msra.mxu0 %v606
  %2608 = vmatprep.subr.bf16.mxu0 %v611
  %2609 = vmatpush1.bf16.msra.mxu0 %v610
  %2610 = vmatprep.subr.bf16.mxu0 %v615
  %2611 = vmatpush1.bf16.msra.mxu0 %v614
  %2612 = vmatprep.subr.bf16.mxu0 %v619
  %2613 = vmatpush1.bf16.msra.mxu0 %v618
  %2614 = vmatprep.subr.bf16.mxu0 %v623
  %2615 = vmatpush1.bf16.msra.mxu0 %v622
  %2616 = vmatprep.subr.bf16.mxu0 %v627
  %2617 = vmatpush1.bf16.msra.mxu0 %v626
  %2618 = vmatprep.subr.bf16.mxu0 0
  %2619 = vmatpush1.bf16.msra.mxu0 0
  %2620 = vmatprep.subr.bf16.mxu0 0
  %2621 = vmatpush1.bf16.msra.mxu0 0
  %2622 = vmatprep.subr.bf16.mxu0 0
  %2623 = vmatpush1.bf16.msra.mxu0 0
  %2624 = vmatprep.subr.bf16.mxu0 0
  %2625 = vmatpush1.bf16.msra.mxu0 0
  %2626 = vmatprep.subr.bf16.mxu0 0
  %2627 = vmatpush1.bf16.msra.mxu0 0
  %2628 = vmatprep.subr.bf16.mxu0 0
  %2629 = vmatpush1.bf16.msra.mxu0 0
  %2630 = vmatprep.subr.bf16.mxu0 0
  %2631 = vmatpush1.bf16.msra.mxu0 0
  %2632 = vmatprep.subr.bf16.mxu0 0
  %2633 = vmatpush1.bf16.msra.mxu0 0
  %2634 = vmatprep.mubr.bf16.mxu0 0
  %2635 = vmatmul.mubr.bf16.gmra.mrb[0].mxu0 %v2560
  %v2636 = vpop.f32.mrb[0].mxu0
  %v2637 = vadd.f32 0.0, %v2636
  %v2638 = vpop.f32.mrb[0].mxu0
  %v2639 = vadd.f32 0.0, %v2638
  %v2640 = vpop.f32.mrb[0].mxu0
  %v2641 = vpop.f32.mrb[0].mxu0
  %2642 = vdwg.mxu0
  %v2643 = vadd.f32 %v2556, %v2596
  %v2644 = vadd.f32 %v2557, %v2598
  %v2645 = vadd.f32 %v2558, %v2637
  %v2646 = vadd.f32 %v2559, %v2639
  %v2647 = vxor.u32 %v2643, 2147483648
  %v2648 = vxor.u32 %v2644, 2147483648
  %v2649 = vxor.u32 %v2645, 2147483648
  %v2650 = vmul.f32 %v2647, 1.442695
  %v2651 = vpow.pop %v2650
  %v2652 = vmul.f32 %v2648, 1.442695
  %v2653 = vpow.pop %v2652
  %v2654 = vmul.f32 %v2649, 1.442695
  %v2655 = vpow.pop %v2654
  %v2656 = vadd.f32 %v2651, 1.0
  %v2657 = vadd.f32 %v2653, 1.0
  %v2658 = vadd.f32 %v2655, 1.0
  %v2659 = vrcp.pop %v2656
  %v2660 = vmul.f32 1.0, %v2659
  %v2661 = vrcp.pop %v2657
  %v2662 = vmul.f32 1.0, %v2661
  %v2663 = vrcp.pop %v2658
  %v2664 = vmul.f32 1.0, %v2663
  %v2665 = vtanh.pop %v2646
  %v2666 = vmul.f32 %v2662, %v2407
  %v2667 = vmul.f32 %v2660, %v2665
  %v2668 = vadd.f32 %v2666, %v2667
  %v2669 = vtanh.pop %v2668
  %v2670 = vmul.f32 %v2664, %v2669
  %v2671 = vsel %vm2419, 1, 0
  %2672 = vset.pattern.permute.xlu0 0
  %2673 = vperm.xlu0 %2672, %v2671
  %v2674 = vpop.permute.xlu0 %2673
  %vm2675 = vcmp.eq.s32.totalorder %v2674, 1
  %v2676 = vsel %vm2675, %v2670, %v2406
  %v2677 = vsel %vm2675, %v2668, %v2407
  %v2678 = vsel %vm2675, %v2670, 0.0
  %v2679 = vpack.c.bf16 %v2549, %v2549
  %s2680 = scalar_lea.vmem %s5, 28
  %2681 = vst [vmem:[%s2680] sm:$0xf] %v2679
  %v2682 = vpack.c.bf16 %v2678, %v2678
  %2683 = vst [vmem:[%s62] sm:$0xf] %v2682
  %2684 = vst [vmem:[%s7] sm:$0xff] %v2547
  %2685 = vst [vmem:[%s148] sm:$0xff] %v2676
  %2686 = vst [vmem:[#allocation2] sm:$0xff] %v2548
  %2687 = vst [vmem:[%s150] sm:$0xff] %v2677
  %s2688 = ssub.s32 0, 0
  %s2689 = smul.u32 8, %s2688
  %p2690 = scmp.lt.s32.totalorder %s2689, 7
  %s2691 = scalar_select %p2690, %s2689, 7
  %s2692 = smul.addr %s2691, 4
  %s2693 = scalar_lea.vmem %s6, %s2692
  // Predicated region
  $region26: #{bilstm_forward.2} parent=0 // pred_check
    _
  $region27: #{bilstm_forward.2} parent=0 // pred_check_branch
    %2695 = sbr.rel (0) target = $region29
  $region28: #{bilstm_forward.2} parent=0 // pred_region
    _
  $region29: #{bilstm_forward.2} parent=0 // pred_fallthru
    _
  // Predicated region
  $region30: #{bilstm_forward.2} parent=0 // pred_check
    _
  $region31: #{bilstm_forward.2} parent=0 // pred_check_branch
    %2697 = sbr.rel (0) target = $region33
  $region32: #{bilstm_forward.2} parent=0 // pred_region
    %s2698 = ssub.s32 0, 0
    %s2699 = smul.u32 8, %s2698
  $region33: #{bilstm_forward.2} parent=0 // pred_fallthru
    _
  // Predicated region
  $region34: #{bilstm_forward.2} parent=0 // pred_check
    _
  $region35: #{bilstm_forward.2} parent=0 // pred_check_branch
    %2701 = sbr.rel (0) target = $region37
  $region36: #{bilstm_forward.2} parent=0 // pred_region
    _
  $region37: #{bilstm_forward.2} parent=0 // pred_fallthru
    _
  // Predicated region
  $region38: #{bilstm_forward.2} parent=0 // pred_check
    _
  $region39: #{bilstm_forward.2} parent=0 // pred_check_branch
    %2703 = sbr.rel (0) target = $region41
  $region40: #{bilstm_forward.2} parent=0 // pred_region
    _
  $region41: #{bilstm_forward.2} parent=0 // pred_fallthru
    _
  // Predicated region
  $region42: #{bilstm_forward.2} parent=0 // pred_check
    _
  $region43: #{bilstm_forward.2} parent=0 // pred_check_branch
    %2705 = sbr.rel (0) target = $region45
  $region44: #{bilstm_forward.2} parent=0 // pred_region
    %s2706 = ssub.s32 0, 0
    %s2707 = smul.u32 8, %s2706
    %p2708 = scmp.lt.s32.totalorder %s2707, 7
    %s2709 = scalar_select %p2708, %s2707, 7
    %s2710 = smul.addr %s2709, 4
    %s2711 = scalar_lea.vmem %s6, %s2710
  $region45: #{bilstm_forward.2} parent=0 // pred_fallthru
    _
  // Predicated region
  $region46: #{bilstm_forward.2} parent=0 // pred_check
    _
  $region47: #{bilstm_forward.2} parent=0 // pred_check_branch
    %2713 = sbr.rel (0) target = $region49
  $region48: #{bilstm_forward.2} parent=0 // pred_region
    _
  $region49: #{bilstm_forward.2} parent=0 // pred_fallthru
    _

</llo_original>
